<compile_context>
chip_gen: v5e
topology: v5e:2x2
jax: 0.10.0
libtpu: 0.0.40
codegen_flags: <defaults>
</compile_context>

<pallas_src>
import functools
import math

import jax
import jax.numpy as jnp
from jax import lax
from jax.experimental import pallas as pl
from jax.experimental.pallas import tpu as pltpu


# ----------------------------- in-kernel helpers -----------------------------

def _erf(x):
    # Abramowitz & Stegun 7.1.26 rational approximation (abs err ~1.5e-7).
    p = 0.3275911
    a1, a2, a3, a4, a5 = (0.254829592, -0.284496736, 1.421413741,
                          -1.453152027, 1.061405429)
    ax = jnp.abs(x)
    t = pl.reciprocal(1.0 + p * ax, approx=True)          # EUP slot
    poly = ((((a5 * t + a4) * t + a3) * t + a2) * t + a1) * t
    y = 1.0 - poly * jnp.exp(-(ax * ax))
    return jnp.where(x >= 0.0, y, -y)


def _gelu(x):
    # PyTorch F.gelu default (exact, erf-based).
    return 0.5 * x * (1.0 + _erf(x * (1.0 / math.sqrt(2.0))))


def _layer_norm(x, w, b, eps=1e-5):
    mu = jnp.mean(x, axis=-1, keepdims=True)
    xc = x - mu
    var = jnp.mean(xc * xc, axis=-1, keepdims=True)
    return xc * lax.rsqrt(var + eps) * w + b


def _split_heads(x2d, n_heads, head_dim):
    """(Sq, E) -> (H, Sq, d) bf16 via static lane slices (no matmul loop)."""
    xb = x2d.astype(jnp.bfloat16)
    return jnp.stack([xb[:, h * head_dim:(h + 1) * head_dim]
                      for h in range(n_heads)], axis=0)


def _mha(q2, k2, v2, n_batch, q_len, kv_len, n_heads, head_dim):
    """Multi-head attention on already-projected Q/K/V.

    q2: (n_batch*q_len, E) f32, k2/v2: (n_batch*kv_len, E) f32.
    Returns (n_batch*q_len, E) bf16 (heads concatenated head-major on lanes).
    """
    scale = 1.0 / math.sqrt(head_dim)
    outs = []
    for b in range(n_batch):                       # static, small batch block
        q3 = _split_heads(q2[b * q_len:(b + 1) * q_len], n_heads, head_dim)
        k3 = _split_heads(k2[b * kv_len:(b + 1) * kv_len], n_heads, head_dim)
        v3 = _split_heads(v2[b * kv_len:(b + 1) * kv_len], n_heads, head_dim)
        s = lax.dot_general(q3, k3, (((2,), (2,)), ((0,), (0,))),
                            preferred_element_type=jnp.float32) * scale   # (H,Sq,Sk)
        s = s - jnp.max(s, axis=-1, keepdims=True)
        p = jnp.exp(s)
        p = p * pl.reciprocal(jnp.sum(p, axis=-1, keepdims=True), approx=True)
        o = lax.dot_general(p.astype(jnp.bfloat16), v3,
                            (((2,), (1,)), ((0,), (0,))),
                            preferred_element_type=jnp.float32)           # (H,Sq,d)
        merged = jnp.concatenate([o[h] for h in range(n_heads)], axis=-1)  # (Sq,E)
        outs.append(merged.astype(jnp.bfloat16))
    return jnp.concatenate(outs, axis=0) if n_batch > 1 else outs[0]


# --------------------------------- the kernel --------------------------------

def _decoder_kernel(trg_ref, enc_ref, pos_ref, tok_w_ref, tok_b_ref,
                    sa_qkv_w_ref, sa_qkv_b_ref, sa_ow_ref, sa_ob_ref,
                    ca_q_w_ref, ca_q_b_ref, ca_kv_w_ref, ca_kv_b_ref,
                    ca_ow_ref, ca_ob_ref,
                    l1_w_ref, l1_b_ref, l2_w_ref, l2_b_ref,
                    n1_w_ref, n1_b_ref, n2_w_ref, n2_b_ref, n3_w_ref, n3_b_ref,
                    out_ref, x_scratch,
                    *, n_heads, hid_dim, input_dim, batch_block, q_len, kv_len):
    layer = pl.program_id(1)
    E = hid_dim
    H = n_heads
    d = E // H
    Bb, S, Sm = batch_block, q_len, kv_len
    bf = jnp.bfloat16
    f32 = jnp.float32

    # --- embedding + positional encoding (only on the first layer step) ---
    @pl.when(layer == 0)
    def _():
        src = trg_ref[...]                                  # (Bb*S, input_dim)
        if input_dim == 1:
            emb = src * tok_w_ref[...]                      # (Bb*S,1)*(1,E)
        else:
            emb = jnp.dot(src, tok_w_ref[...], preferred_element_type=f32)
        emb = emb + tok_b_ref[...]
        x_scratch[...] = emb * math.sqrt(E) + pos_ref[...]

    x = x_scratch[...]                                      # (Bb*S, E) f32

    # --- self attention: one fat QKV matmul -> MHA -> one out-proj matmul ---
    qkv = jnp.dot(x.astype(bf), sa_qkv_w_ref[0],
                  preferred_element_type=f32) + sa_qkv_b_ref[0]   # (Bb*S, 3E)
    sa = _mha(qkv[:, :E], qkv[:, E:2 * E], qkv[:, 2 * E:], Bb, S, S, H, d)
    sa = jnp.dot(sa, sa_ow_ref[0], preferred_element_type=f32) + sa_ob_ref[0]
    x = _layer_norm(x + sa, n1_w_ref[0], n1_b_ref[0])

    # --- cross attention (Q from x, fat KV matmul from encoder memory) ---
    q2 = jnp.dot(x.astype(bf), ca_q_w_ref[0],
                 preferred_element_type=f32) + ca_q_b_ref[0]      # (Bb*S, E)
    mem = enc_ref[...].astype(bf)                                 # (Bb*Sm, E)
    kv = jnp.dot(mem, ca_kv_w_ref[0],
                 preferred_element_type=f32) + ca_kv_b_ref[0]     # (Bb*Sm, 2E)
    ca = _mha(q2, kv[:, :E], kv[:, E:], Bb, S, Sm, H, d)
    ca = jnp.dot(ca, ca_ow_ref[0], preferred_element_type=f32) + ca_ob_ref[0]
    x = _layer_norm(x + ca, n2_w_ref[0], n2_b_ref[0])

    # --- feed-forward (gelu) ---
    h = jnp.dot(x.astype(bf), l1_w_ref[0],
                preferred_element_type=f32) + l1_b_ref[0]
    h = _gelu(h)
    ff = jnp.dot(h.astype(bf), l2_w_ref[0],
                 preferred_element_type=f32) + l2_b_ref[0]
    x = _layer_norm(x + ff, n3_w_ref[0], n3_b_ref[0])

    x_scratch[...] = x

    # --- lane-dense (E-wide) output store only on the last layer step ---
    @pl.when(layer == pl.num_programs(1) - 1)
    def _():
        out_ref[...] = x


# ------------------------------ wrapper / glue --------------------------------

def positional_encoding(seq_len, hid_dim):
    # NOTE: assumes even hid_dim (like the PyTorch module in practice).
    position = jnp.arange(seq_len, dtype=jnp.float32)[:, None]
    div_term = jnp.exp(jnp.arange(0, hid_dim, 2, dtype=jnp.float32)
                       * (-math.log(10000.0) / hid_dim))
    ang = position * div_term
    pos = jnp.zeros((seq_len, hid_dim), jnp.float32)
    pos = pos.at[:, 0::2].set(jnp.sin(ang))
    pos = pos.at[:, 1::2].set(jnp.cos(ang))
    return pos


_PER_LAYER_KEYS = ("sa_qkv_w", "sa_qkv_b", "sa_out_w", "sa_out_b",
                   "ca_q_w", "ca_q_b", "ca_kv_w", "ca_kv_b",
                   "ca_out_w", "ca_out_b",
                   "l1_w", "l1_b", "l2_w", "l2_b",
                   "n1_w", "n1_b", "n2_w", "n2_b", "n3_w", "n3_b")


def prepare_weights(p):
    """PyTorch-layout params -> kernel layout (x @ W.T columns, bf16 matmul weights).

    QKV columns are ordered [Q_allheads | K_allheads | V_allheads] so the Q/K/V
    lane slices start on E-aligned boundaries; head order inside each region is
    PyTorch's head-major order (h*d + c), so no in-kernel permutation is needed.
    """
    bf = jnp.bfloat16
    E = p["tok_w"].shape[0]

    def t(w):  # (L, rows, cols) PyTorch linear.weight -> (L, cols, rows) = W.T
        return jnp.transpose(w, (0, 2, 1))

    w = {
        "sa_qkv_w": t(p["sa_in_w"]).astype(bf),            # (L, E, 3E)
        "sa_qkv_b": p["sa_in_b"][:, None, :],              # (L, 1, 3E)
        "sa_out_w": t(p["sa_out_w"]).astype(bf),           # (L, E, E)
        "sa_out_b": p["sa_out_b"][:, None, :],
        "ca_q_w": t(p["ca_in_w"][:, :E, :]).astype(bf),    # (L, E, E)
        "ca_q_b": p["ca_in_b"][:, None, :E],
        "ca_kv_w": t(p["ca_in_w"][:, E:, :]).astype(bf),   # (L, E, 2E) [K|V]
        "ca_kv_b": p["ca_in_b"][:, None, E:],
        "ca_out_w": t(p["ca_out_w"]).astype(bf),
        "ca_out_b": p["ca_out_b"][:, None, :],
        "l1_w": t(p["l1_w"]).astype(bf), "l1_b": p["l1_b"][:, None, :],
        "l2_w": t(p["l2_w"]).astype(bf), "l2_b": p["l2_b"][:, None, :],
        "tok_w": p["tok_w"].T,                             # (input_dim, E) f32
        "tok_b": p["tok_b"][None, :],                      # (1, E)
    }
    for n in ("n1", "n2", "n3"):
        w[f"{n}_w"] = p[f"{n}_w"][:, None, :]
        w[f"{n}_b"] = p[f"{n}_b"][:, None, :]
    return w


def _pick_vmem_limit(*, batch_block, q_len, kv_len, hid_dim, pf_dim, n_heads,
                     input_dim, per_layer, consts):
    """Derive vmem_limit_bytes from block shapes, clamped to physical VMEM."""
    layer_bytes = sum(math.prod(a.shape[1:]) * a.dtype.itemsize for a in per_layer)
    const_bytes = sum(a.size * a.dtype.itemsize for a in consts)
    io_bytes = 4 * batch_block * (q_len * input_dim + kv_len * hid_dim
                                  + q_len * hid_dim)
    scratch_bytes = 4 * batch_block * q_len * hid_dim
    # live intermediates: qkv / ffn hidden (f32 + bf16 copies) + attention scores.
    work_bytes = (6 * batch_block * q_len * max(3 * hid_dim, pf_dim)
                  + 6 * n_heads * q_len * max(q_len, kv_len)
                  + 6 * batch_block * q_len * hid_dim)
    need = 2 * (layer_bytes + const_bytes + io_bytes) + scratch_bytes + work_bytes
    need += 4 << 20                       # margin for compiler scratch / spills
    try:
        cap = int(pltpu.get_tpu_info().vmem_capacity_bytes * 0.9)
    except Exception:                     # noqa: BLE001 - best-effort hardware query
        cap = 64 << 20
    return int(min(max(need, 32 << 20), cap))


def transformer_decoder_forward(trg, enc_src, params, *, n_heads, mask=None,
                                batch_block=None):
    # TODO(synk): tgt/memory key-padding-mask path not implemented (mask=None use).
    if mask is not None:
        raise NotImplementedError("key_padding_mask not supported in this kernel")
    if trg.size == 0 or enc_src.size == 0:
        raise ValueError("Expected input tensors to be non-empty")
    if trg.ndim != 3 or enc_src.ndim != 3:
        raise ValueError("Mismatched input dimension")

    B, S, input_dim = trg.shape
    _, S_mem, hid = enc_src.shape

    w = prepare_weights(params)
    n_layers = w["sa_qkv_w"].shape[0]
    pf_dim = w["l1_w"].shape[2]

    # Batch block: larger Bb amortizes per-layer weight DMA over more rows and
    # raises the matmul M-dim; smaller Bb (with B//Bb >= 2) exposes the parallel
    # grid axis to both v7x TensorCores.  Default: whole batch per block.
    Bb = B if batch_block is None else batch_block
    if B % Bb != 0:
        raise ValueError("batch_block must divide batch size")

    pos = positional_encoding(S, hid)
    pos_tiled = jnp.tile(pos, (Bb, 1))                       # (Bb*S, E)

    trg2 = trg.reshape(B * S, input_dim).astype(jnp.float32)
    enc2 = enc_src.reshape(B * S_mem, hid).astype(jnp.float32)

    per_layer = [w[k] for k in _PER_LAYER_KEYS]
    consts = [pos_tiled, w["tok_w"], w["tok_b"]]

    def const_spec(a):
        zeros = (0,) * a.ndim
        return pl.BlockSpec(a.shape, lambda b, l: zeros)

    def layer_spec(a):
        zeros = (0,) * (a.ndim - 1)
        return pl.BlockSpec((1,) + a.shape[1:], lambda b, l: (l,) + zeros)

    in_specs = ([pl.BlockSpec((Bb * S, input_dim), lambda b, l: (b, 0)),
                 pl.BlockSpec((Bb * S_mem, hid), lambda b, l: (b, 0))]
                + [const_spec(a) for a in consts]
                + [layer_spec(a) for a in per_layer])

    kernel = functools.partial(_decoder_kernel, n_heads=n_heads, hid_dim=hid,
                               input_dim=input_dim, batch_block=Bb,
                               q_len=S, kv_len=S_mem)

    vmem_limit = _pick_vmem_limit(batch_block=Bb, q_len=S, kv_len=S_mem,
                                  hid_dim=hid, pf_dim=pf_dim, n_heads=n_heads,
                                  input_dim=input_dim, per_layer=per_layer,
                                  consts=consts)

    x = pl.pallas_call(
        kernel,
        out_shape=jax.ShapeDtypeStruct((B * S, hid), jnp.float32),
        grid=(B // Bb, n_layers),
        in_specs=in_specs,
        out_specs=pl.BlockSpec((Bb * S, hid), lambda b, l: (b, 0)),
        scratch_shapes=[pltpu.VMEM((Bb * S, hid), jnp.float32)],
        compiler_params=pltpu.CompilerParams(
            dimension_semantics=("parallel", "arbitrary"),
            vmem_limit_bytes=vmem_limit),
    )(trg2, enc2, *consts, *per_layer)

    x = x.reshape(B, S, hid)
    # fc_out in plain XLA: keeps the kernel output lane-dense (out_dim may be 1).
    return x @ params["fc_w"].T + params["fc_b"]


# ------------------------- init + pure-JAX reference ---------------------------

def init_params(key, *, input_dim, output_dim, hid_dim, n_layers, pf_dim):
    E, L, pf = hid_dim, n_layers, pf_dim
    it = iter(jax.random.split(key, 16))

    def u(shape, fan_in):
        b = 1.0 / math.sqrt(fan_in)
        return jax.random.uniform(next(it), shape, jnp.float32, -b, b)

    p = {
        "tok_w": u((E, input_dim), input_dim), "tok_b": u((E,), input_dim),
        "sa_in_w": u((L, 3 * E, E), E), "sa_in_b": u((L, 3 * E), E),
        "sa_out_w": u((L, E, E), E), "sa_out_b": u((L, E), E),
        "ca_in_w": u((L, 3 * E, E), E), "ca_in_b": u((L, 3 * E), E),
        "ca_out_w": u((L, E, E), E), "ca_out_b": u((L, E), E),
        "l1_w": u((L, pf, E), E), "l1_b": u((L, pf), E),
        "l2_w": u((L, E, pf), pf), "l2_b": u((L, E), pf),
        "fc_w": u((output_dim, E), E), "fc_b": u((output_dim,), E),
    }
    for n in ("n1", "n2", "n3"):                 # LayerNorm default init
        p[f"{n}_w"] = jnp.ones((L, E), jnp.float32)
        p[f"{n}_b"] = jnp.zeros((L, E), jnp.float32)
    return p


def _ref_ln(x, w, b, eps=1e-5):
    mu = jnp.mean(x, -1, keepdims=True)
    var = jnp.mean((x - mu) ** 2, -1, keepdims=True)
    return (x - mu) / jnp.sqrt(var + eps) * w + b


def _ref_mha(q_in, kv_in, Wi, bi, Wo, bo, H):
    E = q_in.shape[-1]
    d = E // H
    q = q_in @ Wi[:E].T + bi[:E]
    k = kv_in @ Wi[E:2 * E].T + bi[E:2 * E]
    v = kv_in @ Wi[2 * E:].T + bi[2 * E:]
    qh = q.reshape(-1, H, d).transpose(1, 0, 2)
    kh = k.reshape(-1, H, d).transpose(1, 0, 2)
    vh = v.reshape(-1, H, d).transpose(1, 0, 2)
    s = jnp.einsum("hqd,hkd->hqk", qh, kh) / math.sqrt(d)
    p = jax.nn.softmax(s, axis=-1)
    o = jnp.einsum("hqk,hkd->hqd", p, vh)
    cat = o.transpose(1, 0, 2).reshape(-1, E)
    return cat @ Wo.T + bo


def reference_forward(trg, enc_src, p, n_heads):
    B, S, _ = trg.shape
    E = p["tok_w"].shape[0]
    L = p["sa_in_w"].shape[0]
    pos = positional_encoding(S, E)
    x = (trg @ p["tok_w"].T + p["tok_b"]) * math.sqrt(E) + pos
    outs = []
    for b in range(B):
        xb, mem = x[b], enc_src[b]
        for l in range(L):
            sa = _ref_mha(xb, xb, p["sa_in_w"][l], p["sa_in_b"][l],
                          p["sa_out_w"][l], p["sa_out_b"][l], n_heads)
            xb = _ref_ln(xb + sa, p["n1_w"][l], p["n1_b"][l])
            ca = _ref_mha(xb, mem, p["ca_in_w"][l], p["ca_in_b"][l],
                          p["ca_out_w"][l], p["ca_out_b"][l], n_heads)
            xb = _ref_ln(xb + ca, p["n2_w"][l], p["n2_b"][l])
            h = jax.nn.gelu(xb @ p["l1_w"][l].T + p["l1_b"][l], approximate=False)
            ff = h @ p["l2_w"][l].T + p["l2_b"][l]
            xb = _ref_ln(xb + ff, p["n3_w"][l], p["n3_b"][l])
        outs.append(xb @ p["fc_w"].T + p["fc_b"])
    return jnp.stack(outs)


# ----------------------------------- demo -------------------------------------

if __name__ == "__main__":
    # Module-consistent small shapes (input_dim=1, output_dim=1, hid_dim=16,
    # n_heads=4, pf_dim=32); batch=2, seq=8, n_layers=2 for the demo.
    B, S, S_mem = 2, 8, 8
    input_dim, output_dim = 1, 1
    hid_dim, n_layers, n_heads, pf_dim = 16, 2, 4, 32

    key = jax.random.PRNGKey(0)
    k_trg, k_enc, k_par = jax.random.split(key, 3)

    trg = jax.random.normal(k_trg, (B, S, input_dim), jnp.float32)
    enc_src = jax.random.normal(k_enc, (B, S_mem, hid_dim), jnp.float32)
    params = init_params(k_par, input_dim=input_dim, output_dim=output_dim,
                         hid_dim=hid_dim, n_layers=n_layers, pf_dim=pf_dim)

    out = transformer_decoder_forward(trg, enc_src, params, n_heads=n_heads)
    out = jax.block_until_ready(out)
    assert out.shape == (B, S, output_dim)
    assert bool(jnp.all(jnp.isfinite(out)))

    # Check against a pure-JAX fp32 reference (loose tol: bf16 MXU inputs).
    ref = reference_forward(trg, enc_src, params, n_heads)
    err = float(jnp.max(jnp.abs(out - ref)))
    assert err < 1e-1, f"mismatch vs reference: max abs err {err}"

    print("KERNEL_OK")
</pallas_src>

<mosaic_0001>
module attributes {stable_mosaic.version = 11 : i64} {
  func.func @_decoder_kernel(%arg0: i32, %arg1: i32, %arg2: memref<16x1xf32, #tpu.memory_space<vmem>>, %arg3: memref<16x16xf32, #tpu.memory_space<vmem>>, %arg4: memref<16x16xf32, #tpu.memory_space<vmem>>, %arg5: memref<1x16xf32, #tpu.memory_space<vmem>>, %arg6: memref<1x16xf32, #tpu.memory_space<vmem>>, %arg7: memref<1x16x48xbf16, #tpu.memory_space<vmem>>, %arg8: memref<1x1x48xf32, #tpu.memory_space<vmem>>, %arg9: memref<1x16x16xbf16, #tpu.memory_space<vmem>>, %arg10: memref<1x1x16xf32, #tpu.memory_space<vmem>>, %arg11: memref<1x16x16xbf16, #tpu.memory_space<vmem>>, %arg12: memref<1x1x16xf32, #tpu.memory_space<vmem>>, %arg13: memref<1x16x32xbf16, #tpu.memory_space<vmem>>, %arg14: memref<1x1x32xf32, #tpu.memory_space<vmem>>, %arg15: memref<1x16x16xbf16, #tpu.memory_space<vmem>>, %arg16: memref<1x1x16xf32, #tpu.memory_space<vmem>>, %arg17: memref<1x16x32xbf16, #tpu.memory_space<vmem>>, %arg18: memref<1x1x32xf32, #tpu.memory_space<vmem>>, %arg19: memref<1x32x16xbf16, #tpu.memory_space<vmem>>, %arg20: memref<1x1x16xf32, #tpu.memory_space<vmem>>, %arg21: memref<1x1x16xf32, #tpu.memory_space<vmem>>, %arg22: memref<1x1x16xf32, #tpu.memory_space<vmem>>, %arg23: memref<1x1x16xf32, #tpu.memory_space<vmem>>, %arg24: memref<1x1x16xf32, #tpu.memory_space<vmem>>, %arg25: memref<1x1x16xf32, #tpu.memory_space<vmem>>, %arg26: memref<1x1x16xf32, #tpu.memory_space<vmem>>, %arg27: memref<16x16xf32, #tpu.memory_space<vmem>>, %arg28: memref<16x16xf32, #tpu.memory_space<vmem>>) attributes {dimension_semantics = [#tpu.dimension_semantics<parallel>, #tpu.dimension_semantics<arbitrary>], iteration_bounds = array<i64: 1, 2>, scalar_prefetch = 0 : i64, scratch_operands = 1 : i64, tpu.core_type = #tpu.core_type<tc>, window_params = [{transform_indices = @transform_0, window_bounds = array<i64: 16, 1>}, {transform_indices = @transform_1, window_bounds = array<i64: 16, 16>}, {pipeline_mode = #tpu.pipeline_mode<synchronous>, transform_indices = @transform_2, window_bounds = array<i64: 16, 16>}, {pipeline_mode = #tpu.pipeline_mode<synchronous>, transform_indices = @transform_3, window_bounds = array<i64: 1, 16>}, {pipeline_mode = #tpu.pipeline_mode<synchronous>, transform_indices = @transform_4, window_bounds = array<i64: 1, 16>}, {transform_indices = @transform_5, window_bounds = array<i64: 1, 16, 48>}, {transform_indices = @transform_6, window_bounds = array<i64: 1, 1, 48>}, {transform_indices = @transform_7, window_bounds = array<i64: 1, 16, 16>}, {transform_indices = @transform_8, window_bounds = array<i64: 1, 1, 16>}, {transform_indices = @transform_9, window_bounds = array<i64: 1, 16, 16>}, {transform_indices = @transform_10, window_bounds = array<i64: 1, 1, 16>}, {transform_indices = @transform_11, window_bounds = array<i64: 1, 16, 32>}, {transform_indices = @transform_12, window_bounds = array<i64: 1, 1, 32>}, {transform_indices = @transform_13, window_bounds = array<i64: 1, 16, 16>}, {transform_indices = @transform_14, window_bounds = array<i64: 1, 1, 16>}, {transform_indices = @transform_15, window_bounds = array<i64: 1, 16, 32>}, {transform_indices = @transform_16, window_bounds = array<i64: 1, 1, 32>}, {transform_indices = @transform_17, window_bounds = array<i64: 1, 32, 16>}, {transform_indices = @transform_18, window_bounds = array<i64: 1, 1, 16>}, {transform_indices = @transform_19, window_bounds = array<i64: 1, 1, 16>}, {transform_indices = @transform_20, window_bounds = array<i64: 1, 1, 16>}, {transform_indices = @transform_21, window_bounds = array<i64: 1, 1, 16>}, {transform_indices = @transform_22, window_bounds = array<i64: 1, 1, 16>}, {transform_indices = @transform_23, window_bounds = array<i64: 1, 1, 16>}, {transform_indices = @transform_24, window_bounds = array<i64: 1, 1, 16>}, {transform_indices = @transform_25, window_bounds = array<i64: 16, 16>}]} {
    %c0_i32 = arith.constant 0 : i32
    %0 = arith.cmpi eq, %arg1, %c0_i32 : i32
    %1 = arith.extui %0 : i1 to i32
    %c0_i32_0 = arith.constant 0 : i32
    %2 = arith.cmpi ne, %1, %c0_i32_0 : i32
    scf.if %2 {
      %c0_122 = arith.constant 0 : index
      %c0_123 = arith.constant 0 : index
      %416 = vector.load %arg2[%c0_122, %c0_123] : memref<16x1xf32, #tpu.memory_space<vmem>>, vector<16x1xf32>
      %c0_124 = arith.constant 0 : index
      %c0_125 = arith.constant 0 : index
      %417 = vector.load %arg5[%c0_124, %c0_125] : memref<1x16xf32, #tpu.memory_space<vmem>>, vector<1x16xf32>
      %418 = vector.broadcast %416 : vector<16x1xf32> to vector<16x16xf32>
      %419 = vector.broadcast %417 : vector<1x16xf32> to vector<16x16xf32>
      %420 = arith.mulf %418, %419 : vector<16x16xf32>
      %c0_126 = arith.constant 0 : index
      %c0_127 = arith.constant 0 : index
      %421 = vector.load %arg6[%c0_126, %c0_127] : memref<1x16xf32, #tpu.memory_space<vmem>>, vector<1x16xf32>
      %422 = vector.broadcast %421 : vector<1x16xf32> to vector<16x16xf32>
      %423 = arith.addf %420, %422 : vector<16x16xf32>
      %cst_128 = arith.constant 4.000000e+00 : f32
      %424 = vector.broadcast %cst_128 : f32 to vector<16x16xf32>
      %425 = arith.mulf %423, %424 : vector<16x16xf32>
      %c0_129 = arith.constant 0 : index
      %c0_130 = arith.constant 0 : index
      %426 = vector.load %arg4[%c0_129, %c0_130] : memref<16x16xf32, #tpu.memory_space<vmem>>, vector<16x16xf32>
      %427 = arith.addf %425, %426 : vector<16x16xf32>
      %c0_131 = arith.constant 0 : index
      %c0_132 = arith.constant 0 : index
      %428 = vector.load %arg28[%c0_131, %c0_132] : memref<16x16xf32, #tpu.memory_space<vmem>>, vector<16x16xf32>
      tpu.vector_store %arg28[%c0_131, %c0_132], %427 {strides = array<i32>} : memref<16x16xf32, #tpu.memory_space<vmem>>, vector<16x16xf32>,
    } else {
    }
    %c0 = arith.constant 0 : index
    %c0_1 = arith.constant 0 : index
    %3 = vector.load %arg28[%c0, %c0_1] : memref<16x16xf32, #tpu.memory_space<vmem>>, vector<16x16xf32>
    %4 = arith.truncf %3 : vector<16x16xf32> to vector<16x16xbf16>
    %c0_2 = arith.constant 0 : index
    %c0_3 = arith.constant 0 : index
    %c0_4 = arith.constant 0 : index
    %5 = vector.load %arg7[%c0_2, %c0_3, %c0_4] : memref<1x16x48xbf16, #tpu.memory_space<vmem>>, vector<1x16x48xbf16>
    %6 = vector.shape_cast %5 : vector<1x16x48xbf16> to vector<16x48xbf16>
    %cst = arith.constant dense<0.000000e+00> : vector<16x48xf32>
    %7 = tpu.matmul %4, %6, %cst {dimension_numbers = #tpu.dot_dimension_numbers<[1], [0], [0], [1], [0, 0, 1, 1], [], []>} : vector<16x16xbf16>, vector<16x48xbf16>, vector<16x48xf32> -> vector<16x48xf32>
    %c0_5 = arith.constant 0 : index
    %c0_6 = arith.constant 0 : index
    %c0_7 = arith.constant 0 : index
    %8 = vector.load %arg8[%c0_5, %c0_6, %c0_7] : memref<1x1x48xf32, #tpu.memory_space<vmem>>, vector<1x1x48xf32>
    %9 = vector.shape_cast %8 : vector<1x1x48xf32> to vector<1x48xf32>
    %10 = vector.broadcast %9 : vector<1x48xf32> to vector<16x48xf32>
    %11 = arith.addf %7, %10 : vector<16x48xf32>
    %12 = vector.extract_strided_slice %11 {offsets = [0, 0], sizes = [16, 16], strides = [1, 1]} : vector<16x48xf32> to vector<16x16xf32>
    %13 = vector.extract_strided_slice %11 {offsets = [0, 16], sizes = [16, 16], strides = [1, 1]} : vector<16x48xf32> to vector<16x16xf32>
    %14 = vector.extract_strided_slice %11 {offsets = [0, 32], sizes = [16, 16], strides = [1, 1]} : vector<16x48xf32> to vector<16x16xf32>
    %15 = vector.extract_strided_slice %12 {offsets = [0, 0], sizes = [8, 16], strides = [1, 1]} : vector<16x16xf32> to vector<8x16xf32>
    %16 = arith.truncf %15 : vector<8x16xf32> to vector<8x16xbf16>
    %17 = vector.extract_strided_slice %16 {offsets = [0, 0], sizes = [8, 4], strides = [1, 1]} : vector<8x16xbf16> to vector<8x4xbf16>
    %18 = vector.extract_strided_slice %16 {offsets = [0, 4], sizes = [8, 4], strides = [1, 1]} : vector<8x16xbf16> to vector<8x4xbf16>
    %19 = vector.extract_strided_slice %16 {offsets = [0, 8], sizes = [8, 4], strides = [1, 1]} : vector<8x16xbf16> to vector<8x4xbf16>
    %20 = vector.extract_strided_slice %16 {offsets = [0, 12], sizes = [8, 4], strides = [1, 1]} : vector<8x16xbf16> to vector<8x4xbf16>
    %21 = vector.shape_cast %17 : vector<8x4xbf16> to vector<1x8x4xbf16>
    %22 = vector.shape_cast %18 : vector<8x4xbf16> to vector<1x8x4xbf16>
    %23 = vector.shape_cast %19 : vector<8x4xbf16> to vector<1x8x4xbf16>
    %24 = vector.shape_cast %20 : vector<8x4xbf16> to vector<1x8x4xbf16>
    %25 = tpu.concatenate %21, %22, %23, %24 in 0 : vector<1x8x4xbf16>, vector<1x8x4xbf16>, vector<1x8x4xbf16>, vector<1x8x4xbf16> -> vector<4x8x4xbf16>
    %26 = vector.extract_strided_slice %13 {offsets = [0, 0], sizes = [8, 16], strides = [1, 1]} : vector<16x16xf32> to vector<8x16xf32>
    %27 = arith.truncf %26 : vector<8x16xf32> to vector<8x16xbf16>
    %28 = vector.extract_strided_slice %27 {offsets = [0, 0], sizes = [8, 4], strides = [1, 1]} : vector<8x16xbf16> to vector<8x4xbf16>
    %29 = vector.extract_strided_slice %27 {offsets = [0, 4], sizes = [8, 4], strides = [1, 1]} : vector<8x16xbf16> to vector<8x4xbf16>
    %30 = vector.extract_strided_slice %27 {offsets = [0, 8], sizes = [8, 4], strides = [1, 1]} : vector<8x16xbf16> to vector<8x4xbf16>
    %31 = vector.extract_strided_slice %27 {offsets = [0, 12], sizes = [8, 4], strides = [1, 1]} : vector<8x16xbf16> to vector<8x4xbf16>
    %32 = vector.shape_cast %28 : vector<8x4xbf16> to vector<1x8x4xbf16>
    %33 = vector.shape_cast %29 : vector<8x4xbf16> to vector<1x8x4xbf16>
    %34 = vector.shape_cast %30 : vector<8x4xbf16> to vector<1x8x4xbf16>
    %35 = vector.shape_cast %31 : vector<8x4xbf16> to vector<1x8x4xbf16>
    %36 = tpu.concatenate %32, %33, %34, %35 in 0 : vector<1x8x4xbf16>, vector<1x8x4xbf16>, vector<1x8x4xbf16>, vector<1x8x4xbf16> -> vector<4x8x4xbf16>
    %37 = vector.extract_strided_slice %14 {offsets = [0, 0], sizes = [8, 16], strides = [1, 1]} : vector<16x16xf32> to vector<8x16xf32>
    %38 = arith.truncf %37 : vector<8x16xf32> to vector<8x16xbf16>
    %39 = vector.extract_strided_slice %38 {offsets = [0, 0], sizes = [8, 4], strides = [1, 1]} : vector<8x16xbf16> to vector<8x4xbf16>
    %40 = vector.extract_strided_slice %38 {offsets = [0, 4], sizes = [8, 4], strides = [1, 1]} : vector<8x16xbf16> to vector<8x4xbf16>
    %41 = vector.extract_strided_slice %38 {offsets = [0, 8], sizes = [8, 4], strides = [1, 1]} : vector<8x16xbf16> to vector<8x4xbf16>
    %42 = vector.extract_strided_slice %38 {offsets = [0, 12], sizes = [8, 4], strides = [1, 1]} : vector<8x16xbf16> to vector<8x4xbf16>
    %43 = vector.shape_cast %39 : vector<8x4xbf16> to vector<1x8x4xbf16>
    %44 = vector.shape_cast %40 : vector<8x4xbf16> to vector<1x8x4xbf16>
    %45 = vector.shape_cast %41 : vector<8x4xbf16> to vector<1x8x4xbf16>
    %46 = vector.shape_cast %42 : vector<8x4xbf16> to vector<1x8x4xbf16>
    %47 = tpu.concatenate %43, %44, %45, %46 in 0 : vector<1x8x4xbf16>, vector<1x8x4xbf16>, vector<1x8x4xbf16>, vector<1x8x4xbf16> -> vector<4x8x4xbf16>
    %cst_8 = arith.constant dense<0.000000e+00> : vector<4x8x8xf32>
    %48 = tpu.matmul %25, %36, %cst_8 {dimension_numbers = #tpu.dot_dimension_numbers<[2], [2], [1], [1], [0, 0, 0, 1, 1, 1], [0], [0]>} : vector<4x8x4xbf16>, vector<4x8x4xbf16>, vector<4x8x8xf32> -> vector<4x8x8xf32>
    %cst_9 = arith.constant 5.000000e-01 : f32
    %49 = vector.broadcast %cst_9 : f32 to vector<4x8x8xf32>
    %50 = arith.mulf %48, %49 : vector<4x8x8xf32>
    %cst_10 = arith.constant dense<0xFF800000> : vector<4x8xf32>
    %51 = vector.multi_reduction <maximumf>, %50, %cst_10 [2] : vector<4x8x8xf32> to vector<4x8xf32>
    %52 = vector.shape_cast %51 : vector<4x8xf32> to vector<4x8x1xf32>
    %53 = vector.broadcast %52 : vector<4x8x1xf32> to vector<4x8x8xf32>
    %54 = arith.subf %50, %53 : vector<4x8x8xf32>
    %55 = math.exp %54 : vector<4x8x8xf32>
    %cst_11 = arith.constant dense<0.000000e+00> : vector<4x8xf32>
    %56 = vector.multi_reduction <add>, %55, %cst_11 [2] : vector<4x8x8xf32> to vector<4x8xf32>
    %57 = vector.shape_cast %56 : vector<4x8xf32> to vector<4x8x1xf32>
    %58 = tpu.reciprocal %57 {approx = true} : vector<4x8x1xf32> -> vector<4x8x1xf32>
    %59 = vector.broadcast %58 : vector<4x8x1xf32> to vector<4x8x8xf32>
    %60 = arith.mulf %55, %59 : vector<4x8x8xf32>
    %61 = arith.truncf %60 : vector<4x8x8xf32> to vector<4x8x8xbf16>
    %cst_12 = arith.constant dense<0.000000e+00> : vector<4x8x4xf32>
    %62 = tpu.matmul %61, %47, %cst_12 {dimension_numbers = #tpu.dot_dimension_numbers<[2], [1], [1], [2], [0, 0, 0, 1, 1, 2], [0], [0]>} : vector<4x8x8xbf16>, vector<4x8x4xbf16>, vector<4x8x4xf32> -> vector<4x8x4xf32>
    %63 = vector.extract_strided_slice %62 {offsets = [0, 0, 0], sizes = [1, 8, 4], strides = [1, 1, 1]} : vector<4x8x4xf32> to vector<1x8x4xf32>
    %64 = vector.shape_cast %63 : vector<1x8x4xf32> to vector<8x4xf32>
    %65 = vector.extract_strided_slice %62 {offsets = [1, 0, 0], sizes = [1, 8, 4], strides = [1, 1, 1]} : vector<4x8x4xf32> to vector<1x8x4xf32>
    %66 = vector.shape_cast %65 : vector<1x8x4xf32> to vector<8x4xf32>
    %67 = vector.extract_strided_slice %62 {offsets = [2, 0, 0], sizes = [1, 8, 4], strides = [1, 1, 1]} : vector<4x8x4xf32> to vector<1x8x4xf32>
    %68 = vector.shape_cast %67 : vector<1x8x4xf32> to vector<8x4xf32>
    %69 = vector.extract_strided_slice %62 {offsets = [3, 0, 0], sizes = [1, 8, 4], strides = [1, 1, 1]} : vector<4x8x4xf32> to vector<1x8x4xf32>
    %70 = vector.shape_cast %69 : vector<1x8x4xf32> to vector<8x4xf32>
    %71 = tpu.concatenate %64, %66, %68, %70 in 1 : vector<8x4xf32>, vector<8x4xf32>, vector<8x4xf32>, vector<8x4xf32> -> vector<8x16xf32>
    %72 = arith.truncf %71 : vector<8x16xf32> to vector<8x16xbf16>
    %73 = vector.extract_strided_slice %12 {offsets = [8, 0], sizes = [8, 16], strides = [1, 1]} : vector<16x16xf32> to vector<8x16xf32>
    %74 = arith.truncf %73 : vector<8x16xf32> to vector<8x16xbf16>
    %75 = vector.extract_strided_slice %74 {offsets = [0, 0], sizes = [8, 4], strides = [1, 1]} : vector<8x16xbf16> to vector<8x4xbf16>
    %76 = vector.extract_strided_slice %74 {offsets = [0, 4], sizes = [8, 4], strides = [1, 1]} : vector<8x16xbf16> to vector<8x4xbf16>
    %77 = vector.extract_strided_slice %74 {offsets = [0, 8], sizes = [8, 4], strides = [1, 1]} : vector<8x16xbf16> to vector<8x4xbf16>
    %78 = vector.extract_strided_slice %74 {offsets = [0, 12], sizes = [8, 4], strides = [1, 1]} : vector<8x16xbf16> to vector<8x4xbf16>
    %79 = vector.shape_cast %75 : vector<8x4xbf16> to vector<1x8x4xbf16>
    %80 = vector.shape_cast %76 : vector<8x4xbf16> to vector<1x8x4xbf16>
    %81 = vector.shape_cast %77 : vector<8x4xbf16> to vector<1x8x4xbf16>
    %82 = vector.shape_cast %78 : vector<8x4xbf16> to vector<1x8x4xbf16>
    %83 = tpu.concatenate %79, %80, %81, %82 in 0 : vector<1x8x4xbf16>, vector<1x8x4xbf16>, vector<1x8x4xbf16>, vector<1x8x4xbf16> -> vector<4x8x4xbf16>
    %84 = vector.extract_strided_slice %13 {offsets = [8, 0], sizes = [8, 16], strides = [1, 1]} : vector<16x16xf32> to vector<8x16xf32>
    %85 = arith.truncf %84 : vector<8x16xf32> to vector<8x16xbf16>
    %86 = vector.extract_strided_slice %85 {offsets = [0, 0], sizes = [8, 4], strides = [1, 1]} : vector<8x16xbf16> to vector<8x4xbf16>
    %87 = vector.extract_strided_slice %85 {offsets = [0, 4], sizes = [8, 4], strides = [1, 1]} : vector<8x16xbf16> to vector<8x4xbf16>
    %88 = vector.extract_strided_slice %85 {offsets = [0, 8], sizes = [8, 4], strides = [1, 1]} : vector<8x16xbf16> to vector<8x4xbf16>
    %89 = vector.extract_strided_slice %85 {offsets = [0, 12], sizes = [8, 4], strides = [1, 1]} : vector<8x16xbf16> to vector<8x4xbf16>
    %90 = vector.shape_cast %86 : vector<8x4xbf16> to vector<1x8x4xbf16>
    %91 = vector.shape_cast %87 : vector<8x4xbf16> to vector<1x8x4xbf16>
    %92 = vector.shape_cast %88 : vector<8x4xbf16> to vector<1x8x4xbf16>
    %93 = vector.shape_cast %89 : vector<8x4xbf16> to vector<1x8x4xbf16>
    %94 = tpu.concatenate %90, %91, %92, %93 in 0 : vector<1x8x4xbf16>, vector<1x8x4xbf16>, vector<1x8x4xbf16>, vector<1x8x4xbf16> -> vector<4x8x4xbf16>
    %95 = vector.extract_strided_slice %14 {offsets = [8, 0], sizes = [8, 16], strides = [1, 1]} : vector<16x16xf32> to vector<8x16xf32>
    %96 = arith.truncf %95 : vector<8x16xf32> to vector<8x16xbf16>
    %97 = vector.extract_strided_slice %96 {offsets = [0, 0], sizes = [8, 4], strides = [1, 1]} : vector<8x16xbf16> to vector<8x4xbf16>
    %98 = vector.extract_strided_slice %96 {offsets = [0, 4], sizes = [8, 4], strides = [1, 1]} : vector<8x16xbf16> to vector<8x4xbf16>
    %99 = vector.extract_strided_slice %96 {offsets = [0, 8], sizes = [8, 4], strides = [1, 1]} : vector<8x16xbf16> to vector<8x4xbf16>
    %100 = vector.extract_strided_slice %96 {offsets = [0, 12], sizes = [8, 4], strides = [1, 1]} : vector<8x16xbf16> to vector<8x4xbf16>
    %101 = vector.shape_cast %97 : vector<8x4xbf16> to vector<1x8x4xbf16>
    %102 = vector.shape_cast %98 : vector<8x4xbf16> to vector<1x8x4xbf16>
    %103 = vector.shape_cast %99 : vector<8x4xbf16> to vector<1x8x4xbf16>
    %104 = vector.shape_cast %100 : vector<8x4xbf16> to vector<1x8x4xbf16>
    %105 = tpu.concatenate %101, %102, %103, %104 in 0 : vector<1x8x4xbf16>, vector<1x8x4xbf16>, vector<1x8x4xbf16>, vector<1x8x4xbf16> -> vector<4x8x4xbf16>
    %cst_13 = arith.constant dense<0.000000e+00> : vector<4x8x8xf32>
    %106 = tpu.matmul %83, %94, %cst_13 {dimension_numbers = #tpu.dot_dimension_numbers<[2], [2], [1], [1], [0, 0, 0, 1, 1, 1], [0], [0]>} : vector<4x8x4xbf16>, vector<4x8x4xbf16>, vector<4x8x8xf32> -> vector<4x8x8xf32>
    %cst_14 = arith.constant 5.000000e-01 : f32
    %107 = vector.broadcast %cst_14 : f32 to vector<4x8x8xf32>
    %108 = arith.mulf %106, %107 : vector<4x8x8xf32>
    %cst_15 = arith.constant dense<0xFF800000> : vector<4x8xf32>
    %109 = vector.multi_reduction <maximumf>, %108, %cst_15 [2] : vector<4x8x8xf32> to vector<4x8xf32>
    %110 = vector.shape_cast %109 : vector<4x8xf32> to vector<4x8x1xf32>
    %111 = vector.broadcast %110 : vector<4x8x1xf32> to vector<4x8x8xf32>
    %112 = arith.subf %108, %111 : vector<4x8x8xf32>
    %113 = math.exp %112 : vector<4x8x8xf32>
    %cst_16 = arith.constant dense<0.000000e+00> : vector<4x8xf32>
    %114 = vector.multi_reduction <add>, %113, %cst_16 [2] : vector<4x8x8xf32> to vector<4x8xf32>
    %115 = vector.shape_cast %114 : vector<4x8xf32> to vector<4x8x1xf32>
    %116 = tpu.reciprocal %115 {approx = true} : vector<4x8x1xf32> -> vector<4x8x1xf32>
    %117 = vector.broadcast %116 : vector<4x8x1xf32> to vector<4x8x8xf32>
    %118 = arith.mulf %113, %117 : vector<4x8x8xf32>
    %119 = arith.truncf %118 : vector<4x8x8xf32> to vector<4x8x8xbf16>
    %cst_17 = arith.constant dense<0.000000e+00> : vector<4x8x4xf32>
    %120 = tpu.matmul %119, %105, %cst_17 {dimension_numbers = #tpu.dot_dimension_numbers<[2], [1], [1], [2], [0, 0, 0, 1, 1, 2], [0], [0]>} : vector<4x8x8xbf16>, vector<4x8x4xbf16>, vector<4x8x4xf32> -> vector<4x8x4xf32>
    %121 = vector.extract_strided_slice %120 {offsets = [0, 0, 0], sizes = [1, 8, 4], strides = [1, 1, 1]} : vector<4x8x4xf32> to vector<1x8x4xf32>
    %122 = vector.shape_cast %121 : vector<1x8x4xf32> to vector<8x4xf32>
    %123 = vector.extract_strided_slice %120 {offsets = [1, 0, 0], sizes = [1, 8, 4], strides = [1, 1, 1]} : vector<4x8x4xf32> to vector<1x8x4xf32>
    %124 = vector.shape_cast %123 : vector<1x8x4xf32> to vector<8x4xf32>
    %125 = vector.extract_strided_slice %120 {offsets = [2, 0, 0], sizes = [1, 8, 4], strides = [1, 1, 1]} : vector<4x8x4xf32> to vector<1x8x4xf32>
    %126 = vector.shape_cast %125 : vector<1x8x4xf32> to vector<8x4xf32>
    %127 = vector.extract_strided_slice %120 {offsets = [3, 0, 0], sizes = [1, 8, 4], strides = [1, 1, 1]} : vector<4x8x4xf32> to vector<1x8x4xf32>
    %128 = vector.shape_cast %127 : vector<1x8x4xf32> to vector<8x4xf32>
    %129 = tpu.concatenate %122, %124, %126, %128 in 1 : vector<8x4xf32>, vector<8x4xf32>, vector<8x4xf32>, vector<8x4xf32> -> vector<8x16xf32>
    %130 = arith.truncf %129 : vector<8x16xf32> to vector<8x16xbf16>
    %131 = tpu.concatenate %72, %130 in 0 : vector<8x16xbf16>, vector<8x16xbf16> -> vector<16x16xbf16>
    %c0_18 = arith.constant 0 : index
    %c0_19 = arith.constant 0 : index
    %c0_20 = arith.constant 0 : index
    %132 = vector.load %arg9[%c0_18, %c0_19, %c0_20] : memref<1x16x16xbf16, #tpu.memory_space<vmem>>, vector<1x16x16xbf16>
    %133 = vector.shape_cast %132 : vector<1x16x16xbf16> to vector<16x16xbf16>
    %cst_21 = arith.constant dense<0.000000e+00> : vector<16x16xf32>
    %134 = tpu.matmul %131, %133, %cst_21 {dimension_numbers = #tpu.dot_dimension_numbers<[1], [0], [0], [1], [0, 0, 1, 1], [], []>} : vector<16x16xbf16>, vector<16x16xbf16>, vector<16x16xf32> -> vector<16x16xf32>
    %c0_22 = arith.constant 0 : index
    %c0_23 = arith.constant 0 : index
    %c0_24 = arith.constant 0 : index
    %135 = vector.load %arg10[%c0_22, %c0_23, %c0_24] : memref<1x1x16xf32, #tpu.memory_space<vmem>>, vector<1x1x16xf32>
    %136 = vector.shape_cast %135 : vector<1x1x16xf32> to vector<1x16xf32>
    %137 = vector.broadcast %136 : vector<1x16xf32> to vector<16x16xf32>
    %138 = arith.addf %134, %137 : vector<16x16xf32>
    %139 = arith.addf %3, %138 : vector<16x16xf32>
    %c0_25 = arith.constant 0 : index
    %c0_26 = arith.constant 0 : index
    %c0_27 = arith.constant 0 : index
    %140 = vector.load %arg21[%c0_25, %c0_26, %c0_27] : memref<1x1x16xf32, #tpu.memory_space<vmem>>, vector<1x1x16xf32>
    %141 = vector.shape_cast %140 : vector<1x1x16xf32> to vector<1x16xf32>
    %c0_28 = arith.constant 0 : index
    %c0_29 = arith.constant 0 : index
    %c0_30 = arith.constant 0 : index
    %142 = vector.load %arg22[%c0_28, %c0_29, %c0_30] : memref<1x1x16xf32, #tpu.memory_space<vmem>>, vector<1x1x16xf32>
    %143 = vector.shape_cast %142 : vector<1x1x16xf32> to vector<1x16xf32>
    %cst_31 = arith.constant dense<0.000000e+00> : vector<16xf32>
    %144 = vector.multi_reduction <add>, %139, %cst_31 [1] : vector<16x16xf32> to vector<16xf32>
    %145 = vector.shape_cast %144 : vector<16xf32> to vector<16x1xf32>
    %cst_32 = arith.constant 1.600000e+01 : f32
    %146 = vector.broadcast %cst_32 : f32 to vector<16x1xf32>
    %147 = arith.divf %145, %146 : vector<16x1xf32>
    %148 = vector.broadcast %147 : vector<16x1xf32> to vector<16x16xf32>
    %149 = arith.subf %139, %148 : vector<16x16xf32>
    %150 = arith.mulf %149, %149 : vector<16x16xf32>
    %cst_33 = arith.constant dense<0.000000e+00> : vector<16xf32>
    %151 = vector.multi_reduction <add>, %150, %cst_33 [1] : vector<16x16xf32> to vector<16xf32>
    %152 = vector.shape_cast %151 : vector<16xf32> to vector<16x1xf32>
    %cst_34 = arith.constant 1.600000e+01 : f32
    %153 = vector.broadcast %cst_34 : f32 to vector<16x1xf32>
    %154 = arith.divf %152, %153 : vector<16x1xf32>
    %cst_35 = arith.constant 9.99999974E-6 : f32
    %155 = vector.broadcast %cst_35 : f32 to vector<16x1xf32>
    %156 = arith.addf %154, %155 : vector<16x1xf32>
    %157 = math.rsqrt %156 : vector<16x1xf32>
    %158 = vector.broadcast %157 : vector<16x1xf32> to vector<16x16xf32>
    %159 = arith.mulf %149, %158 : vector<16x16xf32>
    %160 = vector.broadcast %141 : vector<1x16xf32> to vector<16x16xf32>
    %161 = arith.mulf %159, %160 : vector<16x16xf32>
    %162 = vector.broadcast %143 : vector<1x16xf32> to vector<16x16xf32>
    %163 = arith.addf %161, %162 : vector<16x16xf32>
    %164 = arith.truncf %163 : vector<16x16xf32> to vector<16x16xbf16>
    %c0_36 = arith.constant 0 : index
    %c0_37 = arith.constant 0 : index
    %c0_38 = arith.constant 0 : index
    %165 = vector.load %arg11[%c0_36, %c0_37, %c0_38] : memref<1x16x16xbf16, #tpu.memory_space<vmem>>, vector<1x16x16xbf16>
    %166 = vector.shape_cast %165 : vector<1x16x16xbf16> to vector<16x16xbf16>
    %cst_39 = arith.constant dense<0.000000e+00> : vector<16x16xf32>
    %167 = tpu.matmul %164, %166, %cst_39 {dimension_numbers = #tpu.dot_dimension_numbers<[1], [0], [0], [1], [0, 0, 1, 1], [], []>} : vector<16x16xbf16>, vector<16x16xbf16>, vector<16x16xf32> -> vector<16x16xf32>
    %c0_40 = arith.constant 0 : index
    %c0_41 = arith.constant 0 : index
    %c0_42 = arith.constant 0 : index
    %168 = vector.load %arg12[%c0_40, %c0_41, %c0_42] : memref<1x1x16xf32, #tpu.memory_space<vmem>>, vector<1x1x16xf32>
    %169 = vector.shape_cast %168 : vector<1x1x16xf32> to vector<1x16xf32>
    %170 = vector.broadcast %169 : vector<1x16xf32> to vector<16x16xf32>
    %171 = arith.addf %167, %170 : vector<16x16xf32>
    %c0_43 = arith.constant 0 : index
    %c0_44 = arith.constant 0 : index
    %172 = vector.load %arg3[%c0_43, %c0_44] : memref<16x16xf32, #tpu.memory_space<vmem>>, vector<16x16xf32>
    %173 = arith.truncf %172 : vector<16x16xf32> to vector<16x16xbf16>
    %c0_45 = arith.constant 0 : index
    %c0_46 = arith.constant 0 : index
    %c0_47 = arith.constant 0 : index
    %174 = vector.load %arg13[%c0_45, %c0_46, %c0_47] : memref<1x16x32xbf16, #tpu.memory_space<vmem>>, vector<1x16x32xbf16>
    %175 = vector.shape_cast %174 : vector<1x16x32xbf16> to vector<16x32xbf16>
    %cst_48 = arith.constant dense<0.000000e+00> : vector<16x32xf32>
    %176 = tpu.matmul %173, %175, %cst_48 {dimension_numbers = #tpu.dot_dimension_numbers<[1], [0], [0], [1], [0, 0, 1, 1], [], []>} : vector<16x16xbf16>, vector<16x32xbf16>, vector<16x32xf32> -> vector<16x32xf32>
    %c0_49 = arith.constant 0 : index
    %c0_50 = arith.constant 0 : index
    %c0_51 = arith.constant 0 : index
    %177 = vector.load %arg14[%c0_49, %c0_50, %c0_51] : memref<1x1x32xf32, #tpu.memory_space<vmem>>, vector<1x1x32xf32>
    %178 = vector.shape_cast %177 : vector<1x1x32xf32> to vector<1x32xf32>
    %179 = vector.broadcast %178 : vector<1x32xf32> to vector<16x32xf32>
    %180 = arith.addf %176, %179 : vector<16x32xf32>
    %181 = vector.extract_strided_slice %180 {offsets = [0, 0], sizes = [16, 16], strides = [1, 1]} : vector<16x32xf32> to vector<16x16xf32>
    %182 = vector.extract_strided_slice %180 {offsets = [0, 16], sizes = [16, 16], strides = [1, 1]} : vector<16x32xf32> to vector<16x16xf32>
    %183 = vector.extract_strided_slice %171 {offsets = [0, 0], sizes = [8, 16], strides = [1, 1]} : vector<16x16xf32> to vector<8x16xf32>
    %184 = arith.truncf %183 : vector<8x16xf32> to vector<8x16xbf16>
    %185 = vector.extract_strided_slice %184 {offsets = [0, 0], sizes = [8, 4], strides = [1, 1]} : vector<8x16xbf16> to vector<8x4xbf16>
    %186 = vector.extract_strided_slice %184 {offsets = [0, 4], sizes = [8, 4], strides = [1, 1]} : vector<8x16xbf16> to vector<8x4xbf16>
    %187 = vector.extract_strided_slice %184 {offsets = [0, 8], sizes = [8, 4], strides = [1, 1]} : vector<8x16xbf16> to vector<8x4xbf16>
    %188 = vector.extract_strided_slice %184 {offsets = [0, 12], sizes = [8, 4], strides = [1, 1]} : vector<8x16xbf16> to vector<8x4xbf16>
    %189 = vector.shape_cast %185 : vector<8x4xbf16> to vector<1x8x4xbf16>
    %190 = vector.shape_cast %186 : vector<8x4xbf16> to vector<1x8x4xbf16>
    %191 = vector.shape_cast %187 : vector<8x4xbf16> to vector<1x8x4xbf16>
    %192 = vector.shape_cast %188 : vector<8x4xbf16> to vector<1x8x4xbf16>
    %193 = tpu.concatenate %189, %190, %191, %192 in 0 : vector<1x8x4xbf16>, vector<1x8x4xbf16>, vector<1x8x4xbf16>, vector<1x8x4xbf16> -> vector<4x8x4xbf16>
    %194 = vector.extract_strided_slice %181 {offsets = [0, 0], sizes = [8, 16], strides = [1, 1]} : vector<16x16xf32> to vector<8x16xf32>
    %195 = arith.truncf %194 : vector<8x16xf32> to vector<8x16xbf16>
    %196 = vector.extract_strided_slice %195 {offsets = [0, 0], sizes = [8, 4], strides = [1, 1]} : vector<8x16xbf16> to vector<8x4xbf16>
    %197 = vector.extract_strided_slice %195 {offsets = [0, 4], sizes = [8, 4], strides = [1, 1]} : vector<8x16xbf16> to vector<8x4xbf16>
    %198 = vector.extract_strided_slice %195 {offsets = [0, 8], sizes = [8, 4], strides = [1, 1]} : vector<8x16xbf16> to vector<8x4xbf16>
    %199 = vector.extract_strided_slice %195 {offsets = [0, 12], sizes = [8, 4], strides = [1, 1]} : vector<8x16xbf16> to vector<8x4xbf16>
    %200 = vector.shape_cast %196 : vector<8x4xbf16> to vector<1x8x4xbf16>
    %201 = vector.shape_cast %197 : vector<8x4xbf16> to vector<1x8x4xbf16>
    %202 = vector.shape_cast %198 : vector<8x4xbf16> to vector<1x8x4xbf16>
    %203 = vector.shape_cast %199 : vector<8x4xbf16> to vector<1x8x4xbf16>
    %204 = tpu.concatenate %200, %201, %202, %203 in 0 : vector<1x8x4xbf16>, vector<1x8x4xbf16>, vector<1x8x4xbf16>, vector<1x8x4xbf16> -> vector<4x8x4xbf16>
    %205 = vector.extract_strided_slice %182 {offsets = [0, 0], sizes = [8, 16], strides = [1, 1]} : vector<16x16xf32> to vector<8x16xf32>
    %206 = arith.truncf %205 : vector<8x16xf32> to vector<8x16xbf16>
    %207 = vector.extract_strided_slice %206 {offsets = [0, 0], sizes = [8, 4], strides = [1, 1]} : vector<8x16xbf16> to vector<8x4xbf16>
    %208 = vector.extract_strided_slice %206 {offsets = [0, 4], sizes = [8, 4], strides = [1, 1]} : vector<8x16xbf16> to vector<8x4xbf16>
    %209 = vector.extract_strided_slice %206 {offsets = [0, 8], sizes = [8, 4], strides = [1, 1]} : vector<8x16xbf16> to vector<8x4xbf16>
    %210 = vector.extract_strided_slice %206 {offsets = [0, 12], sizes = [8, 4], strides = [1, 1]} : vector<8x16xbf16> to vector<8x4xbf16>
    %211 = vector.shape_cast %207 : vector<8x4xbf16> to vector<1x8x4xbf16>
    %212 = vector.shape_cast %208 : vector<8x4xbf16> to vector<1x8x4xbf16>
    %213 = vector.shape_cast %209 : vector<8x4xbf16> to vector<1x8x4xbf16>
    %214 = vector.shape_cast %210 : vector<8x4xbf16> to vector<1x8x4xbf16>
    %215 = tpu.concatenate %211, %212, %213, %214 in 0 : vector<1x8x4xbf16>, vector<1x8x4xbf16>, vector<1x8x4xbf16>, vector<1x8x4xbf16> -> vector<4x8x4xbf16>
    %cst_52 = arith.constant dense<0.000000e+00> : vector<4x8x8xf32>
    %216 = tpu.matmul %193, %204, %cst_52 {dimension_numbers = #tpu.dot_dimension_numbers<[2], [2], [1], [1], [0, 0, 0, 1, 1, 1], [0], [0]>} : vector<4x8x4xbf16>, vector<4x8x4xbf16>, vector<4x8x8xf32> -> vector<4x8x8xf32>
    %cst_53 = arith.constant 5.000000e-01 : f32
    %217 = vector.broadcast %cst_53 : f32 to vector<4x8x8xf32>
    %218 = arith.mulf %216, %217 : vector<4x8x8xf32>
    %cst_54 = arith.constant dense<0xFF800000> : vector<4x8xf32>
    %219 = vector.multi_reduction <maximumf>, %218, %cst_54 [2] : vector<4x8x8xf32> to vector<4x8xf32>
    %220 = vector.shape_cast %219 : vector<4x8xf32> to vector<4x8x1xf32>
    %221 = vector.broadcast %220 : vector<4x8x1xf32> to vector<4x8x8xf32>
    %222 = arith.subf %218, %221 : vector<4x8x8xf32>
    %223 = math.exp %222 : vector<4x8x8xf32>
    %cst_55 = arith.constant dense<0.000000e+00> : vector<4x8xf32>
    %224 = vector.multi_reduction <add>, %223, %cst_55 [2] : vector<4x8x8xf32> to vector<4x8xf32>
    %225 = vector.shape_cast %224 : vector<4x8xf32> to vector<4x8x1xf32>
    %226 = tpu.reciprocal %225 {approx = true} : vector<4x8x1xf32> -> vector<4x8x1xf32>
    %227 = vector.broadcast %226 : vector<4x8x1xf32> to vector<4x8x8xf32>
    %228 = arith.mulf %223, %227 : vector<4x8x8xf32>
    %229 = arith.truncf %228 : vector<4x8x8xf32> to vector<4x8x8xbf16>
    %cst_56 = arith.constant dense<0.000000e+00> : vector<4x8x4xf32>
    %230 = tpu.matmul %229, %215, %cst_56 {dimension_numbers = #tpu.dot_dimension_numbers<[2], [1], [1], [2], [0, 0, 0, 1, 1, 2], [0], [0]>} : vector<4x8x8xbf16>, vector<4x8x4xbf16>, vector<4x8x4xf32> -> vector<4x8x4xf32>
    %231 = vector.extract_strided_slice %230 {offsets = [0, 0, 0], sizes = [1, 8, 4], strides = [1, 1, 1]} : vector<4x8x4xf32> to vector<1x8x4xf32>
    %232 = vector.shape_cast %231 : vector<1x8x4xf32> to vector<8x4xf32>
    %233 = vector.extract_strided_slice %230 {offsets = [1, 0, 0], sizes = [1, 8, 4], strides = [1, 1, 1]} : vector<4x8x4xf32> to vector<1x8x4xf32>
    %234 = vector.shape_cast %233 : vector<1x8x4xf32> to vector<8x4xf32>
    %235 = vector.extract_strided_slice %230 {offsets = [2, 0, 0], sizes = [1, 8, 4], strides = [1, 1, 1]} : vector<4x8x4xf32> to vector<1x8x4xf32>
    %236 = vector.shape_cast %235 : vector<1x8x4xf32> to vector<8x4xf32>
    %237 = vector.extract_strided_slice %230 {offsets = [3, 0, 0], sizes = [1, 8, 4], strides = [1, 1, 1]} : vector<4x8x4xf32> to vector<1x8x4xf32>
    %238 = vector.shape_cast %237 : vector<1x8x4xf32> to vector<8x4xf32>
    %239 = tpu.concatenate %232, %234, %236, %238 in 1 : vector<8x4xf32>, vector<8x4xf32>, vector<8x4xf32>, vector<8x4xf32> -> vector<8x16xf32>
    %240 = arith.truncf %239 : vector<8x16xf32> to vector<8x16xbf16>
    %241 = vector.extract_strided_slice %171 {offsets = [8, 0], sizes = [8, 16], strides = [1, 1]} : vector<16x16xf32> to vector<8x16xf32>
    %242 = arith.truncf %241 : vector<8x16xf32> to vector<8x16xbf16>
    %243 = vector.extract_strided_slice %242 {offsets = [0, 0], sizes = [8, 4], strides = [1, 1]} : vector<8x16xbf16> to vector<8x4xbf16>
    %244 = vector.extract_strided_slice %242 {offsets = [0, 4], sizes = [8, 4], strides = [1, 1]} : vector<8x16xbf16> to vector<8x4xbf16>
    %245 = vector.extract_strided_slice %242 {offsets = [0, 8], sizes = [8, 4], strides = [1, 1]} : vector<8x16xbf16> to vector<8x4xbf16>
    %246 = vector.extract_strided_slice %242 {offsets = [0, 12], sizes = [8, 4], strides = [1, 1]} : vector<8x16xbf16> to vector<8x4xbf16>
    %247 = vector.shape_cast %243 : vector<8x4xbf16> to vector<1x8x4xbf16>
    %248 = vector.shape_cast %244 : vector<8x4xbf16> to vector<1x8x4xbf16>
    %249 = vector.shape_cast %245 : vector<8x4xbf16> to vector<1x8x4xbf16>
    %250 = vector.shape_cast %246 : vector<8x4xbf16> to vector<1x8x4xbf16>
    %251 = tpu.concatenate %247, %248, %249, %250 in 0 : vector<1x8x4xbf16>, vector<1x8x4xbf16>, vector<1x8x4xbf16>, vector<1x8x4xbf16> -> vector<4x8x4xbf16>
    %252 = vector.extract_strided_slice %181 {offsets = [8, 0], sizes = [8, 16], strides = [1, 1]} : vector<16x16xf32> to vector<8x16xf32>
    %253 = arith.truncf %252 : vector<8x16xf32> to vector<8x16xbf16>
    %254 = vector.extract_strided_slice %253 {offsets = [0, 0], sizes = [8, 4], strides = [1, 1]} : vector<8x16xbf16> to vector<8x4xbf16>
    %255 = vector.extract_strided_slice %253 {offsets = [0, 4], sizes = [8, 4], strides = [1, 1]} : vector<8x16xbf16> to vector<8x4xbf16>
    %256 = vector.extract_strided_slice %253 {offsets = [0, 8], sizes = [8, 4], strides = [1, 1]} : vector<8x16xbf16> to vector<8x4xbf16>
    %257 = vector.extract_strided_slice %253 {offsets = [0, 12], sizes = [8, 4], strides = [1, 1]} : vector<8x16xbf16> to vector<8x4xbf16>
    %258 = vector.shape_cast %254 : vector<8x4xbf16> to vector<1x8x4xbf16>
    %259 = vector.shape_cast %255 : vector<8x4xbf16> to vector<1x8x4xbf16>
    %260 = vector.shape_cast %256 : vector<8x4xbf16> to vector<1x8x4xbf16>
    %261 = vector.shape_cast %257 : vector<8x4xbf16> to vector<1x8x4xbf16>
    %262 = tpu.concatenate %258, %259, %260, %261 in 0 : vector<1x8x4xbf16>, vector<1x8x4xbf16>, vector<1x8x4xbf16>, vector<1x8x4xbf16> -> vector<4x8x4xbf16>
    %263 = vector.extract_strided_slice %182 {offsets = [8, 0], sizes = [8, 16], strides = [1, 1]} : vector<16x16xf32> to vector<8x16xf32>
    %264 = arith.truncf %263 : vector<8x16xf32> to vector<8x16xbf16>
    %265 = vector.extract_strided_slice %264 {offsets = [0, 0], sizes = [8, 4], strides = [1, 1]} : vector<8x16xbf16> to vector<8x4xbf16>
    %266 = vector.extract_strided_slice %264 {offsets = [0, 4], sizes = [8, 4], strides = [1, 1]} : vector<8x16xbf16> to vector<8x4xbf16>
    %267 = vector.extract_strided_slice %264 {offsets = [0, 8], sizes = [8, 4], strides = [1, 1]} : vector<8x16xbf16> to vector<8x4xbf16>
    %268 = vector.extract_strided_slice %264 {offsets = [0, 12], sizes = [8, 4], strides = [1, 1]} : vector<8x16xbf16> to vector<8x4xbf16>
    %269 = vector.shape_cast %265 : vector<8x4xbf16> to vector<1x8x4xbf16>
    %270 = vector.shape_cast %266 : vector<8x4xbf16> to vector<1x8x4xbf16>
    %271 = vector.shape_cast %267 : vector<8x4xbf16> to vector<1x8x4xbf16>
    %272 = vector.shape_cast %268 : vector<8x4xbf16> to vector<1x8x4xbf16>
    %273 = tpu.concatenate %269, %270, %271, %272 in 0 : vector<1x8x4xbf16>, vector<1x8x4xbf16>, vector<1x8x4xbf16>, vector<1x8x4xbf16> -> vector<4x8x4xbf16>
    %cst_57 = arith.constant dense<0.000000e+00> : vector<4x8x8xf32>
    %274 = tpu.matmul %251, %262, %cst_57 {dimension_numbers = #tpu.dot_dimension_numbers<[2], [2], [1], [1], [0, 0, 0, 1, 1, 1], [0], [0]>} : vector<4x8x4xbf16>, vector<4x8x4xbf16>, vector<4x8x8xf32> -> vector<4x8x8xf32>
    %cst_58 = arith.constant 5.000000e-01 : f32
    %275 = vector.broadcast %cst_58 : f32 to vector<4x8x8xf32>
    %276 = arith.mulf %274, %275 : vector<4x8x8xf32>
    %cst_59 = arith.constant dense<0xFF800000> : vector<4x8xf32>
    %277 = vector.multi_reduction <maximumf>, %276, %cst_59 [2] : vector<4x8x8xf32> to vector<4x8xf32>
    %278 = vector.shape_cast %277 : vector<4x8xf32> to vector<4x8x1xf32>
    %279 = vector.broadcast %278 : vector<4x8x1xf32> to vector<4x8x8xf32>
    %280 = arith.subf %276, %279 : vector<4x8x8xf32>
    %281 = math.exp %280 : vector<4x8x8xf32>
    %cst_60 = arith.constant dense<0.000000e+00> : vector<4x8xf32>
    %282 = vector.multi_reduction <add>, %281, %cst_60 [2] : vector<4x8x8xf32> to vector<4x8xf32>
    %283 = vector.shape_cast %282 : vector<4x8xf32> to vector<4x8x1xf32>
    %284 = tpu.reciprocal %283 {approx = true} : vector<4x8x1xf32> -> vector<4x8x1xf32>
    %285 = vector.broadcast %284 : vector<4x8x1xf32> to vector<4x8x8xf32>
    %286 = arith.mulf %281, %285 : vector<4x8x8xf32>
    %287 = arith.truncf %286 : vector<4x8x8xf32> to vector<4x8x8xbf16>
    %cst_61 = arith.constant dense<0.000000e+00> : vector<4x8x4xf32>
    %288 = tpu.matmul %287, %273, %cst_61 {dimension_numbers = #tpu.dot_dimension_numbers<[2], [1], [1], [2], [0, 0, 0, 1, 1, 2], [0], [0]>} : vector<4x8x8xbf16>, vector<4x8x4xbf16>, vector<4x8x4xf32> -> vector<4x8x4xf32>
    %289 = vector.extract_strided_slice %288 {offsets = [0, 0, 0], sizes = [1, 8, 4], strides = [1, 1, 1]} : vector<4x8x4xf32> to vector<1x8x4xf32>
    %290 = vector.shape_cast %289 : vector<1x8x4xf32> to vector<8x4xf32>
    %291 = vector.extract_strided_slice %288 {offsets = [1, 0, 0], sizes = [1, 8, 4], strides = [1, 1, 1]} : vector<4x8x4xf32> to vector<1x8x4xf32>
    %292 = vector.shape_cast %291 : vector<1x8x4xf32> to vector<8x4xf32>
    %293 = vector.extract_strided_slice %288 {offsets = [2, 0, 0], sizes = [1, 8, 4], strides = [1, 1, 1]} : vector<4x8x4xf32> to vector<1x8x4xf32>
    %294 = vector.shape_cast %293 : vector<1x8x4xf32> to vector<8x4xf32>
    %295 = vector.extract_strided_slice %288 {offsets = [3, 0, 0], sizes = [1, 8, 4], strides = [1, 1, 1]} : vector<4x8x4xf32> to vector<1x8x4xf32>
    %296 = vector.shape_cast %295 : vector<1x8x4xf32> to vector<8x4xf32>
    %297 = tpu.concatenate %290, %292, %294, %296 in 1 : vector<8x4xf32>, vector<8x4xf32>, vector<8x4xf32>, vector<8x4xf32> -> vector<8x16xf32>
    %298 = arith.truncf %297 : vector<8x16xf32> to vector<8x16xbf16>
    %299 = tpu.concatenate %240, %298 in 0 : vector<8x16xbf16>, vector<8x16xbf16> -> vector<16x16xbf16>
    %c0_62 = arith.constant 0 : index
    %c0_63 = arith.constant 0 : index
    %c0_64 = arith.constant 0 : index
    %300 = vector.load %arg15[%c0_62, %c0_63, %c0_64] : memref<1x16x16xbf16, #tpu.memory_space<vmem>>, vector<1x16x16xbf16>
    %301 = vector.shape_cast %300 : vector<1x16x16xbf16> to vector<16x16xbf16>
    %cst_65 = arith.constant dense<0.000000e+00> : vector<16x16xf32>
    %302 = tpu.matmul %299, %301, %cst_65 {dimension_numbers = #tpu.dot_dimension_numbers<[1], [0], [0], [1], [0, 0, 1, 1], [], []>} : vector<16x16xbf16>, vector<16x16xbf16>, vector<16x16xf32> -> vector<16x16xf32>
    %c0_66 = arith.constant 0 : index
    %c0_67 = arith.constant 0 : index
    %c0_68 = arith.constant 0 : index
    %303 = vector.load %arg16[%c0_66, %c0_67, %c0_68] : memref<1x1x16xf32, #tpu.memory_space<vmem>>, vector<1x1x16xf32>
    %304 = vector.shape_cast %303 : vector<1x1x16xf32> to vector<1x16xf32>
    %305 = vector.broadcast %304 : vector<1x16xf32> to vector<16x16xf32>
    %306 = arith.addf %302, %305 : vector<16x16xf32>
    %307 = arith.addf %163, %306 : vector<16x16xf32>
    %c0_69 = arith.constant 0 : index
    %c0_70 = arith.constant 0 : index
    %c0_71 = arith.constant 0 : index
    %308 = vector.load %arg23[%c0_69, %c0_70, %c0_71] : memref<1x1x16xf32, #tpu.memory_space<vmem>>, vector<1x1x16xf32>
    %309 = vector.shape_cast %308 : vector<1x1x16xf32> to vector<1x16xf32>
    %c0_72 = arith.constant 0 : index
    %c0_73 = arith.constant 0 : index
    %c0_74 = arith.constant 0 : index
    %310 = vector.load %arg24[%c0_72, %c0_73, %c0_74] : memref<1x1x16xf32, #tpu.memory_space<vmem>>, vector<1x1x16xf32>
    %311 = vector.shape_cast %310 : vector<1x1x16xf32> to vector<1x16xf32>
    %cst_75 = arith.constant dense<0.000000e+00> : vector<16xf32>
    %312 = vector.multi_reduction <add>, %307, %cst_75 [1] : vector<16x16xf32> to vector<16xf32>
    %313 = vector.shape_cast %312 : vector<16xf32> to vector<16x1xf32>
    %cst_76 = arith.constant 1.600000e+01 : f32
    %314 = vector.broadcast %cst_76 : f32 to vector<16x1xf32>
    %315 = arith.divf %313, %314 : vector<16x1xf32>
    %316 = vector.broadcast %315 : vector<16x1xf32> to vector<16x16xf32>
    %317 = arith.subf %307, %316 : vector<16x16xf32>
    %318 = arith.mulf %317, %317 : vector<16x16xf32>
    %cst_77 = arith.constant dense<0.000000e+00> : vector<16xf32>
    %319 = vector.multi_reduction <add>, %318, %cst_77 [1] : vector<16x16xf32> to vector<16xf32>
    %320 = vector.shape_cast %319 : vector<16xf32> to vector<16x1xf32>
    %cst_78 = arith.constant 1.600000e+01 : f32
    %321 = vector.broadcast %cst_78 : f32 to vector<16x1xf32>
    %322 = arith.divf %320, %321 : vector<16x1xf32>
    %cst_79 = arith.constant 9.99999974E-6 : f32
    %323 = vector.broadcast %cst_79 : f32 to vector<16x1xf32>
    %324 = arith.addf %322, %323 : vector<16x1xf32>
    %325 = math.rsqrt %324 : vector<16x1xf32>
    %326 = vector.broadcast %325 : vector<16x1xf32> to vector<16x16xf32>
    %327 = arith.mulf %317, %326 : vector<16x16xf32>
    %328 = vector.broadcast %309 : vector<1x16xf32> to vector<16x16xf32>
    %329 = arith.mulf %327, %328 : vector<16x16xf32>
    %330 = vector.broadcast %311 : vector<1x16xf32> to vector<16x16xf32>
    %331 = arith.addf %329, %330 : vector<16x16xf32>
    %332 = arith.truncf %331 : vector<16x16xf32> to vector<16x16xbf16>
    %c0_80 = arith.constant 0 : index
    %c0_81 = arith.constant 0 : index
    %c0_82 = arith.constant 0 : index
    %333 = vector.load %arg17[%c0_80, %c0_81, %c0_82] : memref<1x16x32xbf16, #tpu.memory_space<vmem>>, vector<1x16x32xbf16>
    %334 = vector.shape_cast %333 : vector<1x16x32xbf16> to vector<16x32xbf16>
    %cst_83 = arith.constant dense<0.000000e+00> : vector<16x32xf32>
    %335 = tpu.matmul %332, %334, %cst_83 {dimension_numbers = #tpu.dot_dimension_numbers<[1], [0], [0], [1], [0, 0, 1, 1], [], []>} : vector<16x16xbf16>, vector<16x32xbf16>, vector<16x32xf32> -> vector<16x32xf32>
    %c0_84 = arith.constant 0 : index
    %c0_85 = arith.constant 0 : index
    %c0_86 = arith.constant 0 : index
    %336 = vector.load %arg18[%c0_84, %c0_85, %c0_86] : memref<1x1x32xf32, #tpu.memory_space<vmem>>, vector<1x1x32xf32>
    %337 = vector.shape_cast %336 : vector<1x1x32xf32> to vector<1x32xf32>
    %338 = vector.broadcast %337 : vector<1x32xf32> to vector<16x32xf32>
    %339 = arith.addf %335, %338 : vector<16x32xf32>
    %cst_87 = arith.constant 5.000000e-01 : f32
    %340 = vector.broadcast %cst_87 : f32 to vector<16x32xf32>
    %341 = arith.mulf %340, %339 : vector<16x32xf32>
    %cst_88 = arith.constant 0.707106769 : f32
    %342 = vector.broadcast %cst_88 : f32 to vector<16x32xf32>
    %343 = arith.mulf %339, %342 : vector<16x32xf32>
    %344 = math.absf %343 : vector<16x32xf32>
    %cst_89 = arith.constant 0.327591091 : f32
    %345 = vector.broadcast %cst_89 : f32 to vector<16x32xf32>
    %346 = arith.mulf %345, %344 : vector<16x32xf32>
    %cst_90 = arith.constant 1.000000e+00 : f32
    %347 = vector.broadcast %cst_90 : f32 to vector<16x32xf32>
    %348 = arith.addf %347, %346 : vector<16x32xf32>
    %349 = tpu.reciprocal %348 {approx = true} : vector<16x32xf32> -> vector<16x32xf32>
    %cst_91 = arith.constant 1.06140542 : f32
    %350 = vector.broadcast %cst_91 : f32 to vector<16x32xf32>
    %351 = arith.mulf %350, %349 : vector<16x32xf32>
    %cst_92 = arith.constant -1.45315206 : f32
    %352 = vector.broadcast %cst_92 : f32 to vector<16x32xf32>
    %353 = arith.addf %351, %352 : vector<16x32xf32>
    %354 = arith.mulf %353, %349 : vector<16x32xf32>
    %cst_93 = arith.constant 1.42141378 : f32
    %355 = vector.broadcast %cst_93 : f32 to vector<16x32xf32>
    %356 = arith.addf %354, %355 : vector<16x32xf32>
    %357 = arith.mulf %356, %349 : vector<16x32xf32>
    %cst_94 = arith.constant -0.284496725 : f32
    %358 = vector.broadcast %cst_94 : f32 to vector<16x32xf32>
    %359 = arith.addf %357, %358 : vector<16x32xf32>
    %360 = arith.mulf %359, %349 : vector<16x32xf32>
    %cst_95 = arith.constant 0.254829586 : f32
    %361 = vector.broadcast %cst_95 : f32 to vector<16x32xf32>
    %362 = arith.addf %360, %361 : vector<16x32xf32>
    %363 = arith.mulf %362, %349 : vector<16x32xf32>
    %364 = arith.mulf %344, %344 : vector<16x32xf32>
    %cst_96 = arith.constant 0.000000e+00 : f32
    %365 = vector.broadcast %cst_96 : f32 to vector<16x32xf32>
    %366 = arith.subf %365, %364 : vector<16x32xf32>
    %367 = math.exp %366 : vector<16x32xf32>
    %368 = arith.mulf %363, %367 : vector<16x32xf32>
    %cst_97 = arith.constant 1.000000e+00 : f32
    %369 = vector.broadcast %cst_97 : f32 to vector<16x32xf32>
    %370 = arith.subf %369, %368 : vector<16x32xf32>
    %cst_98 = arith.constant 0.000000e+00 : f32
    %371 = vector.broadcast %cst_98 : f32 to vector<16x32xf32>
    %372 = arith.cmpf oge, %343, %371 : vector<16x32xf32>
    %cst_99 = arith.constant 0.000000e+00 : f32
    %373 = vector.broadcast %cst_99 : f32 to vector<16x32xf32>
    %374 = arith.subf %373, %370 : vector<16x32xf32>
    %375 = arith.select %372, %370, %374 : vector<16x32xi1>, vector<16x32xf32>
    %cst_100 = arith.constant 1.000000e+00 : f32
    %376 = vector.broadcast %cst_100 : f32 to vector<16x32xf32>
    %377 = arith.addf %376, %375 : vector<16x32xf32>
    %378 = arith.mulf %341, %377 : vector<16x32xf32>
    %379 = arith.truncf %378 : vector<16x32xf32> to vector<16x32xbf16>
    %c0_101 = arith.constant 0 : index
    %c0_102 = arith.constant 0 : index
    %c0_103 = arith.constant 0 : index
    %380 = vector.load %arg19[%c0_101, %c0_102, %c0_103] : memref<1x32x16xbf16, #tpu.memory_space<vmem>>, vector<1x32x16xbf16>
    %381 = vector.shape_cast %380 : vector<1x32x16xbf16> to vector<32x16xbf16>
    %cst_104 = arith.constant dense<0.000000e+00> : vector<16x16xf32>
    %382 = tpu.matmul %379, %381, %cst_104 {dimension_numbers = #tpu.dot_dimension_numbers<[1], [0], [0], [1], [0, 0, 1, 1], [], []>} : vector<16x32xbf16>, vector<32x16xbf16>, vector<16x16xf32> -> vector<16x16xf32>
    %c0_105 = arith.constant 0 : index
    %c0_106 = arith.constant 0 : index
    %c0_107 = arith.constant 0 : index
    %383 = vector.load %arg20[%c0_105, %c0_106, %c0_107] : memref<1x1x16xf32, #tpu.memory_space<vmem>>, vector<1x1x16xf32>
    %384 = vector.shape_cast %383 : vector<1x1x16xf32> to vector<1x16xf32>
    %385 = vector.broadcast %384 : vector<1x16xf32> to vector<16x16xf32>
    %386 = arith.addf %382, %385 : vector<16x16xf32>
    %387 = arith.addf %331, %386 : vector<16x16xf32>
    %c0_108 = arith.constant 0 : index
    %c0_109 = arith.constant 0 : index
    %c0_110 = arith.constant 0 : index
    %388 = vector.load %arg25[%c0_108, %c0_109, %c0_110] : memref<1x1x16xf32, #tpu.memory_space<vmem>>, vector<1x1x16xf32>
    %389 = vector.shape_cast %388 : vector<1x1x16xf32> to vector<1x16xf32>
    %c0_111 = arith.constant 0 : index
    %c0_112 = arith.constant 0 : index
    %c0_113 = arith.constant 0 : index
    %390 = vector.load %arg26[%c0_111, %c0_112, %c0_113] : memref<1x1x16xf32, #tpu.memory_space<vmem>>, vector<1x1x16xf32>
    %391 = vector.shape_cast %390 : vector<1x1x16xf32> to vector<1x16xf32>
    %cst_114 = arith.constant dense<0.000000e+00> : vector<16xf32>
    %392 = vector.multi_reduction <add>, %387, %cst_114 [1] : vector<16x16xf32> to vector<16xf32>
    %393 = vector.shape_cast %392 : vector<16xf32> to vector<16x1xf32>
    %cst_115 = arith.constant 1.600000e+01 : f32
    %394 = vector.broadcast %cst_115 : f32 to vector<16x1xf32>
    %395 = arith.divf %393, %394 : vector<16x1xf32>
    %396 = vector.broadcast %395 : vector<16x1xf32> to vector<16x16xf32>
    %397 = arith.subf %387, %396 : vector<16x16xf32>
    %398 = arith.mulf %397, %397 : vector<16x16xf32>
    %cst_116 = arith.constant dense<0.000000e+00> : vector<16xf32>
    %399 = vector.multi_reduction <add>, %398, %cst_116 [1] : vector<16x16xf32> to vector<16xf32>
    %400 = vector.shape_cast %399 : vector<16xf32> to vector<16x1xf32>
    %cst_117 = arith.constant 1.600000e+01 : f32
    %401 = vector.broadcast %cst_117 : f32 to vector<16x1xf32>
    %402 = arith.divf %400, %401 : vector<16x1xf32>
    %cst_118 = arith.constant 9.99999974E-6 : f32
    %403 = vector.broadcast %cst_118 : f32 to vector<16x1xf32>
    %404 = arith.addf %402, %403 : vector<16x1xf32>
    %405 = math.rsqrt %404 : vector<16x1xf32>
    %406 = vector.broadcast %405 : vector<16x1xf32> to vector<16x16xf32>
    %407 = arith.mulf %397, %406 : vector<16x16xf32>
    %408 = vector.broadcast %389 : vector<1x16xf32> to vector<16x16xf32>
    %409 = arith.mulf %407, %408 : vector<16x16xf32>
    %410 = vector.broadcast %391 : vector<1x16xf32> to vector<16x16xf32>
    %411 = arith.addf %409, %410 : vector<16x16xf32>
    %c0_119 = arith.constant 0 : index
    %c0_120 = arith.constant 0 : index
    %412 = vector.load %arg28[%c0_119, %c0_120] : memref<16x16xf32, #tpu.memory_space<vmem>>, vector<16x16xf32>
    tpu.vector_store %arg28[%c0_119, %c0_120], %411 {strides = array<i32>} : memref<16x16xf32, #tpu.memory_space<vmem>>, vector<16x16xf32>,
    %c1_i32 = arith.constant 1 : i32
    %413 = arith.cmpi eq, %arg1, %c1_i32 : i32
    %414 = arith.extui %413 : i1 to i32
    %c0_i32_121 = arith.constant 0 : i32
    %415 = arith.cmpi ne, %414, %c0_i32_121 : i32
    scf.if %415 {
      %c0_122 = arith.constant 0 : index
      %c0_123 = arith.constant 0 : index
      %416 = vector.load %arg27[%c0_122, %c0_123] : memref<16x16xf32, #tpu.memory_space<vmem>>, vector<16x16xf32>
      tpu.vector_store %arg27[%c0_122, %c0_123], %411 {strides = array<i32>} : memref<16x16xf32, #tpu.memory_space<vmem>>, vector<16x16xf32>,
    } else {
    }
    return
  }
  func.func @transform_0(%arg0: i32, %arg1: i32) -> (i32, i32) {
    %c0_i32 = arith.constant 0 : i32
    %c0_i32_0 = arith.constant 0 : i32
    return %arg0, %c0_i32 : i32, i32
  }
  func.func @transform_1(%arg0: i32, %arg1: i32) -> (i32, i32) {
    %c0_i32 = arith.constant 0 : i32
    %c0_i32_0 = arith.constant 0 : i32
    return %arg0, %c0_i32 : i32, i32
  }
  func.func @transform_2(%arg0: i32, %arg1: i32) -> (i32, i32) {
    %c0_i32 = arith.constant 0 : i32
    %c0_i32_0 = arith.constant 0 : i32
    %c0_i32_1 = arith.constant 0 : i32
    return %c0_i32, %c0_i32_0 : i32, i32
  }
  func.func @transform_3(%arg0: i32, %arg1: i32) -> (i32, i32) {
    %c0_i32 = arith.constant 0 : i32
    %c0_i32_0 = arith.constant 0 : i32
    %c0_i32_1 = arith.constant 0 : i32
    return %c0_i32, %c0_i32_0 : i32, i32
  }
  func.func @transform_4(%arg0: i32, %arg1: i32) -> (i32, i32) {
    %c0_i32 = arith.constant 0 : i32
    %c0_i32_0 = arith.constant 0 : i32
    %c0_i32_1 = arith.constant 0 : i32
    return %c0_i32, %c0_i32_0 : i32, i32
  }
  func.func @transform_5(%arg0: i32, %arg1: i32) -> (i32, i32, i32) {
    %c0_i32 = arith.constant 0 : i32
    %c0_i32_0 = arith.constant 0 : i32
    %c0_i32_1 = arith.constant 0 : i32
    return %arg1, %c0_i32, %c0_i32_0 : i32, i32, i32
  }
  func.func @transform_6(%arg0: i32, %arg1: i32) -> (i32, i32, i32) {
    %c0_i32 = arith.constant 0 : i32
    %c0_i32_0 = arith.constant 0 : i32
    %c0_i32_1 = arith.constant 0 : i32
    return %arg1, %c0_i32, %c0_i32_0 : i32, i32, i32
  }
  func.func @transform_7(%arg0: i32, %arg1: i32) -> (i32, i32, i32) {
    %c0_i32 = arith.constant 0 : i32
    %c0_i32_0 = arith.constant 0 : i32
    %c0_i32_1 = arith.constant 0 : i32
    return %arg1, %c0_i32, %c0_i32_0 : i32, i32, i32
  }
  func.func @transform_8(%arg0: i32, %arg1: i32) -> (i32, i32, i32) {
    %c0_i32 = arith.constant 0 : i32
    %c0_i32_0 = arith.constant 0 : i32
    %c0_i32_1 = arith.constant 0 : i32
    return %arg1, %c0_i32, %c0_i32_0 : i32, i32, i32
  }
  func.func @transform_9(%arg0: i32, %arg1: i32) -> (i32, i32, i32) {
    %c0_i32 = arith.constant 0 : i32
    %c0_i32_0 = arith.constant 0 : i32
    %c0_i32_1 = arith.constant 0 : i32
    return %arg1, %c0_i32, %c0_i32_0 : i32, i32, i32
  }
  func.func @transform_10(%arg0: i32, %arg1: i32) -> (i32, i32, i32) {
    %c0_i32 = arith.constant 0 : i32
    %c0_i32_0 = arith.constant 0 : i32
    %c0_i32_1 = arith.constant 0 : i32
    return %arg1, %c0_i32, %c0_i32_0 : i32, i32, i32
  }
  func.func @transform_11(%arg0: i32, %arg1: i32) -> (i32, i32, i32) {
    %c0_i32 = arith.constant 0 : i32
    %c0_i32_0 = arith.constant 0 : i32
    %c0_i32_1 = arith.constant 0 : i32
    return %arg1, %c0_i32, %c0_i32_0 : i32, i32, i32
  }
  func.func @transform_12(%arg0: i32, %arg1: i32) -> (i32, i32, i32) {
    %c0_i32 = arith.constant 0 : i32
    %c0_i32_0 = arith.constant 0 : i32
    %c0_i32_1 = arith.constant 0 : i32
    return %arg1, %c0_i32, %c0_i32_0 : i32, i32, i32
  }
  func.func @transform_13(%arg0: i32, %arg1: i32) -> (i32, i32, i32) {
    %c0_i32 = arith.constant 0 : i32
    %c0_i32_0 = arith.constant 0 : i32
    %c0_i32_1 = arith.constant 0 : i32
    return %arg1, %c0_i32, %c0_i32_0 : i32, i32, i32
  }
  func.func @transform_14(%arg0: i32, %arg1: i32) -> (i32, i32, i32) {
    %c0_i32 = arith.constant 0 : i32
    %c0_i32_0 = arith.constant 0 : i32
    %c0_i32_1 = arith.constant 0 : i32
    return %arg1, %c0_i32, %c0_i32_0 : i32, i32, i32
  }
  func.func @transform_15(%arg0: i32, %arg1: i32) -> (i32, i32, i32) {
    %c0_i32 = arith.constant 0 : i32
    %c0_i32_0 = arith.constant 0 : i32
    %c0_i32_1 = arith.constant 0 : i32
    return %arg1, %c0_i32, %c0_i32_0 : i32, i32, i32
  }
  func.func @transform_16(%arg0: i32, %arg1: i32) -> (i32, i32, i32) {
    %c0_i32 = arith.constant 0 : i32
    %c0_i32_0 = arith.constant 0 : i32
    %c0_i32_1 = arith.constant 0 : i32
    return %arg1, %c0_i32, %c0_i32_0 : i32, i32, i32
  }
  func.func @transform_17(%arg0: i32, %arg1: i32) -> (i32, i32, i32) {
    %c0_i32 = arith.constant 0 : i32
    %c0_i32_0 = arith.constant 0 : i32
    %c0_i32_1 = arith.constant 0 : i32
    return %arg1, %c0_i32, %c0_i32_0 : i32, i32, i32
  }
  func.func @transform_18(%arg0: i32, %arg1: i32) -> (i32, i32, i32) {
    %c0_i32 = arith.constant 0 : i32
    %c0_i32_0 = arith.constant 0 : i32
    %c0_i32_1 = arith.constant 0 : i32
    return %arg1, %c0_i32, %c0_i32_0 : i32, i32, i32
  }
  func.func @transform_19(%arg0: i32, %arg1: i32) -> (i32, i32, i32) {
    %c0_i32 = arith.constant 0 : i32
    %c0_i32_0 = arith.constant 0 : i32
    %c0_i32_1 = arith.constant 0 : i32
    return %arg1, %c0_i32, %c0_i32_0 : i32, i32, i32
  }
  func.func @transform_20(%arg0: i32, %arg1: i32) -> (i32, i32, i32) {
    %c0_i32 = arith.constant 0 : i32
    %c0_i32_0 = arith.constant 0 : i32
    %c0_i32_1 = arith.constant 0 : i32
    return %arg1, %c0_i32, %c0_i32_0 : i32, i32, i32
  }
  func.func @transform_21(%arg0: i32, %arg1: i32) -> (i32, i32, i32) {
    %c0_i32 = arith.constant 0 : i32
    %c0_i32_0 = arith.constant 0 : i32
    %c0_i32_1 = arith.constant 0 : i32
    return %arg1, %c0_i32, %c0_i32_0 : i32, i32, i32
  }
  func.func @transform_22(%arg0: i32, %arg1: i32) -> (i32, i32, i32) {
    %c0_i32 = arith.constant 0 : i32
    %c0_i32_0 = arith.constant 0 : i32
    %c0_i32_1 = arith.constant 0 : i32
    return %arg1, %c0_i32, %c0_i32_0 : i32, i32, i32
  }
  func.func @transform_23(%arg0: i32, %arg1: i32) -> (i32, i32, i32) {
    %c0_i32 = arith.constant 0 : i32
    %c0_i32_0 = arith.constant 0 : i32
    %c0_i32_1 = arith.constant 0 : i32
    return %arg1, %c0_i32, %c0_i32_0 : i32, i32, i32
  }
  func.func @transform_24(%arg0: i32, %arg1: i32) -> (i32, i32, i32) {
    %c0_i32 = arith.constant 0 : i32
    %c0_i32_0 = arith.constant 0 : i32
    %c0_i32_1 = arith.constant 0 : i32
    return %arg1, %c0_i32, %c0_i32_0 : i32, i32, i32
  }
  func.func @transform_25(%arg0: i32, %arg1: i32) -> (i32, i32) {
    %c0_i32 = arith.constant 0 : i32
    %c0_i32_0 = arith.constant 0 : i32
    return %arg0, %c0_i32 : i32, i32
  }
}

</mosaic_0001>

<llo_original>
// kernel: tpu_custom_call.1
$region0: #{tpu_custom_call.1}
  #allocation0 [shape = 'u32[]', space=smem, size = 0x4, offset = 0x4, fixed_abs, tag = 'smem constant byte address 0x4 - core index']
  #allocation1 [shape = 'u32[72,128]{1,0:T(1,128)}', space=vmem, size = 0x9000, scoped, tag = 'internal scratch']
  #allocation2 [shape = 'f32[16,16]{1,0:T(8,128)}', space=vmem, size = 0x2000, scoped, tag = 'scratch operand']
  %s0 = inlined_call_operand.vmem [shape: f32[16,1], index: 0, kind: input, shape index: {}]
  %s1 = inlined_call_operand.vmem [shape: f32[16,16], index: 1, kind: input, shape index: {}]
  %s2 = inlined_call_operand.vmem [shape: f32[16,16], index: 2, kind: input, shape index: {}]
  %s3 = inlined_call_operand.hbm [shape: f32[1,16], index: 3, kind: input, shape index: {}]
  %s4 = inlined_call_operand.hbm [shape: f32[1,16], index: 4, kind: input, shape index: {}]
  %s5 = inlined_call_operand.vmem [shape: bf16[2,16,48], index: 5, kind: input, shape index: {}]
  %s6 = inlined_call_operand.hbm [shape: f32[2,1,48], index: 6, kind: input, shape index: {}]
  %s7 = inlined_call_operand.vmem [shape: bf16[2,16,16], index: 7, kind: input, shape index: {}]
  %s8 = inlined_call_operand.hbm [shape: f32[2,1,16], index: 8, kind: input, shape index: {}]
  %s9 = inlined_call_operand.hbm [shape: bf16[2,16,16], index: 9, kind: input, shape index: {}]
  %s10 = inlined_call_operand.hbm [shape: f32[2,1,16], index: 10, kind: input, shape index: {}]
  %s11 = inlined_call_operand.hbm [shape: bf16[2,16,32], index: 11, kind: input, shape index: {}]
  %s12 = inlined_call_operand.hbm [shape: f32[2,1,32], index: 12, kind: input, shape index: {}]
  %s13 = inlined_call_operand.hbm [shape: bf16[2,16,16], index: 13, kind: input, shape index: {}]
  %s14 = inlined_call_operand.hbm [shape: f32[2,1,16], index: 14, kind: input, shape index: {}]
  %s15 = inlined_call_operand.hbm [shape: bf16[2,16,32], index: 15, kind: input, shape index: {}]
  %s16 = inlined_call_operand.hbm [shape: f32[2,1,32], index: 16, kind: input, shape index: {}]
  %s17 = inlined_call_operand.vmem [shape: bf16[2,32,16], index: 17, kind: input, shape index: {}]
  %s18 = inlined_call_operand.vmem [shape: f32[2,1,16], index: 18, kind: input, shape index: {}]
  %s19 = inlined_call_operand.hbm [shape: f32[2,1,16], index: 19, kind: input, shape index: {}]
  %s20 = inlined_call_operand.vmem [shape: f32[2,1,16], index: 20, kind: input, shape index: {}]
  %s21 = inlined_call_operand.hbm [shape: f32[2,1,16], index: 21, kind: input, shape index: {}]
  %s22 = inlined_call_operand.vmem [shape: f32[2,1,16], index: 22, kind: input, shape index: {}]
  %s23 = inlined_call_operand.hbm [shape: f32[2,1,16], index: 23, kind: input, shape index: {}]
  %s24 = inlined_call_operand.vmem [shape: f32[2,1,16], index: 24, kind: input, shape index: {}]
  %s25 = inlined_call_operand.hbm [shape: f32[16,16], index: 25, kind: output, shape index: {}]
  %s26 = sld [smem:[#allocation0]]
  $region201: #{tpu_custom_call.1} parent=0
    _
  %s28 = ssub.s32 1, %s26
  %s29 = scalar_select 0, %s28, %s26
  $region1: #{tpu_custom_call.1} parent=0
    #allocation3 [shape = 'u8[512]{0}', space=vmem, size = 0x400, scoped, tag = 'input window, operand 3, single buffered']
    #allocation4 [shape = 's32[2]{0}', space=sflag, size = 0x8, scoped, tag = 'scoped memory for tpu_custom_call.1']
    #allocation5 [shape = 's32[2]{0}', space=sflag, size = 0x8, scoped, tag = 'scoped memory for tpu_custom_call.1']
    #allocation6 [shape = 'u8[512]{0}', space=vmem, size = 0x400, scoped, tag = 'input window, operand 4, single buffered']
    #allocation7 [shape = 's32[1]{0}', space=sflag, size = 0x4, scoped, tag = 'scoped memory for tpu_custom_call.1']
    #allocation8 [shape = 'u8[1024]{0}', space=vmem, size = 0x400, scoped, tag = 'input window, operand 6']
    #allocation9 [shape = 'u8[1024]{0}', space=vmem, size = 0x400, scoped, tag = 'input window, operand 8']
    #allocation10 [shape = 'u8[8192]{0}', space=vmem, size = 0x2000, scoped, tag = 'input window, operand 9']
    #allocation11 [shape = 'u8[1024]{0}', space=vmem, size = 0x400, scoped, tag = 'input window, operand 10']
    #allocation12 [shape = 'u8[8192]{0}', space=vmem, size = 0x2000, scoped, tag = 'input window, operand 11']
    #allocation13 [shape = 'u8[1024]{0}', space=vmem, size = 0x400, scoped, tag = 'input window, operand 12']
    #allocation14 [shape = 'u8[8192]{0}', space=vmem, size = 0x2000, scoped, tag = 'input window, operand 13']
    #allocation15 [shape = 'u8[1024]{0}', space=vmem, size = 0x400, scoped, tag = 'input window, operand 14']
    #allocation16 [shape = 'u8[8192]{0}', space=vmem, size = 0x2000, scoped, tag = 'input window, operand 15']
    #allocation17 [shape = 'u8[1024]{0}', space=vmem, size = 0x400, scoped, tag = 'input window, operand 16']
    #allocation18 [shape = 'u8[1024]{0}', space=vmem, size = 0x400, scoped, tag = 'input window, operand 19']
    #allocation19 [shape = 'u8[1024]{0}', space=vmem, size = 0x400, scoped, tag = 'input window, operand 21']
    #allocation20 [shape = 'u8[1024]{0}', space=vmem, size = 0x400, scoped, tag = 'input window, operand 23']
    #allocation21 [shape = 'u8[8192]{0}', space=vmem, size = 0x2000, scoped, tag = 'output window, operand 0, single buffered']
    %30 = vsyncpa [#allocation4], 0
    %31 = vsyncpa [#allocation7], 0
    %32 = vsyncpa [#allocation5], 0
    loop: start=0, step=1, limit=4
    $region2: #{tpu_custom_call.1} parent=1 // loop_pre_header
      _
    $region3: #{tpu_custom_call.1} parent=1 // loop_header
      %s34 = sphi 0, %s38
      %p35 = scmp.ge.s32.totalorder %s34, 4
      %s41 = sphi 0, %s53
      %s42 = sphi 0, %s49
      %s43 = sphi 0, %s41
      %s44 = sphi 0, %s42
      %s45 = sphi 0, %s43
      %s46 = sphi 0, %s44
      %s56 = sphi 0, %s58
      %s59 = sphi 0, %s56
      %s60 = sphi 0, %s59
      %s76 = sphi 0, %s60
      %s82 = sphi 0, %s84
      %s85 = sphi 0, %s82
      %s86 = sphi 0, %s85
      %s102 = sphi 0, %s86
      %s106 = sphi 0, %s106
      %s108 = sphi 0, %s106
      %s109 = sphi 0, %s108
      %s123 = sphi 0, %s109
      %s127 = sphi 0, %s127
      %s129 = sphi 0, %s127
      %s130 = sphi 0, %s129
      %s144 = sphi 0, %s130
      %s148 = sphi 0, %s148
      %s150 = sphi 0, %s148
      %s151 = sphi 0, %s150
      %s165 = sphi 0, %s151
      %s171 = sphi 0, %s173
      %s174 = sphi 0, %s171
      %s175 = sphi 0, %s174
      %s191 = sphi 0, %s175
      %s197 = sphi 0, %s199
      %s200 = sphi 0, %s197
      %s201 = sphi 0, %s200
      %s217 = sphi 0, %s201
      %s223 = sphi 0, %s225
      %s226 = sphi 0, %s223
      %s227 = sphi 0, %s226
      %s243 = sphi 0, %s227
      %s249 = sphi 0, %s251
      %s252 = sphi 0, %s249
      %s253 = sphi 0, %s252
      %s269 = sphi 0, %s253
      %s275 = sphi 0, %s277
      %s278 = sphi 0, %s275
      %s279 = sphi 0, %s278
      %s295 = sphi 0, %s279
      %s301 = sphi 0, %s303
      %s304 = sphi 0, %s301
      %s305 = sphi 0, %s304
      %s321 = sphi 0, %s305
      %s327 = sphi 0, %s329
      %s330 = sphi 0, %s327
      %s331 = sphi 0, %s330
      %s347 = sphi 0, %s331
      %s353 = sphi 0, %s355
      %s356 = sphi 0, %s353
      %s357 = sphi 0, %s356
      %s373 = sphi 0, %s357
      %s379 = sphi 0, %s381
      %s382 = sphi 0, %s379
      %s383 = sphi 0, %s382
      %s399 = sphi 0, %s383
      %s405 = sphi 0, %s407
      %s408 = sphi 0, %s405
      %s409 = sphi 0, %s408
      %s425 = sphi 0, %s409
      %s431 = sphi 0, %s433
      %s434 = sphi 0, %s431
      %s435 = sphi 0, %s434
      %s451 = sphi 0, %s435
      %s457 = sphi 0, %s459
      %s460 = sphi 0, %s457
      %s461 = sphi 0, %s460
      %s477 = sphi 0, %s461
      %s483 = sphi 0, %s485
      %s486 = sphi 0, %s483
      %s487 = sphi 0, %s486
      %s503 = sphi 0, %s487
      %s509 = sphi 0, %s511
      %s512 = sphi 0, %s509
      %s513 = sphi 0, %s512
      %s529 = sphi 0, %s513
      %s535 = sphi 0, %s537
      %s538 = sphi 0, %s535
      %s539 = sphi 0, %s538
      %s555 = sphi 0, %s539
      %s561 = sphi 0, %s563
      %s564 = sphi 0, %s561
      %s565 = sphi 0, %s564
      %s581 = sphi 0, %s565
      %s587 = sphi 0, %s589
      %s590 = sphi 0, %s587
      %s591 = sphi 0, %s590
      %s607 = sphi 0, %s591
      %s613 = sphi 0, %s615
      %s616 = sphi 0, %s613
      %s617 = sphi 0, %s616
      %s633 = sphi 0, %s617
      %s639 = sphi 0, %s641
      %s642 = sphi 0, %s639
      %s643 = sphi 0, %s642
      %s659 = sphi 0, %s643
      %s665 = sphi 0, %s667
      %s668 = sphi 0, %s665
      %s669 = sphi 0, %s668
      %s685 = sphi 0, %s669
      %s691 = sphi 0, %s693
      %s694 = sphi 0, %s691
      %s695 = sphi 0, %s694
      %s711 = sphi 0, %s695
    $region4: #{tpu_custom_call.1} parent=1 // loop_header_branch
      %37 = sbr.rel (%p35) target = $region8
    $region5: #{tpu_custom_call.1} parent=1 // loop_body
      %s39 = ssub.s32 %s34, 1
      %s40 = ssub.s32 %s34, 2
      %s47 = sadd.s32 1, %s42
      %p48 = scmp.ge.s32.totalorder %s47, 2
      %s49 = scalar_select %p48, 0, %s47
      %s50 = sadd.s32 1, %s41
      %s51 = scalar_select %p48, %s50, %s41
      %p52 = scmp.ge.s32.totalorder %s51, 1
      %s53 = scalar_select %p52, 0, %s51
      %s54 = ssub.s32 %s41, %s53
      %p55 = scmp.eq.s32.totalorder %s54, 0
      %s57 = sadd.s32 %s56, 1
      %s58 = scalar_select %p55, %s56, %s57
      %p61 = pneg %p55
      %p62 = scmp.eq.s32.totalorder %s34, 1
      %p63 = por %p61, %p62
      %p64 = scmp.ne.s32.totalorder %s56, %s59
      %p65 = scmp.eq.s32.totalorder %s34, 0
      %p66 = por %p64, %p65
      %p67 = scmp.ne.s32.totalorder %s56, %s59
      %p68 = scmp.eq.s32.totalorder %s39, 1
      %p69 = por %p67, %p68
      %p70 = scmp.ne.s32.totalorder %s59, %s60
      %p71 = scmp.eq.s32.totalorder %s39, 0
      %p72 = por %p70, %p71
      %p73 = scmp.ne.s32.totalorder %s59, %s60
      %p74 = scmp.eq.s32.totalorder %s40, 1
      %p75 = por %p73, %p74
      %p77 = scmp.ne.s32.totalorder %s60, %s76
      %p78 = scmp.eq.s32.totalorder %s40, 0
      %p79 = por %p77, %p78
      %s80 = ssub.s32 %s41, %s53
      %p81 = scmp.eq.s32.totalorder %s80, 0
      %s83 = sadd.s32 %s82, 1
      %s84 = scalar_select %p81, %s82, %s83
      %p87 = pneg %p81
      %p88 = scmp.eq.s32.totalorder %s34, 1
      %p89 = por %p87, %p88
      %p90 = scmp.ne.s32.totalorder %s82, %s85
      %p91 = scmp.eq.s32.totalorder %s34, 0
      %p92 = por %p90, %p91
      %p93 = scmp.ne.s32.totalorder %s82, %s85
      %p94 = scmp.eq.s32.totalorder %s39, 1
      %p95 = por %p93, %p94
      %p96 = scmp.ne.s32.totalorder %s85, %s86
      %p97 = scmp.eq.s32.totalorder %s39, 0
      %p98 = por %p96, %p97
      %p99 = scmp.ne.s32.totalorder %s85, %s86
      %p100 = scmp.eq.s32.totalorder %s40, 1
      %p101 = por %p99, %p100
      %p103 = scmp.ne.s32.totalorder %s86, %s102
      %p104 = scmp.eq.s32.totalorder %s40, 0
      %p105 = por %p103, %p104
      %s107 = sadd.s32 %s106, 1
      %p110 = scmp.eq.s32.totalorder %s34, 1
      %p111 = scmp.ne.s32.totalorder %s106, %s108
      %p112 = scmp.eq.s32.totalorder %s34, 0
      %p113 = por %p111, %p112
      %p114 = scmp.ne.s32.totalorder %s106, %s108
      %p115 = scmp.eq.s32.totalorder %s39, 1
      %p116 = por %p114, %p115
      %p117 = scmp.ne.s32.totalorder %s108, %s109
      %p118 = scmp.eq.s32.totalorder %s39, 0
      %p119 = por %p117, %p118
      %p120 = scmp.ne.s32.totalorder %s108, %s109
      %p121 = scmp.eq.s32.totalorder %s40, 1
      %p122 = por %p120, %p121
      %p124 = scmp.ne.s32.totalorder %s109, %s123
      %p125 = scmp.eq.s32.totalorder %s40, 0
      %p126 = por %p124, %p125
      %s128 = sadd.s32 %s127, 1
      %p131 = scmp.eq.s32.totalorder %s34, 1
      %p132 = scmp.ne.s32.totalorder %s127, %s129
      %p133 = scmp.eq.s32.totalorder %s34, 0
      %p134 = por %p132, %p133
      %p135 = scmp.ne.s32.totalorder %s127, %s129
      %p136 = scmp.eq.s32.totalorder %s39, 1
      %p137 = por %p135, %p136
      %p138 = scmp.ne.s32.totalorder %s129, %s130
      %p139 = scmp.eq.s32.totalorder %s39, 0
      %p140 = por %p138, %p139
      %p141 = scmp.ne.s32.totalorder %s129, %s130
      %p142 = scmp.eq.s32.totalorder %s40, 1
      %p143 = por %p141, %p142
      %p145 = scmp.ne.s32.totalorder %s130, %s144
      %p146 = scmp.eq.s32.totalorder %s40, 0
      %p147 = por %p145, %p146
      %s149 = sadd.s32 %s148, 1
      %p152 = scmp.eq.s32.totalorder %s34, 1
      %p153 = scmp.ne.s32.totalorder %s148, %s150
      %p154 = scmp.eq.s32.totalorder %s34, 0
      %p155 = por %p153, %p154
      %p156 = scmp.ne.s32.totalorder %s148, %s150
      %p157 = scmp.eq.s32.totalorder %s39, 1
      %p158 = por %p156, %p157
      %p159 = scmp.ne.s32.totalorder %s150, %s151
      %p160 = scmp.eq.s32.totalorder %s39, 0
      %p161 = por %p159, %p160
      %p162 = scmp.ne.s32.totalorder %s150, %s151
      %p163 = scmp.eq.s32.totalorder %s40, 1
      %p164 = por %p162, %p163
      %p166 = scmp.ne.s32.totalorder %s151, %s165
      %p167 = scmp.eq.s32.totalorder %s40, 0
      %p168 = por %p166, %p167
      %s169 = ssub.s32 %s42, %s49
      %p170 = scmp.eq.s32.totalorder %s169, 0
      %s172 = sadd.s32 %s171, 1
      %s173 = scalar_select %p170, %s171, %s172
      %p176 = pneg %p170
      %p177 = scmp.eq.s32.totalorder %s34, 1
      %p178 = por %p176, %p177
      %p179 = scmp.ne.s32.totalorder %s171, %s174
      %p180 = scmp.eq.s32.totalorder %s34, 0
      %p181 = por %p179, %p180
      %p182 = scmp.ne.s32.totalorder %s171, %s174
      %p183 = scmp.eq.s32.totalorder %s39, 1
      %p184 = por %p182, %p183
      %p185 = scmp.ne.s32.totalorder %s174, %s175
      %p186 = scmp.eq.s32.totalorder %s39, 0
      %p187 = por %p185, %p186
      %p188 = scmp.ne.s32.totalorder %s174, %s175
      %p189 = scmp.eq.s32.totalorder %s40, 1
      %p190 = por %p188, %p189
      %p192 = scmp.ne.s32.totalorder %s175, %s191
      %p193 = scmp.eq.s32.totalorder %s40, 0
      %p194 = por %p192, %p193
      %s195 = ssub.s32 %s42, %s49
      %p196 = scmp.eq.s32.totalorder %s195, 0
      %s198 = sadd.s32 %s197, 1
      %s199 = scalar_select %p196, %s197, %s198
      %p202 = pneg %p196
      %p203 = scmp.eq.s32.totalorder %s34, 1
      %p204 = por %p202, %p203
      %p205 = scmp.ne.s32.totalorder %s197, %s200
      %p206 = scmp.eq.s32.totalorder %s34, 0
      %p207 = por %p205, %p206
      %p208 = scmp.ne.s32.totalorder %s197, %s200
      %p209 = scmp.eq.s32.totalorder %s39, 1
      %p210 = por %p208, %p209
      %p211 = scmp.ne.s32.totalorder %s200, %s201
      %p212 = scmp.eq.s32.totalorder %s39, 0
      %p213 = por %p211, %p212
      %p214 = scmp.ne.s32.totalorder %s200, %s201
      %p215 = scmp.eq.s32.totalorder %s40, 1
      %p216 = por %p214, %p215
      %p218 = scmp.ne.s32.totalorder %s201, %s217
      %p219 = scmp.eq.s32.totalorder %s40, 0
      %p220 = por %p218, %p219
      %s221 = ssub.s32 %s42, %s49
      %p222 = scmp.eq.s32.totalorder %s221, 0
      %s224 = sadd.s32 %s223, 1
      %s225 = scalar_select %p222, %s223, %s224
      %p228 = pneg %p222
      %p229 = scmp.eq.s32.totalorder %s34, 1
      %p230 = por %p228, %p229
      %p231 = scmp.ne.s32.totalorder %s223, %s226
      %p232 = scmp.eq.s32.totalorder %s34, 0
      %p233 = por %p231, %p232
      %p234 = scmp.ne.s32.totalorder %s223, %s226
      %p235 = scmp.eq.s32.totalorder %s39, 1
      %p236 = por %p234, %p235
      %p237 = scmp.ne.s32.totalorder %s226, %s227
      %p238 = scmp.eq.s32.totalorder %s39, 0
      %p239 = por %p237, %p238
      %p240 = scmp.ne.s32.totalorder %s226, %s227
      %p241 = scmp.eq.s32.totalorder %s40, 1
      %p242 = por %p240, %p241
      %p244 = scmp.ne.s32.totalorder %s227, %s243
      %p245 = scmp.eq.s32.totalorder %s40, 0
      %p246 = por %p244, %p245
      %s247 = ssub.s32 %s42, %s49
      %p248 = scmp.eq.s32.totalorder %s247, 0
      %s250 = sadd.s32 %s249, 1
      %s251 = scalar_select %p248, %s249, %s250
      %p254 = pneg %p248
      %p255 = scmp.eq.s32.totalorder %s34, 1
      %p256 = por %p254, %p255
      %p257 = scmp.ne.s32.totalorder %s249, %s252
      %p258 = scmp.eq.s32.totalorder %s34, 0
      %p259 = por %p257, %p258
      %p260 = scmp.ne.s32.totalorder %s249, %s252
      %p261 = scmp.eq.s32.totalorder %s39, 1
      %p262 = por %p260, %p261
      %p263 = scmp.ne.s32.totalorder %s252, %s253
      %p264 = scmp.eq.s32.totalorder %s39, 0
      %p265 = por %p263, %p264
      %p266 = scmp.ne.s32.totalorder %s252, %s253
      %p267 = scmp.eq.s32.totalorder %s40, 1
      %p268 = por %p266, %p267
      %p270 = scmp.ne.s32.totalorder %s253, %s269
      %p271 = scmp.eq.s32.totalorder %s40, 0
      %p272 = por %p270, %p271
      %s273 = ssub.s32 %s42, %s49
      %p274 = scmp.eq.s32.totalorder %s273, 0
      %s276 = sadd.s32 %s275, 1
      %s277 = scalar_select %p274, %s275, %s276
      %p280 = pneg %p274
      %p281 = scmp.eq.s32.totalorder %s34, 1
      %p282 = por %p280, %p281
      %p283 = scmp.ne.s32.totalorder %s275, %s278
      %p284 = scmp.eq.s32.totalorder %s34, 0
      %p285 = por %p283, %p284
      %p286 = scmp.ne.s32.totalorder %s275, %s278
      %p287 = scmp.eq.s32.totalorder %s39, 1
      %p288 = por %p286, %p287
      %p289 = scmp.ne.s32.totalorder %s278, %s279
      %p290 = scmp.eq.s32.totalorder %s39, 0
      %p291 = por %p289, %p290
      %p292 = scmp.ne.s32.totalorder %s278, %s279
      %p293 = scmp.eq.s32.totalorder %s40, 1
      %p294 = por %p292, %p293
      %p296 = scmp.ne.s32.totalorder %s279, %s295
      %p297 = scmp.eq.s32.totalorder %s40, 0
      %p298 = por %p296, %p297
      %s299 = ssub.s32 %s42, %s49
      %p300 = scmp.eq.s32.totalorder %s299, 0
      %s302 = sadd.s32 %s301, 1
      %s303 = scalar_select %p300, %s301, %s302
      %p306 = pneg %p300
      %p307 = scmp.eq.s32.totalorder %s34, 1
      %p308 = por %p306, %p307
      %p309 = scmp.ne.s32.totalorder %s301, %s304
      %p310 = scmp.eq.s32.totalorder %s34, 0
      %p311 = por %p309, %p310
      %p312 = scmp.ne.s32.totalorder %s301, %s304
      %p313 = scmp.eq.s32.totalorder %s39, 1
      %p314 = por %p312, %p313
      %p315 = scmp.ne.s32.totalorder %s304, %s305
      %p316 = scmp.eq.s32.totalorder %s39, 0
      %p317 = por %p315, %p316
      %p318 = scmp.ne.s32.totalorder %s304, %s305
      %p319 = scmp.eq.s32.totalorder %s40, 1
      %p320 = por %p318, %p319
      %p322 = scmp.ne.s32.totalorder %s305, %s321
      %p323 = scmp.eq.s32.totalorder %s40, 0
      %p324 = por %p322, %p323
      %s325 = ssub.s32 %s42, %s49
      %p326 = scmp.eq.s32.totalorder %s325, 0
      %s328 = sadd.s32 %s327, 1
      %s329 = scalar_select %p326, %s327, %s328
      %p332 = pneg %p326
      %p333 = scmp.eq.s32.totalorder %s34, 1
      %p334 = por %p332, %p333
      %p335 = scmp.ne.s32.totalorder %s327, %s330
      %p336 = scmp.eq.s32.totalorder %s34, 0
      %p337 = por %p335, %p336
      %p338 = scmp.ne.s32.totalorder %s327, %s330
      %p339 = scmp.eq.s32.totalorder %s39, 1
      %p340 = por %p338, %p339
      %p341 = scmp.ne.s32.totalorder %s330, %s331
      %p342 = scmp.eq.s32.totalorder %s39, 0
      %p343 = por %p341, %p342
      %p344 = scmp.ne.s32.totalorder %s330, %s331
      %p345 = scmp.eq.s32.totalorder %s40, 1
      %p346 = por %p344, %p345
      %p348 = scmp.ne.s32.totalorder %s331, %s347
      %p349 = scmp.eq.s32.totalorder %s40, 0
      %p350 = por %p348, %p349
      %s351 = ssub.s32 %s42, %s49
      %p352 = scmp.eq.s32.totalorder %s351, 0
      %s354 = sadd.s32 %s353, 1
      %s355 = scalar_select %p352, %s353, %s354
      %p358 = pneg %p352
      %p359 = scmp.eq.s32.totalorder %s34, 1
      %p360 = por %p358, %p359
      %p361 = scmp.ne.s32.totalorder %s353, %s356
      %p362 = scmp.eq.s32.totalorder %s34, 0
      %p363 = por %p361, %p362
      %p364 = scmp.ne.s32.totalorder %s353, %s356
      %p365 = scmp.eq.s32.totalorder %s39, 1
      %p366 = por %p364, %p365
      %p367 = scmp.ne.s32.totalorder %s356, %s357
      %p368 = scmp.eq.s32.totalorder %s39, 0
      %p369 = por %p367, %p368
      %p370 = scmp.ne.s32.totalorder %s356, %s357
      %p371 = scmp.eq.s32.totalorder %s40, 1
      %p372 = por %p370, %p371
      %p374 = scmp.ne.s32.totalorder %s357, %s373
      %p375 = scmp.eq.s32.totalorder %s40, 0
      %p376 = por %p374, %p375
      %s377 = ssub.s32 %s42, %s49
      %p378 = scmp.eq.s32.totalorder %s377, 0
      %s380 = sadd.s32 %s379, 1
      %s381 = scalar_select %p378, %s379, %s380
      %p384 = pneg %p378
      %p385 = scmp.eq.s32.totalorder %s34, 1
      %p386 = por %p384, %p385
      %p387 = scmp.ne.s32.totalorder %s379, %s382
      %p388 = scmp.eq.s32.totalorder %s34, 0
      %p389 = por %p387, %p388
      %p390 = scmp.ne.s32.totalorder %s379, %s382
      %p391 = scmp.eq.s32.totalorder %s39, 1
      %p392 = por %p390, %p391
      %p393 = scmp.ne.s32.totalorder %s382, %s383
      %p394 = scmp.eq.s32.totalorder %s39, 0
      %p395 = por %p393, %p394
      %p396 = scmp.ne.s32.totalorder %s382, %s383
      %p397 = scmp.eq.s32.totalorder %s40, 1
      %p398 = por %p396, %p397
      %p400 = scmp.ne.s32.totalorder %s383, %s399
      %p401 = scmp.eq.s32.totalorder %s40, 0
      %p402 = por %p400, %p401
      %s403 = ssub.s32 %s42, %s49
      %p404 = scmp.eq.s32.totalorder %s403, 0
      %s406 = sadd.s32 %s405, 1
      %s407 = scalar_select %p404, %s405, %s406
      %p410 = pneg %p404
      %p411 = scmp.eq.s32.totalorder %s34, 1
      %p412 = por %p410, %p411
      %p413 = scmp.ne.s32.totalorder %s405, %s408
      %p414 = scmp.eq.s32.totalorder %s34, 0
      %p415 = por %p413, %p414
      %p416 = scmp.ne.s32.totalorder %s405, %s408
      %p417 = scmp.eq.s32.totalorder %s39, 1
      %p418 = por %p416, %p417
      %p419 = scmp.ne.s32.totalorder %s408, %s409
      %p420 = scmp.eq.s32.totalorder %s39, 0
      %p421 = por %p419, %p420
      %p422 = scmp.ne.s32.totalorder %s408, %s409
      %p423 = scmp.eq.s32.totalorder %s40, 1
      %p424 = por %p422, %p423
      %p426 = scmp.ne.s32.totalorder %s409, %s425
      %p427 = scmp.eq.s32.totalorder %s40, 0
      %p428 = por %p426, %p427
      %s429 = ssub.s32 %s42, %s49
      %p430 = scmp.eq.s32.totalorder %s429, 0
      %s432 = sadd.s32 %s431, 1
      %s433 = scalar_select %p430, %s431, %s432
      %p436 = pneg %p430
      %p437 = scmp.eq.s32.totalorder %s34, 1
      %p438 = por %p436, %p437
      %p439 = scmp.ne.s32.totalorder %s431, %s434
      %p440 = scmp.eq.s32.totalorder %s34, 0
      %p441 = por %p439, %p440
      %p442 = scmp.ne.s32.totalorder %s431, %s434
      %p443 = scmp.eq.s32.totalorder %s39, 1
      %p444 = por %p442, %p443
      %p445 = scmp.ne.s32.totalorder %s434, %s435
      %p446 = scmp.eq.s32.totalorder %s39, 0
      %p447 = por %p445, %p446
      %p448 = scmp.ne.s32.totalorder %s434, %s435
      %p449 = scmp.eq.s32.totalorder %s40, 1
      %p450 = por %p448, %p449
      %p452 = scmp.ne.s32.totalorder %s435, %s451
      %p453 = scmp.eq.s32.totalorder %s40, 0
      %p454 = por %p452, %p453
      %s455 = ssub.s32 %s42, %s49
      %p456 = scmp.eq.s32.totalorder %s455, 0
      %s458 = sadd.s32 %s457, 1
      %s459 = scalar_select %p456, %s457, %s458
      %p462 = pneg %p456
      %p463 = scmp.eq.s32.totalorder %s34, 1
      %p464 = por %p462, %p463
      %p465 = scmp.ne.s32.totalorder %s457, %s460
      %p466 = scmp.eq.s32.totalorder %s34, 0
      %p467 = por %p465, %p466
      %p468 = scmp.ne.s32.totalorder %s457, %s460
      %p469 = scmp.eq.s32.totalorder %s39, 1
      %p470 = por %p468, %p469
      %p471 = scmp.ne.s32.totalorder %s460, %s461
      %p472 = scmp.eq.s32.totalorder %s39, 0
      %p473 = por %p471, %p472
      %p474 = scmp.ne.s32.totalorder %s460, %s461
      %p475 = scmp.eq.s32.totalorder %s40, 1
      %p476 = por %p474, %p475
      %p478 = scmp.ne.s32.totalorder %s461, %s477
      %p479 = scmp.eq.s32.totalorder %s40, 0
      %p480 = por %p478, %p479
      %s481 = ssub.s32 %s42, %s49
      %p482 = scmp.eq.s32.totalorder %s481, 0
      %s484 = sadd.s32 %s483, 1
      %s485 = scalar_select %p482, %s483, %s484
      %p488 = pneg %p482
      %p489 = scmp.eq.s32.totalorder %s34, 1
      %p490 = por %p488, %p489
      %p491 = scmp.ne.s32.totalorder %s483, %s486
      %p492 = scmp.eq.s32.totalorder %s34, 0
      %p493 = por %p491, %p492
      %p494 = scmp.ne.s32.totalorder %s483, %s486
      %p495 = scmp.eq.s32.totalorder %s39, 1
      %p496 = por %p494, %p495
      %p497 = scmp.ne.s32.totalorder %s486, %s487
      %p498 = scmp.eq.s32.totalorder %s39, 0
      %p499 = por %p497, %p498
      %p500 = scmp.ne.s32.totalorder %s486, %s487
      %p501 = scmp.eq.s32.totalorder %s40, 1
      %p502 = por %p500, %p501
      %p504 = scmp.ne.s32.totalorder %s487, %s503
      %p505 = scmp.eq.s32.totalorder %s40, 0
      %p506 = por %p504, %p505
      %s507 = ssub.s32 %s42, %s49
      %p508 = scmp.eq.s32.totalorder %s507, 0
      %s510 = sadd.s32 %s509, 1
      %s511 = scalar_select %p508, %s509, %s510
      %p514 = pneg %p508
      %p515 = scmp.eq.s32.totalorder %s34, 1
      %p516 = por %p514, %p515
      %p517 = scmp.ne.s32.totalorder %s509, %s512
      %p518 = scmp.eq.s32.totalorder %s34, 0
      %p519 = por %p517, %p518
      %p520 = scmp.ne.s32.totalorder %s509, %s512
      %p521 = scmp.eq.s32.totalorder %s39, 1
      %p522 = por %p520, %p521
      %p523 = scmp.ne.s32.totalorder %s512, %s513
      %p524 = scmp.eq.s32.totalorder %s39, 0
      %p525 = por %p523, %p524
      %p526 = scmp.ne.s32.totalorder %s512, %s513
      %p527 = scmp.eq.s32.totalorder %s40, 1
      %p528 = por %p526, %p527
      %p530 = scmp.ne.s32.totalorder %s513, %s529
      %p531 = scmp.eq.s32.totalorder %s40, 0
      %p532 = por %p530, %p531
      %s533 = ssub.s32 %s42, %s49
      %p534 = scmp.eq.s32.totalorder %s533, 0
      %s536 = sadd.s32 %s535, 1
      %s537 = scalar_select %p534, %s535, %s536
      %p540 = pneg %p534
      %p541 = scmp.eq.s32.totalorder %s34, 1
      %p542 = por %p540, %p541
      %p543 = scmp.ne.s32.totalorder %s535, %s538
      %p544 = scmp.eq.s32.totalorder %s34, 0
      %p545 = por %p543, %p544
      %p546 = scmp.ne.s32.totalorder %s535, %s538
      %p547 = scmp.eq.s32.totalorder %s39, 1
      %p548 = por %p546, %p547
      %p549 = scmp.ne.s32.totalorder %s538, %s539
      %p550 = scmp.eq.s32.totalorder %s39, 0
      %p551 = por %p549, %p550
      %p552 = scmp.ne.s32.totalorder %s538, %s539
      %p553 = scmp.eq.s32.totalorder %s40, 1
      %p554 = por %p552, %p553
      %p556 = scmp.ne.s32.totalorder %s539, %s555
      %p557 = scmp.eq.s32.totalorder %s40, 0
      %p558 = por %p556, %p557
      %s559 = ssub.s32 %s42, %s49
      %p560 = scmp.eq.s32.totalorder %s559, 0
      %s562 = sadd.s32 %s561, 1
      %s563 = scalar_select %p560, %s561, %s562
      %p566 = pneg %p560
      %p567 = scmp.eq.s32.totalorder %s34, 1
      %p568 = por %p566, %p567
      %p569 = scmp.ne.s32.totalorder %s561, %s564
      %p570 = scmp.eq.s32.totalorder %s34, 0
      %p571 = por %p569, %p570
      %p572 = scmp.ne.s32.totalorder %s561, %s564
      %p573 = scmp.eq.s32.totalorder %s39, 1
      %p574 = por %p572, %p573
      %p575 = scmp.ne.s32.totalorder %s564, %s565
      %p576 = scmp.eq.s32.totalorder %s39, 0
      %p577 = por %p575, %p576
      %p578 = scmp.ne.s32.totalorder %s564, %s565
      %p579 = scmp.eq.s32.totalorder %s40, 1
      %p580 = por %p578, %p579
      %p582 = scmp.ne.s32.totalorder %s565, %s581
      %p583 = scmp.eq.s32.totalorder %s40, 0
      %p584 = por %p582, %p583
      %s585 = ssub.s32 %s42, %s49
      %p586 = scmp.eq.s32.totalorder %s585, 0
      %s588 = sadd.s32 %s587, 1
      %s589 = scalar_select %p586, %s587, %s588
      %p592 = pneg %p586
      %p593 = scmp.eq.s32.totalorder %s34, 1
      %p594 = por %p592, %p593
      %p595 = scmp.ne.s32.totalorder %s587, %s590
      %p596 = scmp.eq.s32.totalorder %s34, 0
      %p597 = por %p595, %p596
      %p598 = scmp.ne.s32.totalorder %s587, %s590
      %p599 = scmp.eq.s32.totalorder %s39, 1
      %p600 = por %p598, %p599
      %p601 = scmp.ne.s32.totalorder %s590, %s591
      %p602 = scmp.eq.s32.totalorder %s39, 0
      %p603 = por %p601, %p602
      %p604 = scmp.ne.s32.totalorder %s590, %s591
      %p605 = scmp.eq.s32.totalorder %s40, 1
      %p606 = por %p604, %p605
      %p608 = scmp.ne.s32.totalorder %s591, %s607
      %p609 = scmp.eq.s32.totalorder %s40, 0
      %p610 = por %p608, %p609
      %s611 = ssub.s32 %s42, %s49
      %p612 = scmp.eq.s32.totalorder %s611, 0
      %s614 = sadd.s32 %s613, 1
      %s615 = scalar_select %p612, %s613, %s614
      %p618 = pneg %p612
      %p619 = scmp.eq.s32.totalorder %s34, 1
      %p620 = por %p618, %p619
      %p621 = scmp.ne.s32.totalorder %s613, %s616
      %p622 = scmp.eq.s32.totalorder %s34, 0
      %p623 = por %p621, %p622
      %p624 = scmp.ne.s32.totalorder %s613, %s616
      %p625 = scmp.eq.s32.totalorder %s39, 1
      %p626 = por %p624, %p625
      %p627 = scmp.ne.s32.totalorder %s616, %s617
      %p628 = scmp.eq.s32.totalorder %s39, 0
      %p629 = por %p627, %p628
      %p630 = scmp.ne.s32.totalorder %s616, %s617
      %p631 = scmp.eq.s32.totalorder %s40, 1
      %p632 = por %p630, %p631
      %p634 = scmp.ne.s32.totalorder %s617, %s633
      %p635 = scmp.eq.s32.totalorder %s40, 0
      %p636 = por %p634, %p635
      %s637 = ssub.s32 %s42, %s49
      %p638 = scmp.eq.s32.totalorder %s637, 0
      %s640 = sadd.s32 %s639, 1
      %s641 = scalar_select %p638, %s639, %s640
      %p644 = pneg %p638
      %p645 = scmp.eq.s32.totalorder %s34, 1
      %p646 = por %p644, %p645
      %p647 = scmp.ne.s32.totalorder %s639, %s642
      %p648 = scmp.eq.s32.totalorder %s34, 0
      %p649 = por %p647, %p648
      %p650 = scmp.ne.s32.totalorder %s639, %s642
      %p651 = scmp.eq.s32.totalorder %s39, 1
      %p652 = por %p650, %p651
      %p653 = scmp.ne.s32.totalorder %s642, %s643
      %p654 = scmp.eq.s32.totalorder %s39, 0
      %p655 = por %p653, %p654
      %p656 = scmp.ne.s32.totalorder %s642, %s643
      %p657 = scmp.eq.s32.totalorder %s40, 1
      %p658 = por %p656, %p657
      %p660 = scmp.ne.s32.totalorder %s643, %s659
      %p661 = scmp.eq.s32.totalorder %s40, 0
      %p662 = por %p660, %p661
      %s663 = ssub.s32 %s42, %s49
      %p664 = scmp.eq.s32.totalorder %s663, 0
      %s666 = sadd.s32 %s665, 1
      %s667 = scalar_select %p664, %s665, %s666
      %p670 = pneg %p664
      %p671 = scmp.eq.s32.totalorder %s34, 1
      %p672 = por %p670, %p671
      %p673 = scmp.ne.s32.totalorder %s665, %s668
      %p674 = scmp.eq.s32.totalorder %s34, 0
      %p675 = por %p673, %p674
      %p676 = scmp.ne.s32.totalorder %s665, %s668
      %p677 = scmp.eq.s32.totalorder %s39, 1
      %p678 = por %p676, %p677
      %p679 = scmp.ne.s32.totalorder %s668, %s669
      %p680 = scmp.eq.s32.totalorder %s39, 0
      %p681 = por %p679, %p680
      %p682 = scmp.ne.s32.totalorder %s668, %s669
      %p683 = scmp.eq.s32.totalorder %s40, 1
      %p684 = por %p682, %p683
      %p686 = scmp.ne.s32.totalorder %s669, %s685
      %p687 = scmp.eq.s32.totalorder %s40, 0
      %p688 = por %p686, %p687
      %s689 = ssub.s32 %s41, %s53
      %p690 = scmp.eq.s32.totalorder %s689, 0
      %s692 = sadd.s32 %s691, 1
      %s693 = scalar_select %p690, %s691, %s692
      %p696 = pneg %p690
      %p697 = scmp.eq.s32.totalorder %s34, 1
      %p698 = por %p696, %p697
      %p699 = scmp.ne.s32.totalorder %s691, %s694
      %p700 = scmp.eq.s32.totalorder %s34, 0
      %p701 = por %p699, %p700
      %p702 = scmp.ne.s32.totalorder %s691, %s694
      %p703 = scmp.eq.s32.totalorder %s39, 1
      %p704 = por %p702, %p703
      %p705 = scmp.ne.s32.totalorder %s694, %s695
      %p706 = scmp.eq.s32.totalorder %s39, 0
      %p707 = por %p705, %p706
      %p708 = scmp.ne.s32.totalorder %s694, %s695
      %p709 = scmp.eq.s32.totalorder %s40, 1
      %p710 = por %p708, %p709
      %p712 = scmp.ne.s32.totalorder %s695, %s711
      %p713 = scmp.eq.s32.totalorder %s40, 0
      %p714 = por %p712, %p713
      %p715 = scmp.le.s32.totalorder 1, %s34
      %p716 = scmp.lt.s32.totalorder %s34, 3
      %p717 = pnand %p715, %p716
      %p718 = pneg %p717
      // Predicated region
      $region9: #{tpu_custom_call.1} parent=5 // pred_check
        _
      $region10: #{tpu_custom_call.1} parent=5 // pred_check_branch
        %720 = sbr.rel (%p717) target = $region12
      $region11: #{tpu_custom_call.1} parent=5 // pred_region
        %s721 = ssub.s32 %s34, 1
        // Predicated region
        $region13: #{tpu_custom_call.1} parent=11 // pred_check
          %p722 = pneg %p72
        $region14: #{tpu_custom_call.1} parent=11 // pred_check_branch
          %724 = sbr.rel (%p722) target = $region16
        $region15: #{tpu_custom_call.1} parent=11 // pred_region
          %s725 = smul.u32 2, %s43
          %p726 = scmp.lt.s32.totalorder %s725, 1
          %s727 = scalar_select %p726, %s725, 1
          %s728 = smul.addr %s727, 8
          %s729 = scalar_lea.vmem %s0, %s728
          %s730 = smul.u32 2, %s43
        $region16: #{tpu_custom_call.1} parent=11 // pred_fallthru
          _
        // Predicated region
        $region17: #{tpu_custom_call.1} parent=11 // pred_check
          %p731 = pneg %p98
        $region18: #{tpu_custom_call.1} parent=11 // pred_check_branch
          %733 = sbr.rel (%p731) target = $region20
        $region19: #{tpu_custom_call.1} parent=11 // pred_region
          %s734 = smul.u32 2, %s43
          %p735 = scmp.lt.s32.totalorder %s734, 1
          %s736 = scalar_select %p735, %s734, 1
          %s737 = smul.addr %s736, 8
          %s738 = scalar_lea.vmem %s1, %s737
          %s739 = smul.u32 2, %s43
        $region20: #{tpu_custom_call.1} parent=11 // pred_fallthru
          _
        // Predicated region
        $region21: #{tpu_custom_call.1} parent=11 // pred_check
          %p740 = pneg %p119
        $region22: #{tpu_custom_call.1} parent=11 // pred_check_branch
          %742 = sbr.rel (%p740) target = $region24
        $region23: #{tpu_custom_call.1} parent=11 // pred_region
          _
        $region24: #{tpu_custom_call.1} parent=11 // pred_fallthru
          _
        // Predicated region
        $region25: #{tpu_custom_call.1} parent=11 // pred_check
          %p743 = pneg %p140
        $region26: #{tpu_custom_call.1} parent=11 // pred_check_branch
          %745 = sbr.rel (%p743) target = $region28
        $region27: #{tpu_custom_call.1} parent=11 // pred_region
          %747 = vsyncadd [#allocation4], 0
          %s749 = sshll.u32 %s3, 4
          %s750 = int_to_ptr.hbm [resolvable:$true] %s749
          %s751 = sshll.u32 [#allocation3], 4
          %s752 = int_to_ptr.vmem [resolvable:$true] %s751
          %754 = dma.hbm_to_vmem [thread:$0]  %s750, 16, %s752, [#allocation4]
        $region28: #{tpu_custom_call.1} parent=11 // pred_fallthru
          _
        // Predicated region
        $region29: #{tpu_custom_call.1} parent=11 // pred_check
          %p755 = pneg %p161
        $region30: #{tpu_custom_call.1} parent=11 // pred_check_branch
          %757 = sbr.rel (%p755) target = $region32
        $region31: #{tpu_custom_call.1} parent=11 // pred_region
          %759 = vsyncadd [#allocation7], 0
          %s761 = sshll.u32 %s4, 4
          %s762 = int_to_ptr.hbm [resolvable:$true] %s761
          %s763 = sshll.u32 [#allocation6], 4
          %s764 = int_to_ptr.vmem [resolvable:$true] %s763
          %766 = dma.hbm_to_vmem [thread:$0]  %s762, 16, %s764, [#allocation7]
        $region32: #{tpu_custom_call.1} parent=11 // pred_fallthru
          _
      $region12: #{tpu_custom_call.1} parent=5 // pred_fallthru
        _
      %p767 = scmp.lt.s32.totalorder %s34, 2
      // Predicated region
      $region33: #{tpu_custom_call.1} parent=5 // pred_check
        %p768 = pneg %p767
      $region34: #{tpu_custom_call.1} parent=5 // pred_check_branch
        %770 = sbr.rel (%p768) target = $region36
      $region35: #{tpu_custom_call.1} parent=5 // pred_region
        // Predicated region
        $region37: #{tpu_custom_call.1} parent=35 // pred_check
          %p771 = pneg %p181
        $region38: #{tpu_custom_call.1} parent=35 // pred_check_branch
          %773 = sbr.rel (%p771) target = $region40
        $region39: #{tpu_custom_call.1} parent=35 // pred_region
          %p774 = scmp.lt.s32.totalorder %s42, 1
          %s775 = scalar_select %p774, %s42, 1
          %s776 = smul.addr %s775, 2
          %s777 = smul.addr %s776, 4
          %s778 = scalar_lea.vmem %s5, %s777
        $region40: #{tpu_custom_call.1} parent=35 // pred_fallthru
          _
        // Predicated region
        $region41: #{tpu_custom_call.1} parent=35 // pred_check
          %p779 = pneg %p207
        $region42: #{tpu_custom_call.1} parent=35 // pred_check_branch
          %781 = sbr.rel (%p779) target = $region44
        $region43: #{tpu_custom_call.1} parent=35 // pred_region
          %s782 = sand.u32 %s34, 1
          %s783 = scalar_lea.sflag [#allocation4], %s782
          %s784 = sand.u32 %s197, 1
          %s785 = scalar_lea.vmem [#allocation8], %s784
          %787 = vsyncadd %s783, 0
          %s788 = scalar_lea.hbm %s6, %s42
          %s790 = sshll.u32 %s788, 4
          %s791 = int_to_ptr.hbm [resolvable:$true] %s790
          %s792 = sshll.u32 %s785, 4
          %s793 = int_to_ptr.vmem [resolvable:$true] %s792
          %795 = dma.hbm_to_vmem [thread:$0]  %s791, 16, %s793, %s783
        $region44: #{tpu_custom_call.1} parent=35 // pred_fallthru
          _
        // Predicated region
        $region45: #{tpu_custom_call.1} parent=35 // pred_check
          %p796 = pneg %p233
        $region46: #{tpu_custom_call.1} parent=35 // pred_check_branch
          %798 = sbr.rel (%p796) target = $region48
        $region47: #{tpu_custom_call.1} parent=35 // pred_region
          %p799 = scmp.lt.s32.totalorder %s42, 1
          %s800 = scalar_select %p799, %s42, 1
          %s801 = smul.addr %s800, 2
          %s802 = smul.addr %s801, 4
          %s803 = scalar_lea.vmem %s7, %s802
        $region48: #{tpu_custom_call.1} parent=35 // pred_fallthru
          _
        // Predicated region
        $region49: #{tpu_custom_call.1} parent=35 // pred_check
          %p804 = pneg %p259
        $region50: #{tpu_custom_call.1} parent=35 // pred_check_branch
          %806 = sbr.rel (%p804) target = $region52
        $region51: #{tpu_custom_call.1} parent=35 // pred_region
          %s807 = sand.u32 %s34, 1
          %s808 = scalar_lea.sflag [#allocation4], %s807
          %s809 = sand.u32 %s249, 1
          %s810 = scalar_lea.vmem [#allocation9], %s809
          %812 = vsyncadd %s808, 0
          %s813 = scalar_lea.hbm %s8, %s42
          %s815 = sshll.u32 %s813, 4
          %s816 = int_to_ptr.hbm [resolvable:$true] %s815
          %s817 = sshll.u32 %s810, 4
          %s818 = int_to_ptr.vmem [resolvable:$true] %s817
          %820 = dma.hbm_to_vmem [thread:$0]  %s816, 16, %s818, %s808
        $region52: #{tpu_custom_call.1} parent=35 // pred_fallthru
          _
        // Predicated region
        $region53: #{tpu_custom_call.1} parent=35 // pred_check
          %p821 = pneg %p285
        $region54: #{tpu_custom_call.1} parent=35 // pred_check_branch
          %823 = sbr.rel (%p821) target = $region56
        $region55: #{tpu_custom_call.1} parent=35 // pred_region
          %s824 = sand.u32 %s34, 1
          %s825 = scalar_lea.sflag [#allocation4], %s824
          %s826 = sand.u32 %s275, 1
          %s827 = smul.addr %s826, 8
          %s828 = scalar_lea.vmem [#allocation10], %s827
          %830 = vsyncadd %s825, 0
          %s831 = smul.addr %s42, 2
          %s832 = smul.addr %s831, 4
          %s833 = scalar_lea.hbm %s9, %s832
          %s834 = sshll.u32 %s833, 4
          %s835 = int_to_ptr.hbm [resolvable:$true] %s834
          %s836 = sshll.u32 %s828, 4
          %s837 = int_to_ptr.vmem [resolvable:$true] %s836
          %842 = dma.hbm_to_vmem [thread:$0]  %s835, 128, %s837, %s825, 64, 64, 4
        $region56: #{tpu_custom_call.1} parent=35 // pred_fallthru
          _
        // Predicated region
        $region57: #{tpu_custom_call.1} parent=35 // pred_check
          %p843 = pneg %p311
        $region58: #{tpu_custom_call.1} parent=35 // pred_check_branch
          %845 = sbr.rel (%p843) target = $region60
        $region59: #{tpu_custom_call.1} parent=35 // pred_region
          %s846 = sand.u32 %s34, 1
          %s847 = scalar_lea.sflag [#allocation4], %s846
          %s848 = sand.u32 %s301, 1
          %s849 = scalar_lea.vmem [#allocation11], %s848
          %851 = vsyncadd %s847, 0
          %s852 = scalar_lea.hbm %s10, %s42
          %s854 = sshll.u32 %s852, 4
          %s855 = int_to_ptr.hbm [resolvable:$true] %s854
          %s856 = sshll.u32 %s849, 4
          %s857 = int_to_ptr.vmem [resolvable:$true] %s856
          %859 = dma.hbm_to_vmem [thread:$0]  %s855, 16, %s857, %s847
        $region60: #{tpu_custom_call.1} parent=35 // pred_fallthru
          _
        // Predicated region
        $region61: #{tpu_custom_call.1} parent=35 // pred_check
          %p860 = pneg %p337
        $region62: #{tpu_custom_call.1} parent=35 // pred_check_branch
          %862 = sbr.rel (%p860) target = $region64
        $region63: #{tpu_custom_call.1} parent=35 // pred_region
          %s863 = sand.u32 %s34, 1
          %s864 = scalar_lea.sflag [#allocation4], %s863
          %s865 = sand.u32 %s327, 1
          %s866 = smul.addr %s865, 8
          %s867 = scalar_lea.vmem [#allocation12], %s866
          %869 = vsyncadd %s864, 0
          %s870 = smul.addr %s42, 2
          %s871 = smul.addr %s870, 4
          %s872 = scalar_lea.hbm %s11, %s871
          %s873 = sshll.u32 %s872, 4
          %s874 = int_to_ptr.hbm [resolvable:$true] %s873
          %s875 = sshll.u32 %s867, 4
          %s876 = int_to_ptr.vmem [resolvable:$true] %s875
          %881 = dma.hbm_to_vmem [thread:$0]  %s874, 128, %s876, %s864, 64, 64, 4
        $region64: #{tpu_custom_call.1} parent=35 // pred_fallthru
          _
        // Predicated region
        $region65: #{tpu_custom_call.1} parent=35 // pred_check
          %p882 = pneg %p363
        $region66: #{tpu_custom_call.1} parent=35 // pred_check_branch
          %884 = sbr.rel (%p882) target = $region68
        $region67: #{tpu_custom_call.1} parent=35 // pred_region
          %s885 = sand.u32 %s34, 1
          %s886 = scalar_lea.sflag [#allocation4], %s885
          %s887 = sand.u32 %s353, 1
          %s888 = scalar_lea.vmem [#allocation13], %s887
          %890 = vsyncadd %s886, 0
          %s891 = scalar_lea.hbm %s12, %s42
          %s893 = sshll.u32 %s891, 4
          %s894 = int_to_ptr.hbm [resolvable:$true] %s893
          %s895 = sshll.u32 %s888, 4
          %s896 = int_to_ptr.vmem [resolvable:$true] %s895
          %898 = dma.hbm_to_vmem [thread:$0]  %s894, 16, %s896, %s886
        $region68: #{tpu_custom_call.1} parent=35 // pred_fallthru
          _
        // Predicated region
        $region69: #{tpu_custom_call.1} parent=35 // pred_check
          %p899 = pneg %p389
        $region70: #{tpu_custom_call.1} parent=35 // pred_check_branch
          %901 = sbr.rel (%p899) target = $region72
        $region71: #{tpu_custom_call.1} parent=35 // pred_region
          %s902 = sand.u32 %s34, 1
          %s903 = scalar_lea.sflag [#allocation4], %s902
          %s904 = sand.u32 %s379, 1
          %s905 = smul.addr %s904, 8
          %s906 = scalar_lea.vmem [#allocation14], %s905
          %908 = vsyncadd %s903, 0
          %s909 = smul.addr %s42, 2
          %s910 = smul.addr %s909, 4
          %s911 = scalar_lea.hbm %s13, %s910
          %s912 = sshll.u32 %s911, 4
          %s913 = int_to_ptr.hbm [resolvable:$true] %s912
          %s914 = sshll.u32 %s906, 4
          %s915 = int_to_ptr.vmem [resolvable:$true] %s914
          %920 = dma.hbm_to_vmem [thread:$0]  %s913, 128, %s915, %s903, 64, 64, 4
        $region72: #{tpu_custom_call.1} parent=35 // pred_fallthru
          _
        // Predicated region
        $region73: #{tpu_custom_call.1} parent=35 // pred_check
          %p921 = pneg %p415
        $region74: #{tpu_custom_call.1} parent=35 // pred_check_branch
          %923 = sbr.rel (%p921) target = $region76
        $region75: #{tpu_custom_call.1} parent=35 // pred_region
          %s924 = sand.u32 %s34, 1
          %s925 = scalar_lea.sflag [#allocation4], %s924
          %s926 = sand.u32 %s405, 1
          %s927 = scalar_lea.vmem [#allocation15], %s926
          %929 = vsyncadd %s925, 0
          %s930 = scalar_lea.hbm %s14, %s42
          %s932 = sshll.u32 %s930, 4
          %s933 = int_to_ptr.hbm [resolvable:$true] %s932
          %s934 = sshll.u32 %s927, 4
          %s935 = int_to_ptr.vmem [resolvable:$true] %s934
          %937 = dma.hbm_to_vmem [thread:$0]  %s933, 16, %s935, %s925
        $region76: #{tpu_custom_call.1} parent=35 // pred_fallthru
          _
        // Predicated region
        $region77: #{tpu_custom_call.1} parent=35 // pred_check
          %p938 = pneg %p441
        $region78: #{tpu_custom_call.1} parent=35 // pred_check_branch
          %940 = sbr.rel (%p938) target = $region80
        $region79: #{tpu_custom_call.1} parent=35 // pred_region
          %s941 = sand.u32 %s34, 1
          %s942 = scalar_lea.sflag [#allocation4], %s941
          %s943 = sand.u32 %s431, 1
          %s944 = smul.addr %s943, 8
          %s945 = scalar_lea.vmem [#allocation16], %s944
          %947 = vsyncadd %s942, 0
          %s948 = smul.addr %s42, 2
          %s949 = smul.addr %s948, 4
          %s950 = scalar_lea.hbm %s15, %s949
          %s951 = sshll.u32 %s950, 4
          %s952 = int_to_ptr.hbm [resolvable:$true] %s951
          %s953 = sshll.u32 %s945, 4
          %s954 = int_to_ptr.vmem [resolvable:$true] %s953
          %959 = dma.hbm_to_vmem [thread:$0]  %s952, 128, %s954, %s942, 64, 64, 4
        $region80: #{tpu_custom_call.1} parent=35 // pred_fallthru
          _
        // Predicated region
        $region81: #{tpu_custom_call.1} parent=35 // pred_check
          %p960 = pneg %p467
        $region82: #{tpu_custom_call.1} parent=35 // pred_check_branch
          %962 = sbr.rel (%p960) target = $region84
        $region83: #{tpu_custom_call.1} parent=35 // pred_region
          %s963 = sand.u32 %s34, 1
          %s964 = scalar_lea.sflag [#allocation4], %s963
          %s965 = sand.u32 %s457, 1
          %s966 = scalar_lea.vmem [#allocation17], %s965
          %968 = vsyncadd %s964, 0
          %s969 = scalar_lea.hbm %s16, %s42
          %s971 = sshll.u32 %s969, 4
          %s972 = int_to_ptr.hbm [resolvable:$true] %s971
          %s973 = sshll.u32 %s966, 4
          %s974 = int_to_ptr.vmem [resolvable:$true] %s973
          %976 = dma.hbm_to_vmem [thread:$0]  %s972, 16, %s974, %s964
        $region84: #{tpu_custom_call.1} parent=35 // pred_fallthru
          _
        // Predicated region
        $region85: #{tpu_custom_call.1} parent=35 // pred_check
          %p977 = pneg %p493
        $region86: #{tpu_custom_call.1} parent=35 // pred_check_branch
          %979 = sbr.rel (%p977) target = $region88
        $region87: #{tpu_custom_call.1} parent=35 // pred_region
          %p980 = scmp.lt.s32.totalorder %s42, 1
          %s981 = scalar_select %p980, %s42, 1
          %s982 = smul.addr %s981, 4
          %s983 = smul.addr %s982, 4
          %s984 = scalar_lea.vmem %s17, %s983
        $region88: #{tpu_custom_call.1} parent=35 // pred_fallthru
          _
        // Predicated region
        $region89: #{tpu_custom_call.1} parent=35 // pred_check
          %p985 = pneg %p519
        $region90: #{tpu_custom_call.1} parent=35 // pred_check_branch
          %987 = sbr.rel (%p985) target = $region92
        $region91: #{tpu_custom_call.1} parent=35 // pred_region
          %p988 = scmp.lt.s32.totalorder %s42, 1
          %s989 = scalar_select %p988, %s42, 1
          %s990 = scalar_lea.vmem %s18, %s989
        $region92: #{tpu_custom_call.1} parent=35 // pred_fallthru
          _
        // Predicated region
        $region93: #{tpu_custom_call.1} parent=35 // pred_check
          %p991 = pneg %p545
        $region94: #{tpu_custom_call.1} parent=35 // pred_check_branch
          %993 = sbr.rel (%p991) target = $region96
        $region95: #{tpu_custom_call.1} parent=35 // pred_region
          %s994 = sand.u32 %s34, 1
          %s995 = scalar_lea.sflag [#allocation4], %s994
          %s996 = sand.u32 %s535, 1
          %s997 = scalar_lea.vmem [#allocation18], %s996
          %999 = vsyncadd %s995, 0
          %s1000 = scalar_lea.hbm %s19, %s42
          %s1002 = sshll.u32 %s1000, 4
          %s1003 = int_to_ptr.hbm [resolvable:$true] %s1002
          %s1004 = sshll.u32 %s997, 4
          %s1005 = int_to_ptr.vmem [resolvable:$true] %s1004
          %1007 = dma.hbm_to_vmem [thread:$0]  %s1003, 16, %s1005, %s995
        $region96: #{tpu_custom_call.1} parent=35 // pred_fallthru
          _
        // Predicated region
        $region97: #{tpu_custom_call.1} parent=35 // pred_check
          %p1008 = pneg %p571
        $region98: #{tpu_custom_call.1} parent=35 // pred_check_branch
          %1010 = sbr.rel (%p1008) target = $region100
        $region99: #{tpu_custom_call.1} parent=35 // pred_region
          %p1011 = scmp.lt.s32.totalorder %s42, 1
          %s1012 = scalar_select %p1011, %s42, 1
          %s1013 = scalar_lea.vmem %s20, %s1012
        $region100: #{tpu_custom_call.1} parent=35 // pred_fallthru
          _
        // Predicated region
        $region101: #{tpu_custom_call.1} parent=35 // pred_check
          %p1014 = pneg %p597
        $region102: #{tpu_custom_call.1} parent=35 // pred_check_branch
          %1016 = sbr.rel (%p1014) target = $region104
        $region103: #{tpu_custom_call.1} parent=35 // pred_region
          %s1017 = sand.u32 %s34, 1
          %s1018 = scalar_lea.sflag [#allocation4], %s1017
          %s1019 = sand.u32 %s587, 1
          %s1020 = scalar_lea.vmem [#allocation19], %s1019
          %1022 = vsyncadd %s1018, 0
          %s1023 = scalar_lea.hbm %s21, %s42
          %s1025 = sshll.u32 %s1023, 4
          %s1026 = int_to_ptr.hbm [resolvable:$true] %s1025
          %s1027 = sshll.u32 %s1020, 4
          %s1028 = int_to_ptr.vmem [resolvable:$true] %s1027
          %1030 = dma.hbm_to_vmem [thread:$0]  %s1026, 16, %s1028, %s1018
        $region104: #{tpu_custom_call.1} parent=35 // pred_fallthru
          _
        // Predicated region
        $region105: #{tpu_custom_call.1} parent=35 // pred_check
          %p1031 = pneg %p623
        $region106: #{tpu_custom_call.1} parent=35 // pred_check_branch
          %1033 = sbr.rel (%p1031) target = $region108
        $region107: #{tpu_custom_call.1} parent=35 // pred_region
          %p1034 = scmp.lt.s32.totalorder %s42, 1
          %s1035 = scalar_select %p1034, %s42, 1
          %s1036 = scalar_lea.vmem %s22, %s1035
        $region108: #{tpu_custom_call.1} parent=35 // pred_fallthru
          _
        // Predicated region
        $region109: #{tpu_custom_call.1} parent=35 // pred_check
          %p1037 = pneg %p649
        $region110: #{tpu_custom_call.1} parent=35 // pred_check_branch
          %1039 = sbr.rel (%p1037) target = $region112
        $region111: #{tpu_custom_call.1} parent=35 // pred_region
          %s1040 = sand.u32 %s34, 1
          %s1041 = scalar_lea.sflag [#allocation4], %s1040
          %s1042 = sand.u32 %s639, 1
          %s1043 = scalar_lea.vmem [#allocation20], %s1042
          %1045 = vsyncadd %s1041, 0
          %s1046 = scalar_lea.hbm %s23, %s42
          %s1048 = sshll.u32 %s1046, 4
          %s1049 = int_to_ptr.hbm [resolvable:$true] %s1048
          %s1050 = sshll.u32 %s1043, 4
          %s1051 = int_to_ptr.vmem [resolvable:$true] %s1050
          %1053 = dma.hbm_to_vmem [thread:$0]  %s1049, 16, %s1051, %s1041
        $region112: #{tpu_custom_call.1} parent=35 // pred_fallthru
          _
        // Predicated region
        $region113: #{tpu_custom_call.1} parent=35 // pred_check
          %p1054 = pneg %p675
        $region114: #{tpu_custom_call.1} parent=35 // pred_check_branch
          %1056 = sbr.rel (%p1054) target = $region116
        $region115: #{tpu_custom_call.1} parent=35 // pred_region
          %p1057 = scmp.lt.s32.totalorder %s42, 1
          %s1058 = scalar_select %p1057, %s42, 1
          %s1059 = scalar_lea.vmem %s24, %s1058
        $region116: #{tpu_custom_call.1} parent=35 // pred_fallthru
          _
      $region36: #{tpu_custom_call.1} parent=5 // pred_fallthru
        _
      %p1060 = scmp.le.s32.totalorder 1, %s34
      %p1061 = scmp.lt.s32.totalorder %s34, 3
      %p1062 = pnand %p1060, %p1061
      %p1063 = pneg %p1062
      // Predicated region
      $region117: #{tpu_custom_call.1} parent=5 // pred_check
        _
      $region118: #{tpu_custom_call.1} parent=5 // pred_check_branch
        %1065 = sbr.rel (%p1062) target = $region120
      $region119: #{tpu_custom_call.1} parent=5 // pred_region
        %s1066 = ssub.s32 %s34, 1
        // Predicated region
        $region121: #{tpu_custom_call.1} parent=119 // pred_check
          %p1067 = pneg %p140
        $region122: #{tpu_custom_call.1} parent=119 // pred_check_branch
          %1069 = sbr.rel (%p1067) target = $region124
        $region123: #{tpu_custom_call.1} parent=119 // pred_region
          %1071 = dma.done [#allocation4], 16
        $region124: #{tpu_custom_call.1} parent=119 // pred_fallthru
          _
        // Predicated region
        $region125: #{tpu_custom_call.1} parent=119 // pred_check
          %p1072 = pneg %p161
        $region126: #{tpu_custom_call.1} parent=119 // pred_check_branch
          %1074 = sbr.rel (%p1072) target = $region128
        $region127: #{tpu_custom_call.1} parent=119 // pred_region
          %1076 = dma.done [#allocation7], 16
        $region128: #{tpu_custom_call.1} parent=119 // pred_fallthru
          _
        %s1077 = sand.u32 %s39, 1
        %s1078 = scalar_lea.sflag [#allocation4], %s1077
        %s1079 = sand.u32 %s200, 1
        %s1080 = scalar_lea.vmem [#allocation8], %s1079
        // Predicated region
        $region129: #{tpu_custom_call.1} parent=119 // pred_check
          %p1081 = pneg %p213
        $region130: #{tpu_custom_call.1} parent=119 // pred_check_branch
          %1083 = sbr.rel (%p1081) target = $region132
        $region131: #{tpu_custom_call.1} parent=119 // pred_region
          %1085 = dma.done %s1078, 16
        $region132: #{tpu_custom_call.1} parent=119 // pred_fallthru
          _
        %s1086 = sand.u32 %s39, 1
        %s1087 = scalar_lea.sflag [#allocation4], %s1086
        %s1088 = sand.u32 %s252, 1
        %s1089 = scalar_lea.vmem [#allocation9], %s1088
        // Predicated region
        $region133: #{tpu_custom_call.1} parent=119 // pred_check
          %p1090 = pneg %p265
        $region134: #{tpu_custom_call.1} parent=119 // pred_check_branch
          %1092 = sbr.rel (%p1090) target = $region136
        $region135: #{tpu_custom_call.1} parent=119 // pred_region
          %1094 = dma.done %s1087, 16
        $region136: #{tpu_custom_call.1} parent=119 // pred_fallthru
          _
        %s1095 = sand.u32 %s39, 1
        %s1096 = scalar_lea.sflag [#allocation4], %s1095
        %s1097 = sand.u32 %s278, 1
        %s1098 = smul.addr %s1097, 8
        %s1099 = scalar_lea.vmem [#allocation10], %s1098
        // Predicated region
        $region137: #{tpu_custom_call.1} parent=119 // pred_check
          %p1100 = pneg %p291
        $region138: #{tpu_custom_call.1} parent=119 // pred_check_branch
          %1102 = sbr.rel (%p1100) target = $region140
        $region139: #{tpu_custom_call.1} parent=119 // pred_region
          %1104 = dma.done %s1096, 128
        $region140: #{tpu_custom_call.1} parent=119 // pred_fallthru
          _
        %s1105 = sand.u32 %s39, 1
        %s1106 = scalar_lea.sflag [#allocation4], %s1105
        %s1107 = sand.u32 %s304, 1
        %s1108 = scalar_lea.vmem [#allocation11], %s1107
        // Predicated region
        $region141: #{tpu_custom_call.1} parent=119 // pred_check
          %p1109 = pneg %p317
        $region142: #{tpu_custom_call.1} parent=119 // pred_check_branch
          %1111 = sbr.rel (%p1109) target = $region144
        $region143: #{tpu_custom_call.1} parent=119 // pred_region
          %1113 = dma.done %s1106, 16
        $region144: #{tpu_custom_call.1} parent=119 // pred_fallthru
          _
        %s1114 = sand.u32 %s39, 1
        %s1115 = scalar_lea.sflag [#allocation4], %s1114
        %s1116 = sand.u32 %s330, 1
        %s1117 = smul.addr %s1116, 8
        %s1118 = scalar_lea.vmem [#allocation12], %s1117
        // Predicated region
        $region145: #{tpu_custom_call.1} parent=119 // pred_check
          %p1119 = pneg %p343
        $region146: #{tpu_custom_call.1} parent=119 // pred_check_branch
          %1121 = sbr.rel (%p1119) target = $region148
        $region147: #{tpu_custom_call.1} parent=119 // pred_region
          %1123 = dma.done %s1115, 128
        $region148: #{tpu_custom_call.1} parent=119 // pred_fallthru
          _
        %s1124 = sand.u32 %s39, 1
        %s1125 = scalar_lea.sflag [#allocation4], %s1124
        %s1126 = sand.u32 %s356, 1
        %s1127 = scalar_lea.vmem [#allocation13], %s1126
        // Predicated region
        $region149: #{tpu_custom_call.1} parent=119 // pred_check
          %p1128 = pneg %p369
        $region150: #{tpu_custom_call.1} parent=119 // pred_check_branch
          %1130 = sbr.rel (%p1128) target = $region152
        $region151: #{tpu_custom_call.1} parent=119 // pred_region
          %1132 = dma.done %s1125, 16
        $region152: #{tpu_custom_call.1} parent=119 // pred_fallthru
          _
        %s1133 = sand.u32 %s39, 1
        %s1134 = scalar_lea.sflag [#allocation4], %s1133
        %s1135 = sand.u32 %s382, 1
        %s1136 = smul.addr %s1135, 8
        %s1137 = scalar_lea.vmem [#allocation14], %s1136
        // Predicated region
        $region153: #{tpu_custom_call.1} parent=119 // pred_check
          %p1138 = pneg %p395
        $region154: #{tpu_custom_call.1} parent=119 // pred_check_branch
          %1140 = sbr.rel (%p1138) target = $region156
        $region155: #{tpu_custom_call.1} parent=119 // pred_region
          %1142 = dma.done %s1134, 128
        $region156: #{tpu_custom_call.1} parent=119 // pred_fallthru
          _
        %s1143 = sand.u32 %s39, 1
        %s1144 = scalar_lea.sflag [#allocation4], %s1143
        %s1145 = sand.u32 %s408, 1
        %s1146 = scalar_lea.vmem [#allocation15], %s1145
        // Predicated region
        $region157: #{tpu_custom_call.1} parent=119 // pred_check
          %p1147 = pneg %p421
        $region158: #{tpu_custom_call.1} parent=119 // pred_check_branch
          %1149 = sbr.rel (%p1147) target = $region160
        $region159: #{tpu_custom_call.1} parent=119 // pred_region
          %1151 = dma.done %s1144, 16
        $region160: #{tpu_custom_call.1} parent=119 // pred_fallthru
          _
        %s1152 = sand.u32 %s39, 1
        %s1153 = scalar_lea.sflag [#allocation4], %s1152
        %s1154 = sand.u32 %s434, 1
        %s1155 = smul.addr %s1154, 8
        %s1156 = scalar_lea.vmem [#allocation16], %s1155
        // Predicated region
        $region161: #{tpu_custom_call.1} parent=119 // pred_check
          %p1157 = pneg %p447
        $region162: #{tpu_custom_call.1} parent=119 // pred_check_branch
          %1159 = sbr.rel (%p1157) target = $region164
        $region163: #{tpu_custom_call.1} parent=119 // pred_region
          %1161 = dma.done %s1153, 128
        $region164: #{tpu_custom_call.1} parent=119 // pred_fallthru
          _
        %s1162 = sand.u32 %s39, 1
        %s1163 = scalar_lea.sflag [#allocation4], %s1162
        %s1164 = sand.u32 %s460, 1
        %s1165 = scalar_lea.vmem [#allocation17], %s1164
        // Predicated region
        $region165: #{tpu_custom_call.1} parent=119 // pred_check
          %p1166 = pneg %p473
        $region166: #{tpu_custom_call.1} parent=119 // pred_check_branch
          %1168 = sbr.rel (%p1166) target = $region168
        $region167: #{tpu_custom_call.1} parent=119 // pred_region
          %1170 = dma.done %s1163, 16
        $region168: #{tpu_custom_call.1} parent=119 // pred_fallthru
          _
        %s1171 = sand.u32 %s39, 1
        %s1172 = scalar_lea.sflag [#allocation4], %s1171
        %s1173 = sand.u32 %s538, 1
        %s1174 = scalar_lea.vmem [#allocation18], %s1173
        // Predicated region
        $region169: #{tpu_custom_call.1} parent=119 // pred_check
          %p1175 = pneg %p551
        $region170: #{tpu_custom_call.1} parent=119 // pred_check_branch
          %1177 = sbr.rel (%p1175) target = $region172
        $region171: #{tpu_custom_call.1} parent=119 // pred_region
          %1179 = dma.done %s1172, 16
        $region172: #{tpu_custom_call.1} parent=119 // pred_fallthru
          _
        %s1180 = sand.u32 %s39, 1
        %s1181 = scalar_lea.sflag [#allocation4], %s1180
        %s1182 = sand.u32 %s590, 1
        %s1183 = scalar_lea.vmem [#allocation19], %s1182
        // Predicated region
        $region173: #{tpu_custom_call.1} parent=119 // pred_check
          %p1184 = pneg %p603
        $region174: #{tpu_custom_call.1} parent=119 // pred_check_branch
          %1186 = sbr.rel (%p1184) target = $region176
        $region175: #{tpu_custom_call.1} parent=119 // pred_region
          %1188 = dma.done %s1181, 16
        $region176: #{tpu_custom_call.1} parent=119 // pred_fallthru
          _
        %s1189 = sand.u32 %s39, 1
        %s1190 = scalar_lea.sflag [#allocation4], %s1189
        %s1191 = sand.u32 %s642, 1
        %s1192 = scalar_lea.vmem [#allocation20], %s1191
        // Predicated region
        $region177: #{tpu_custom_call.1} parent=119 // pred_check
          %p1193 = pneg %p655
        $region178: #{tpu_custom_call.1} parent=119 // pred_check_branch
          %1195 = sbr.rel (%p1193) target = $region180
        $region179: #{tpu_custom_call.1} parent=119 // pred_region
          %1197 = dma.done %s1190, 16
        $region180: #{tpu_custom_call.1} parent=119 // pred_fallthru
          _
        %s1198 = smul.u32 2, %s43
        %p1199 = scmp.lt.s32.totalorder %s1198, 1
        %s1200 = scalar_select %p1199, %s1198, 1
        %s1201 = smul.addr %s1200, 8
        %s1202 = scalar_lea.vmem %s0, %s1201
        %p1203 = pneg %p72
        %p1204 = pneg %p69
        %s1205 = smul.u32 2, %s43
        %p1206 = scmp.lt.s32.totalorder %s1205, 1
        %s1207 = scalar_select %p1206, %s1205, 1
        %s1208 = smul.addr %s1207, 8
        %s1209 = scalar_lea.vmem %s1, %s1208
        %p1210 = pneg %p98
        %p1211 = pneg %p95
        %p1212 = pneg %p119
        %p1213 = pneg %p116
        %p1214 = pneg %p140
        %p1215 = pneg %p137
        %p1216 = pneg %p161
        %p1217 = pneg %p158
        %p1218 = scmp.lt.s32.totalorder %s44, 1
        %s1219 = scalar_select %p1218, %s44, 1
        %s1220 = smul.addr %s1219, 2
        %s1221 = smul.addr %s1220, 4
        %s1222 = scalar_lea.vmem %s5, %s1221
        %p1223 = pneg %p187
        %p1224 = pneg %p184
        %s1225 = sand.u32 %s39, 1
        %s1226 = scalar_lea.sflag [#allocation4], %s1225
        %s1227 = sand.u32 %s200, 1
        %s1228 = scalar_lea.vmem [#allocation8], %s1227
        %p1229 = pneg %p213
        %p1230 = pneg %p210
        %p1231 = scmp.lt.s32.totalorder %s44, 1
        %s1232 = scalar_select %p1231, %s44, 1
        %s1233 = smul.addr %s1232, 2
        %s1234 = smul.addr %s1233, 4
        %s1235 = scalar_lea.vmem %s7, %s1234
        %p1236 = pneg %p239
        %p1237 = pneg %p236
        %s1238 = sand.u32 %s39, 1
        %s1239 = scalar_lea.sflag [#allocation4], %s1238
        %s1240 = sand.u32 %s252, 1
        %s1241 = scalar_lea.vmem [#allocation9], %s1240
        %p1242 = pneg %p265
        %p1243 = pneg %p262
        %s1244 = sand.u32 %s39, 1
        %s1245 = scalar_lea.sflag [#allocation4], %s1244
        %s1246 = sand.u32 %s278, 1
        %s1247 = smul.addr %s1246, 8
        %s1248 = scalar_lea.vmem [#allocation10], %s1247
        %p1249 = pneg %p291
        %p1250 = pneg %p288
        %s1251 = sand.u32 %s39, 1
        %s1252 = scalar_lea.sflag [#allocation4], %s1251
        %s1253 = sand.u32 %s304, 1
        %s1254 = scalar_lea.vmem [#allocation11], %s1253
        %p1255 = pneg %p317
        %p1256 = pneg %p314
        %s1257 = sand.u32 %s39, 1
        %s1258 = scalar_lea.sflag [#allocation4], %s1257
        %s1259 = sand.u32 %s330, 1
        %s1260 = smul.addr %s1259, 8
        %s1261 = scalar_lea.vmem [#allocation12], %s1260
        %p1262 = pneg %p343
        %p1263 = pneg %p340
        %s1264 = sand.u32 %s39, 1
        %s1265 = scalar_lea.sflag [#allocation4], %s1264
        %s1266 = sand.u32 %s356, 1
        %s1267 = scalar_lea.vmem [#allocation13], %s1266
        %p1268 = pneg %p369
        %p1269 = pneg %p366
        %s1270 = sand.u32 %s39, 1
        %s1271 = scalar_lea.sflag [#allocation4], %s1270
        %s1272 = sand.u32 %s382, 1
        %s1273 = smul.addr %s1272, 8
        %s1274 = scalar_lea.vmem [#allocation14], %s1273
        %p1275 = pneg %p395
        %p1276 = pneg %p392
        %s1277 = sand.u32 %s39, 1
        %s1278 = scalar_lea.sflag [#allocation4], %s1277
        %s1279 = sand.u32 %s408, 1
        %s1280 = scalar_lea.vmem [#allocation15], %s1279
        %p1281 = pneg %p421
        %p1282 = pneg %p418
        %s1283 = sand.u32 %s39, 1
        %s1284 = scalar_lea.sflag [#allocation4], %s1283
        %s1285 = sand.u32 %s434, 1
        %s1286 = smul.addr %s1285, 8
        %s1287 = scalar_lea.vmem [#allocation16], %s1286
        %p1288 = pneg %p447
        %p1289 = pneg %p444
        %s1290 = sand.u32 %s39, 1
        %s1291 = scalar_lea.sflag [#allocation4], %s1290
        %s1292 = sand.u32 %s460, 1
        %s1293 = scalar_lea.vmem [#allocation17], %s1292
        %p1294 = pneg %p473
        %p1295 = pneg %p470
        %p1296 = scmp.lt.s32.totalorder %s44, 1
        %s1297 = scalar_select %p1296, %s44, 1
        %s1298 = smul.addr %s1297, 4
        %s1299 = smul.addr %s1298, 4
        %s1300 = scalar_lea.vmem %s17, %s1299
        %p1301 = pneg %p499
        %p1302 = pneg %p496
        %p1303 = scmp.lt.s32.totalorder %s44, 1
        %s1304 = scalar_select %p1303, %s44, 1
        %s1305 = scalar_lea.vmem %s18, %s1304
        %p1306 = pneg %p525
        %p1307 = pneg %p522
        %s1308 = sand.u32 %s39, 1
        %s1309 = scalar_lea.sflag [#allocation4], %s1308
        %s1310 = sand.u32 %s538, 1
        %s1311 = scalar_lea.vmem [#allocation18], %s1310
        %p1312 = pneg %p551
        %p1313 = pneg %p548
        %p1314 = scmp.lt.s32.totalorder %s44, 1
        %s1315 = scalar_select %p1314, %s44, 1
        %s1316 = scalar_lea.vmem %s20, %s1315
        %p1317 = pneg %p577
        %p1318 = pneg %p574
        %s1319 = sand.u32 %s39, 1
        %s1320 = scalar_lea.sflag [#allocation4], %s1319
        %s1321 = sand.u32 %s590, 1
        %s1322 = scalar_lea.vmem [#allocation19], %s1321
        %p1323 = pneg %p603
        %p1324 = pneg %p600
        %p1325 = scmp.lt.s32.totalorder %s44, 1
        %s1326 = scalar_select %p1325, %s44, 1
        %s1327 = scalar_lea.vmem %s22, %s1326
        %p1328 = pneg %p629
        %p1329 = pneg %p626
        %s1330 = sand.u32 %s39, 1
        %s1331 = scalar_lea.sflag [#allocation4], %s1330
        %s1332 = sand.u32 %s642, 1
        %s1333 = scalar_lea.vmem [#allocation20], %s1332
        %p1334 = pneg %p655
        %p1335 = pneg %p652
        %p1336 = scmp.lt.s32.totalorder %s44, 1
        %s1337 = scalar_select %p1336, %s44, 1
        %s1338 = scalar_lea.vmem %s24, %s1337
        %p1339 = pneg %p681
        %p1340 = pneg %p678
        %p1341 = pneg %p707
        %p1342 = pneg %p704
        %s1343 = smul.u32 2, %s43
        %p1344 = scmp.lt.s32.totalorder %s1343, 1
        %s1345 = scalar_select %p1344, %s1343, 1
        %s1346 = smul.addr %s1345, 8
        %s1347 = scalar_lea.vmem %s0, %s1346
        %s1348 = smul.u32 2, %s43
        %s1349 = smul.u32 2, %s43
        %p1350 = scmp.lt.s32.totalorder %s1349, 1
        %s1351 = scalar_select %p1350, %s1349, 1
        %s1352 = smul.addr %s1351, 8
        %s1353 = scalar_lea.vmem %s1, %s1352
        %s1354 = smul.u32 2, %s43
        %p1355 = scmp.lt.s32.totalorder %s44, 1
        %s1356 = scalar_select %p1355, %s44, 1
        %s1357 = smul.addr %s1356, 2
        %s1358 = smul.addr %s1357, 4
        %s1359 = scalar_lea.vmem %s5, %s1358
        %p1360 = scmp.lt.s32.totalorder %s44, 1
        %s1361 = scalar_select %p1360, %s44, 1
        %s1362 = smul.addr %s1361, 2
        %s1363 = smul.addr %s1362, 4
        %s1364 = scalar_lea.vmem %s7, %s1363
        %p1365 = scmp.lt.s32.totalorder %s44, 1
        %s1366 = scalar_select %p1365, %s44, 1
        %s1367 = smul.addr %s1366, 4
        %s1368 = smul.addr %s1367, 4
        %s1369 = scalar_lea.vmem %s17, %s1368
        %p1370 = scmp.lt.s32.totalorder %s44, 1
        %s1371 = scalar_select %p1370, %s44, 1
        %s1372 = scalar_lea.vmem %s18, %s1371
        %p1373 = scmp.lt.s32.totalorder %s44, 1
        %s1374 = scalar_select %p1373, %s44, 1
        %s1375 = scalar_lea.vmem %s20, %s1374
        %p1376 = scmp.lt.s32.totalorder %s44, 1
        %s1377 = scalar_select %p1376, %s44, 1
        %s1378 = scalar_lea.vmem %s22, %s1377
        %p1379 = scmp.lt.s32.totalorder %s44, 1
        %s1380 = scalar_select %p1379, %s44, 1
        %s1381 = scalar_lea.vmem %s24, %s1380
        %s1382 = smul.u32 2, %s43
        %p1384 = scmp.eq.s32.totalorder %s44, 0
        // Predicated region
        $region181: #{tpu_custom_call.1} parent=119 // pred_check
          %p1385 = pneg %p1384
        $region182: #{tpu_custom_call.1} parent=119 // pred_check_branch
          %1387 = sbr.rel (%p1385) target = $region184
        $region183: #{tpu_custom_call.1} parent=119 // pred_region
          %v1388 = vld [vmem:[%s1347] sm:$0xff]
          %v1389 = vld [vmem:[%s1347 + $0x8] sm:$0xff]
          %v1390 = vld [vmem:[#allocation3] sm:$0x1]
          %1392 = vset.pattern.permute.xlu0 0
          %1393 = vperm.xlu0 %1392, %v1388
          %v1394 = vpop.permute.xlu0 %1393
          %1397 = vset.pattern.permute.xlu0 0
          %1398 = vperm.xlu0 %1397, %v1389
          %v1399 = vpop.permute.xlu0 %1398
          %v1402 = vperm.slane %v1390, 0
          %v1404 = vmul.f32 %v1394, %v1402
          %v1405 = vmul.f32 %v1399, %v1402
          %v1406 = vld [vmem:[#allocation6] sm:$0x1]
          %v1408 = vperm.slane %v1406, 0
          %v1410 = vadd.f32 %v1404, %v1408
          %v1411 = vadd.f32 %v1405, %v1408
          %v1412 = vmul.f32 %v1410, 4.0
          %v1413 = vmul.f32 %v1411, 4.0
          %v1414 = vld [vmem:[%s2] sm:$0xff]
          %v1415 = vld [vmem:[%s2 + $0x8] sm:$0xff]
          %v1416 = vadd.f32 %v1412, %v1414
          %v1417 = vadd.f32 %v1413, %v1415
          %vm1418 = vcmask 130048
          %1419 = vst.msk [vmem:[#allocation2] sm:$0xff] %vm1418, %v1416
          %1420 = vst.msk [vmem:[#allocation2 + $0x8] sm:$0xff] %vm1418, %v1417
        $region184: #{tpu_custom_call.1} parent=119 // pred_fallthru
          _
        %v1421 = vld [vmem:[#allocation2] sm:$0xff]
        %v1422 = vld [vmem:[#allocation2 + $0x8] sm:$0xff]
        %v1423 = vpack.c.bf16 %v1422, %v1421
        %v1424 = vld [vmem:[%s1359] sm:$0xf]
        %v1425 = vld [vmem:[%s1359 + $0x4] sm:$0xf]
        %v1426 = vld [vmem:[%s1080] sm:$0x1]
        %v1428 = vperm.slane %v1426, 0
        %v1432 = vunpack.c.l.b16 %v1424
        %v1433 = vunpack.c.l.b16 %v1425
        %v1434 = vpack.c.b16 %v1433, %v1432
        %vm1436 = vcmask 130048
        %v1438 = vsel %vm1436, %v1423, 0
        %1440 = vmatpush.bf16.msra.mxu0 0
        %1441 = vmatpush.bf16.msra.mxu0 0
        %1442 = vmatpush.bf16.msra.mxu0 0
        %1443 = vmatpush.bf16.msra.mxu0 0
        %1444 = vmatpush.bf16.msra.mxu0 0
        %1445 = vmatpush.bf16.msra.mxu0 0
        %1446 = vmatpush.bf16.msra.mxu0 0
        %1447 = vmatpush.bf16.msra.mxu0 %v1434
        %1448 = vmatmul.bf16.gmra.mxu0 %v1438
        %v1449 = vpop.f32.mrf.mxu0
        %v1450 = vadd.f32 %v1428, %v1449
        %v1451 = vpop.f32.mrf.mxu0
        %v1452 = vadd.f32 %v1428, %v1451
        %1453 = vdwg.mxu0
        %v1454 = vpack.c.bf16 %v1450, %v1450
        %1456 = vrot.lane.b32.xlu0 %v1454, 124
        %v1457 = vpop.permute.xlu0 %1456
        %1458 = vrot.lane.b32.xlu0 %v1454, 120
        %v1459 = vpop.permute.xlu0 %1458
        %1460 = vrot.lane.b32.xlu0 %v1454, 116
        %v1461 = vpop.permute.xlu0 %1460
        %v1462 = vunpack.c.l.b16 %v1454
        %v1463 = vpack.c.b16 %v1462, %v1462
        %1464 = vrot.lane.b32.xlu0 %v1463, 112
        %v1465 = vpop.permute.xlu0 %1464
        %vm1466 = vcmask 31744
        %v1468 = vsel %vm1466, %v1454, 0
        %v1471 = vsel %vm1466, %v1465, 0
        %1473 = vmatpush.bf16.xpose.msra.mxu0 0
        %1474 = vmatpush.bf16.xpose.msra.mxu0 0
        %1475 = vmatpush.bf16.xpose.msra.mxu0 0
        %1476 = vmatpush.bf16.xpose.msra.mxu0 0
        %1477 = vmatpush.bf16.xpose.msra.mxu0 0
        %1478 = vmatpush.bf16.xpose.msra.mxu0 0
        %1479 = vmatpush.bf16.xpose.msra.mxu0 0
        %1480 = vmatpush.bf16.xpose.msra.mxu0 %v1471
        %1481 = vmatmul.bf16.gmra.mxu0 %v1468
        %v1482 = vpop.f32.mrf.mxu0
        %v1483 = vadd.f32 0.0, %v1482
        %v1484 = vpop.f32.mrf.mxu0
        %1485 = vdwg.mxu0
        %v1486 = vunpack.c.l.b16 %v1457
        %v1487 = vpack.c.b16 %v1486, %v1486
        %1488 = vrot.lane.b32.xlu0 %v1487, 112
        %v1489 = vpop.permute.xlu0 %1488
        %v1491 = vsel %vm1466, %v1457, 0
        %v1494 = vsel %vm1466, %v1489, 0
        %1496 = vmatpush.bf16.xpose.msra.mxu0 0
        %1497 = vmatpush.bf16.xpose.msra.mxu0 0
        %1498 = vmatpush.bf16.xpose.msra.mxu0 0
        %1499 = vmatpush.bf16.xpose.msra.mxu0 0
        %1500 = vmatpush.bf16.xpose.msra.mxu0 0
        %1501 = vmatpush.bf16.xpose.msra.mxu0 0
        %1502 = vmatpush.bf16.xpose.msra.mxu0 0
        %1503 = vmatpush.bf16.xpose.msra.mxu0 %v1494
        %1504 = vmatmul.bf16.gmra.mxu0 %v1491
        %v1505 = vpop.f32.mrf.mxu0
        %v1506 = vadd.f32 0.0, %v1505
        %v1507 = vpop.f32.mrf.mxu0
        %1508 = vdwg.mxu0
        %v1509 = vunpack.c.l.b16 %v1459
        %v1510 = vpack.c.b16 %v1509, %v1509
        %1511 = vrot.lane.b32.xlu0 %v1510, 112
        %v1512 = vpop.permute.xlu0 %1511
        %v1514 = vsel %vm1466, %v1459, 0
        %v1517 = vsel %vm1466, %v1512, 0
        %1519 = vmatpush.bf16.xpose.msra.mxu0 0
        %1520 = vmatpush.bf16.xpose.msra.mxu0 0
        %1521 = vmatpush.bf16.xpose.msra.mxu0 0
        %1522 = vmatpush.bf16.xpose.msra.mxu0 0
        %1523 = vmatpush.bf16.xpose.msra.mxu0 0
        %1524 = vmatpush.bf16.xpose.msra.mxu0 0
        %1525 = vmatpush.bf16.xpose.msra.mxu0 0
        %1526 = vmatpush.bf16.xpose.msra.mxu0 %v1517
        %1527 = vmatmul.bf16.gmra.mxu0 %v1514
        %v1528 = vpop.f32.mrf.mxu0
        %v1529 = vadd.f32 0.0, %v1528
        %v1530 = vpop.f32.mrf.mxu0
        %1531 = vdwg.mxu0
        %v1532 = vunpack.c.l.b16 %v1461
        %v1533 = vpack.c.b16 %v1532, %v1532
        %1534 = vrot.lane.b32.xlu0 %v1533, 112
        %v1535 = vpop.permute.xlu0 %1534
        %v1537 = vsel %vm1466, %v1461, 0
        %v1540 = vsel %vm1466, %v1535, 0
        %1542 = vmatpush.bf16.xpose.msra.mxu0 0
        %1543 = vmatpush.bf16.xpose.msra.mxu0 0
        %1544 = vmatpush.bf16.xpose.msra.mxu0 0
        %1545 = vmatpush.bf16.xpose.msra.mxu0 0
        %1546 = vmatpush.bf16.xpose.msra.mxu0 0
        %1547 = vmatpush.bf16.xpose.msra.mxu0 0
        %1548 = vmatpush.bf16.xpose.msra.mxu0 0
        %1549 = vmatpush.bf16.xpose.msra.mxu0 %v1540
        %1550 = vmatmul.bf16.gmra.mxu0 %v1537
        %v1551 = vpop.f32.mrf.mxu0
        %v1552 = vadd.f32 0.0, %v1551
        %v1553 = vpop.f32.mrf.mxu0
        %1554 = vdwg.mxu0
        %v1555 = vmul.f32 %v1483, 0.5
        %v1556 = vmul.f32 %v1506, 0.5
        %v1557 = vmul.f32 %v1529, 0.5
        %v1558 = vmul.f32 %v1552, 0.5
        %vm1559 = vcmask 64512
        %v1560 = vsel %vm1559, %v1555, -inf
        %1561 = vmax.xlane.f32.xlu0 %v1560
        %v1562 = vpop.xlane.xlu0 %1561
        %v1563 = vsel %vm1559, %v1556, -inf
        %1564 = vmax.xlane.f32.xlu0 %v1563
        %v1565 = vpop.xlane.xlu0 %1564
        %v1566 = vsel %vm1559, %v1557, -inf
        %1567 = vmax.xlane.f32.xlu0 %v1566
        %v1568 = vpop.xlane.xlu0 %1567
        %v1569 = vsel %vm1559, %v1558, -inf
        %1570 = vmax.xlane.f32.xlu0 %v1569
        %v1571 = vpop.xlane.xlu0 %1570
        %v1572 = vsub.f32 %v1555, %v1562
        %v1573 = vsub.f32 %v1556, %v1565
        %v1574 = vsub.f32 %v1557, %v1568
        %v1575 = vsub.f32 %v1558, %v1571
        %v1576 = vmul.f32 %v1572, 1.442695
        %v1577 = vpow.pop %v1576
        %v1578 = vmul.f32 %v1573, 1.442695
        %v1579 = vpow.pop %v1578
        %v1580 = vmul.f32 %v1574, 1.442695
        %v1581 = vpow.pop %v1580
        %v1582 = vmul.f32 %v1575, 1.442695
        %v1583 = vpow.pop %v1582
        %v1584 = vsel %vm1559, %v1577, 0.0
        %1585 = vadd.xlane.f32.xlu0 %v1584
        %v1586 = vpop.xlane.xlu0 %1585
        %v1587 = vsel %vm1559, %v1579, 0.0
        %1588 = vadd.xlane.f32.xlu0 %v1587
        %v1589 = vpop.xlane.xlu0 %1588
        %v1590 = vsel %vm1559, %v1581, 0.0
        %1591 = vadd.xlane.f32.xlu0 %v1590
        %v1592 = vpop.xlane.xlu0 %1591
        %v1593 = vsel %vm1559, %v1583, 0.0
        %1594 = vadd.xlane.f32.xlu0 %v1593
        %v1595 = vpop.xlane.xlu0 %1594
        %v1596 = vrcp.pop %v1586
        %v1597 = vrcp.pop %v1589
        %v1598 = vrcp.pop %v1592
        %v1599 = vrcp.pop %v1595
        %v1600 = vmul.f32 %v1577, %v1596
        %v1601 = vmul.f32 %v1579, %v1597
        %v1602 = vmul.f32 %v1581, %v1598
        %v1603 = vmul.f32 %v1583, %v1599
        %v1604 = vpack.c.bf16 %v1600, %v1600
        %v1605 = vpack.c.bf16 %v1601, %v1601
        %v1606 = vpack.c.bf16 %v1602, %v1602
        %v1607 = vpack.c.bf16 %v1603, %v1603
        %1608 = vrot.lane.b32.xlu0 %v1463, 96
        %v1609 = vpop.permute.xlu0 %1608
        %v1611 = vsel %vm1559, %v1604, 0
        %vm1613 = vcmask 1043456
        %v1615 = vsel %vm1613, %v1609, 0
        %1617 = vmatpush.bf16.msra.mxu0 0
        %1618 = vmatpush.bf16.msra.mxu0 0
        %1619 = vmatpush.bf16.msra.mxu0 0
        %1620 = vmatpush.bf16.msra.mxu0 0
        %1621 = vmatpush.bf16.msra.mxu0 0
        %1622 = vmatpush.bf16.msra.mxu0 0
        %1623 = vmatpush.bf16.msra.mxu0 0
        %1624 = vmatpush.bf16.msra.mxu0 %v1615
        %1625 = vmatmul.bf16.gmra.mxu0 %v1611
        %v1626 = vpop.f32.mrf.mxu0
        %v1627 = vadd.f32 0.0, %v1626
        %v1628 = vpop.f32.mrf.mxu0
        %1629 = vdwg.mxu0
        %1630 = vrot.lane.b32.xlu0 %v1487, 96
        %v1631 = vpop.permute.xlu0 %1630
        %v1633 = vsel %vm1559, %v1605, 0
        %v1636 = vsel %vm1613, %v1631, 0
        %1638 = vmatpush.bf16.msra.mxu0 0
        %1639 = vmatpush.bf16.msra.mxu0 0
        %1640 = vmatpush.bf16.msra.mxu0 0
        %1641 = vmatpush.bf16.msra.mxu0 0
        %1642 = vmatpush.bf16.msra.mxu0 0
        %1643 = vmatpush.bf16.msra.mxu0 0
        %1644 = vmatpush.bf16.msra.mxu0 0
        %1645 = vmatpush.bf16.msra.mxu0 %v1636
        %1646 = vmatmul.bf16.gmra.mxu0 %v1633
        %v1647 = vpop.f32.mrf.mxu0
        %v1648 = vadd.f32 0.0, %v1647
        %v1649 = vpop.f32.mrf.mxu0
        %1650 = vdwg.mxu0
        %1651 = vrot.lane.b32.xlu0 %v1510, 96
        %v1652 = vpop.permute.xlu0 %1651
        %v1654 = vsel %vm1559, %v1606, 0
        %v1657 = vsel %vm1613, %v1652, 0
        %1659 = vmatpush.bf16.msra.mxu0 0
        %1660 = vmatpush.bf16.msra.mxu0 0
        %1661 = vmatpush.bf16.msra.mxu0 0
        %1662 = vmatpush.bf16.msra.mxu0 0
        %1663 = vmatpush.bf16.msra.mxu0 0
        %1664 = vmatpush.bf16.msra.mxu0 0
        %1665 = vmatpush.bf16.msra.mxu0 0
        %1666 = vmatpush.bf16.msra.mxu0 %v1657
        %1667 = vmatmul.bf16.gmra.mxu0 %v1654
        %v1668 = vpop.f32.mrf.mxu0
        %v1669 = vadd.f32 0.0, %v1668
        %v1670 = vpop.f32.mrf.mxu0
        %1671 = vdwg.mxu0
        %1672 = vrot.lane.b32.xlu0 %v1533, 96
        %v1673 = vpop.permute.xlu0 %1672
        %v1675 = vsel %vm1559, %v1607, 0
        %v1678 = vsel %vm1613, %v1673, 0
        %1680 = vmatpush.bf16.msra.mxu0 0
        %1681 = vmatpush.bf16.msra.mxu0 0
        %1682 = vmatpush.bf16.msra.mxu0 0
        %1683 = vmatpush.bf16.msra.mxu0 0
        %1684 = vmatpush.bf16.msra.mxu0 0
        %1685 = vmatpush.bf16.msra.mxu0 0
        %1686 = vmatpush.bf16.msra.mxu0 0
        %1687 = vmatpush.bf16.msra.mxu0 %v1678
        %1688 = vmatmul.bf16.gmra.mxu0 %v1675
        %v1689 = vpop.f32.mrf.mxu0
        %v1690 = vadd.f32 0.0, %v1689
        %v1691 = vpop.f32.mrf.mxu0
        %1692 = vdwg.mxu0
        %1694 = vrot.lane.b32.xlu0 %v1648, 4
        %v1695 = vpop.permute.xlu0 %1694
        %1698 = vrot.lane.b32.xlu0 %v1669, 8
        %v1699 = vpop.permute.xlu0 %1698
        %1702 = vrot.lane.b32.xlu0 %v1690, 12
        %v1703 = vpop.permute.xlu0 %1702
        %v1705 = vsel %vm1466, %v1627, %v1695
        %v1706 = vsel %vm1559, %v1705, %v1699
        %vm1707 = vcmask 97280
        %v1708 = vsel %vm1707, %v1706, %v1703
        %v1709 = vpack.c.bf16 %v1708, %v1708
        %v1710 = vpack.c.bf16 %v1452, %v1452
        %1712 = vrot.lane.b32.xlu0 %v1710, 124
        %v1713 = vpop.permute.xlu0 %1712
        %1714 = vrot.lane.b32.xlu0 %v1710, 120
        %v1715 = vpop.permute.xlu0 %1714
        %1716 = vrot.lane.b32.xlu0 %v1710, 116
        %v1717 = vpop.permute.xlu0 %1716
        %v1718 = vunpack.c.l.b16 %v1710
        %v1719 = vpack.c.b16 %v1718, %v1718
        %1720 = vrot.lane.b32.xlu0 %v1719, 112
        %v1721 = vpop.permute.xlu0 %1720
        %v1723 = vsel %vm1466, %v1710, 0
        %v1726 = vsel %vm1466, %v1721, 0
        %1728 = vmatpush.bf16.xpose.msra.mxu0 0
        %1729 = vmatpush.bf16.xpose.msra.mxu0 0
        %1730 = vmatpush.bf16.xpose.msra.mxu0 0
        %1731 = vmatpush.bf16.xpose.msra.mxu0 0
        %1732 = vmatpush.bf16.xpose.msra.mxu0 0
        %1733 = vmatpush.bf16.xpose.msra.mxu0 0
        %1734 = vmatpush.bf16.xpose.msra.mxu0 0
        %1735 = vmatpush.bf16.xpose.msra.mxu0 %v1726
        %1736 = vmatmul.bf16.gmra.mxu0 %v1723
        %v1737 = vpop.f32.mrf.mxu0
        %v1738 = vadd.f32 0.0, %v1737
        %v1739 = vpop.f32.mrf.mxu0
        %1740 = vdwg.mxu0
        %v1741 = vunpack.c.l.b16 %v1713
        %v1742 = vpack.c.b16 %v1741, %v1741
        %1743 = vrot.lane.b32.xlu0 %v1742, 112
        %v1744 = vpop.permute.xlu0 %1743
        %v1746 = vsel %vm1466, %v1713, 0
        %v1749 = vsel %vm1466, %v1744, 0
        %1751 = vmatpush.bf16.xpose.msra.mxu0 0
        %1752 = vmatpush.bf16.xpose.msra.mxu0 0
        %1753 = vmatpush.bf16.xpose.msra.mxu0 0
        %1754 = vmatpush.bf16.xpose.msra.mxu0 0
        %1755 = vmatpush.bf16.xpose.msra.mxu0 0
        %1756 = vmatpush.bf16.xpose.msra.mxu0 0
        %1757 = vmatpush.bf16.xpose.msra.mxu0 0
        %1758 = vmatpush.bf16.xpose.msra.mxu0 %v1749
        %1759 = vmatmul.bf16.gmra.mxu0 %v1746
        %v1760 = vpop.f32.mrf.mxu0
        %v1761 = vadd.f32 0.0, %v1760
        %v1762 = vpop.f32.mrf.mxu0
        %1763 = vdwg.mxu0
        %v1764 = vunpack.c.l.b16 %v1715
        %v1765 = vpack.c.b16 %v1764, %v1764
        %1766 = vrot.lane.b32.xlu0 %v1765, 112
        %v1767 = vpop.permute.xlu0 %1766
        %v1769 = vsel %vm1466, %v1715, 0
        %v1772 = vsel %vm1466, %v1767, 0
        %1774 = vmatpush.bf16.xpose.msra.mxu0 0
        %1775 = vmatpush.bf16.xpose.msra.mxu0 0
        %1776 = vmatpush.bf16.xpose.msra.mxu0 0
        %1777 = vmatpush.bf16.xpose.msra.mxu0 0
        %1778 = vmatpush.bf16.xpose.msra.mxu0 0
        %1779 = vmatpush.bf16.xpose.msra.mxu0 0
        %1780 = vmatpush.bf16.xpose.msra.mxu0 0
        %1781 = vmatpush.bf16.xpose.msra.mxu0 %v1772
        %1782 = vmatmul.bf16.gmra.mxu0 %v1769
        %v1783 = vpop.f32.mrf.mxu0
        %v1784 = vadd.f32 0.0, %v1783
        %v1785 = vpop.f32.mrf.mxu0
        %1786 = vdwg.mxu0
        %v1787 = vunpack.c.l.b16 %v1717
        %v1788 = vpack.c.b16 %v1787, %v1787
        %1789 = vrot.lane.b32.xlu0 %v1788, 112
        %v1790 = vpop.permute.xlu0 %1789
        %v1792 = vsel %vm1466, %v1717, 0
        %v1795 = vsel %vm1466, %v1790, 0
        %1797 = vmatpush.bf16.xpose.msra.mxu0 0
        %1798 = vmatpush.bf16.xpose.msra.mxu0 0
        %1799 = vmatpush.bf16.xpose.msra.mxu0 0
        %1800 = vmatpush.bf16.xpose.msra.mxu0 0
        %1801 = vmatpush.bf16.xpose.msra.mxu0 0
        %1802 = vmatpush.bf16.xpose.msra.mxu0 0
        %1803 = vmatpush.bf16.xpose.msra.mxu0 0
        %1804 = vmatpush.bf16.xpose.msra.mxu0 %v1795
        %1805 = vmatmul.bf16.gmra.mxu0 %v1792
        %v1806 = vpop.f32.mrf.mxu0
        %v1807 = vadd.f32 0.0, %v1806
        %v1808 = vpop.f32.mrf.mxu0
        %1809 = vdwg.mxu0
        %v1810 = vmul.f32 %v1738, 0.5
        %v1811 = vmul.f32 %v1761, 0.5
        %v1812 = vmul.f32 %v1784, 0.5
        %v1813 = vmul.f32 %v1807, 0.5
        %v1814 = vsel %vm1559, %v1810, -inf
        %1815 = vmax.xlane.f32.xlu0 %v1814
        %v1816 = vpop.xlane.xlu0 %1815
        %v1817 = vsel %vm1559, %v1811, -inf
        %1818 = vmax.xlane.f32.xlu0 %v1817
        %v1819 = vpop.xlane.xlu0 %1818
        %v1820 = vsel %vm1559, %v1812, -inf
        %1821 = vmax.xlane.f32.xlu0 %v1820
        %v1822 = vpop.xlane.xlu0 %1821
        %v1823 = vsel %vm1559, %v1813, -inf
        %1824 = vmax.xlane.f32.xlu0 %v1823
        %v1825 = vpop.xlane.xlu0 %1824
        %v1826 = vsub.f32 %v1810, %v1816
        %v1827 = vsub.f32 %v1811, %v1819
        %v1828 = vsub.f32 %v1812, %v1822
        %v1829 = vsub.f32 %v1813, %v1825
        %v1830 = vmul.f32 %v1826, 1.442695
        %v1831 = vpow.pop %v1830
        %v1832 = vmul.f32 %v1827, 1.442695
        %v1833 = vpow.pop %v1832
        %v1834 = vmul.f32 %v1828, 1.442695
        %v1835 = vpow.pop %v1834
        %v1836 = vmul.f32 %v1829, 1.442695
        %v1837 = vpow.pop %v1836
        %v1838 = vsel %vm1559, %v1831, 0.0
        %1839 = vadd.xlane.f32.xlu0 %v1838
        %v1840 = vpop.xlane.xlu0 %1839
        %v1841 = vsel %vm1559, %v1833, 0.0
        %1842 = vadd.xlane.f32.xlu0 %v1841
        %v1843 = vpop.xlane.xlu0 %1842
        %v1844 = vsel %vm1559, %v1835, 0.0
        %1845 = vadd.xlane.f32.xlu0 %v1844
        %v1846 = vpop.xlane.xlu0 %1845
        %v1847 = vsel %vm1559, %v1837, 0.0
        %1848 = vadd.xlane.f32.xlu0 %v1847
        %v1849 = vpop.xlane.xlu0 %1848
        %v1850 = vrcp.pop %v1840
        %v1851 = vrcp.pop %v1843
        %v1852 = vrcp.pop %v1846
        %v1853 = vrcp.pop %v1849
        %v1854 = vmul.f32 %v1831, %v1850
        %v1855 = vmul.f32 %v1833, %v1851
        %v1856 = vmul.f32 %v1835, %v1852
        %v1857 = vmul.f32 %v1837, %v1853
        %v1858 = vpack.c.bf16 %v1854, %v1854
        %v1859 = vpack.c.bf16 %v1855, %v1855
        %v1860 = vpack.c.bf16 %v1856, %v1856
        %v1861 = vpack.c.bf16 %v1857, %v1857
        %1862 = vrot.lane.b32.xlu0 %v1719, 96
        %v1863 = vpop.permute.xlu0 %1862
        %v1865 = vsel %vm1559, %v1858, 0
        %v1868 = vsel %vm1613, %v1863, 0
        %1870 = vmatpush.bf16.msra.mxu0 0
        %1871 = vmatpush.bf16.msra.mxu0 0
        %1872 = vmatpush.bf16.msra.mxu0 0
        %1873 = vmatpush.bf16.msra.mxu0 0
        %1874 = vmatpush.bf16.msra.mxu0 0
        %1875 = vmatpush.bf16.msra.mxu0 0
        %1876 = vmatpush.bf16.msra.mxu0 0
        %1877 = vmatpush.bf16.msra.mxu0 %v1868
        %1878 = vmatmul.bf16.gmra.mxu0 %v1865
        %v1879 = vpop.f32.mrf.mxu0
        %v1880 = vadd.f32 0.0, %v1879
        %v1881 = vpop.f32.mrf.mxu0
        %1882 = vdwg.mxu0
        %1883 = vrot.lane.b32.xlu0 %v1742, 96
        %v1884 = vpop.permute.xlu0 %1883
        %v1886 = vsel %vm1559, %v1859, 0
        %v1889 = vsel %vm1613, %v1884, 0
        %1891 = vmatpush.bf16.msra.mxu0 0
        %1892 = vmatpush.bf16.msra.mxu0 0
        %1893 = vmatpush.bf16.msra.mxu0 0
        %1894 = vmatpush.bf16.msra.mxu0 0
        %1895 = vmatpush.bf16.msra.mxu0 0
        %1896 = vmatpush.bf16.msra.mxu0 0
        %1897 = vmatpush.bf16.msra.mxu0 0
        %1898 = vmatpush.bf16.msra.mxu0 %v1889
        %1899 = vmatmul.bf16.gmra.mxu0 %v1886
        %v1900 = vpop.f32.mrf.mxu0
        %v1901 = vadd.f32 0.0, %v1900
        %v1902 = vpop.f32.mrf.mxu0
        %1903 = vdwg.mxu0
        %1904 = vrot.lane.b32.xlu0 %v1765, 96
        %v1905 = vpop.permute.xlu0 %1904
        %v1907 = vsel %vm1559, %v1860, 0
        %v1910 = vsel %vm1613, %v1905, 0
        %1912 = vmatpush.bf16.msra.mxu0 0
        %1913 = vmatpush.bf16.msra.mxu0 0
        %1914 = vmatpush.bf16.msra.mxu0 0
        %1915 = vmatpush.bf16.msra.mxu0 0
        %1916 = vmatpush.bf16.msra.mxu0 0
        %1917 = vmatpush.bf16.msra.mxu0 0
        %1918 = vmatpush.bf16.msra.mxu0 0
        %1919 = vmatpush.bf16.msra.mxu0 %v1910
        %1920 = vmatmul.bf16.gmra.mxu0 %v1907
        %v1921 = vpop.f32.mrf.mxu0
        %v1922 = vadd.f32 0.0, %v1921
        %v1923 = vpop.f32.mrf.mxu0
        %1924 = vdwg.mxu0
        %1925 = vrot.lane.b32.xlu0 %v1788, 96
        %v1926 = vpop.permute.xlu0 %1925
        %v1928 = vsel %vm1559, %v1861, 0
        %v1931 = vsel %vm1613, %v1926, 0
        %1933 = vmatpush.bf16.msra.mxu0 0
        %1934 = vmatpush.bf16.msra.mxu0 0
        %1935 = vmatpush.bf16.msra.mxu0 0
        %1936 = vmatpush.bf16.msra.mxu0 0
        %1937 = vmatpush.bf16.msra.mxu0 0
        %1938 = vmatpush.bf16.msra.mxu0 0
        %1939 = vmatpush.bf16.msra.mxu0 0
        %1940 = vmatpush.bf16.msra.mxu0 %v1931
        %1941 = vmatmul.bf16.gmra.mxu0 %v1928
        %v1942 = vpop.f32.mrf.mxu0
        %v1943 = vadd.f32 0.0, %v1942
        %v1944 = vpop.f32.mrf.mxu0
        %1945 = vdwg.mxu0
        %1947 = vrot.lane.b32.xlu0 %v1901, 4
        %v1948 = vpop.permute.xlu0 %1947
        %1951 = vrot.lane.b32.xlu0 %v1922, 8
        %v1952 = vpop.permute.xlu0 %1951
        %1955 = vrot.lane.b32.xlu0 %v1943, 12
        %v1956 = vpop.permute.xlu0 %1955
        %v1958 = vsel %vm1466, %v1880, %v1948
        %v1959 = vsel %vm1559, %v1958, %v1952
        %v1960 = vsel %vm1707, %v1959, %v1956
        %v1961 = vpack.c.bf16 %v1960, %v1960
        %v1963 = vunpack.c.l.b16 %v1961
        %v1964 = vpack.c.b16 %v1963, %v1963
        %v1967 = vsel %vm1613, %v1709, %v1964
        %v1968 = vld [vmem:[%s1364] sm:$0xf]
        %v1969 = vld [vmem:[%s1364 + $0x4] sm:$0xf]
        %v1970 = vld [vmem:[%s1089] sm:$0x1]
        %v1972 = vperm.slane %v1970, 0
        %v1976 = vunpack.c.l.b16 %v1968
        %v1977 = vunpack.c.l.b16 %v1969
        %v1978 = vpack.c.b16 %v1977, %v1976
        %v1980 = vsel %vm1436, %v1967, 0
        %1982 = vmatpush.bf16.msra.mxu0 0
        %1983 = vmatpush.bf16.msra.mxu0 0
        %1984 = vmatpush.bf16.msra.mxu0 0
        %1985 = vmatpush.bf16.msra.mxu0 0
        %1986 = vmatpush.bf16.msra.mxu0 0
        %1987 = vmatpush.bf16.msra.mxu0 0
        %1988 = vmatpush.bf16.msra.mxu0 0
        %1989 = vmatpush.bf16.msra.mxu0 %v1978
        %1990 = vmatmul.bf16.gmra.mxu0 %v1980
        %v1991 = vpop.f32.mrf.mxu0
        %v1992 = vadd.f32 %v1972, %v1991
        %v1993 = vpop.f32.mrf.mxu0
        %v1994 = vadd.f32 %v1972, %v1993
        %1995 = vdwg.mxu0
        %v1996 = vadd.f32 %v1421, %v1992
        %v1997 = vadd.f32 %v1422, %v1994
        %v1998 = vld [vmem:[%s1174] sm:$0x1]
        %v1999 = vld [vmem:[%s1375] sm:$0x1]
        %v2000 = vsel %vm1436, %v1996, 0.0
        %2001 = vadd.xlane.f32.xlu0 %v2000
        %v2002 = vpop.xlane.xlu0 %2001
        %v2003 = vsel %vm1436, %v1997, 0.0
        %2004 = vadd.xlane.f32.xlu0 %v2003
        %v2005 = vpop.xlane.xlu0 %2004
        %v2006 = vrcp.pop 16.0
        %v2007 = vmul.f32 16.0, %v2006
        %v2008 = vsub.f32 1.0, %v2007
        %v2009 = vmul.f32 %v2006, %v2008
        %v2010 = vadd.f32 %v2006, %v2009
        %vm2011 = vweird.f32 %v2006
        %v2012 = vsel %vm2011, %v2006, %v2010
        %v2013 = vmul.f32 %v2002, %v2012
        %v2014 = vmul.f32 %v2005, %v2012
        %v2015 = vsub.f32 %v1996, %v2013
        %v2016 = vsub.f32 %v1997, %v2014
        %v2017 = vmul.f32 %v2015, %v2015
        %v2018 = vmul.f32 %v2016, %v2016
        %v2019 = vsel %vm1436, %v2017, 0.0
        %2020 = vadd.xlane.f32.xlu0 %v2019
        %v2021 = vpop.xlane.xlu0 %2020
        %v2022 = vsel %vm1436, %v2018, 0.0
        %2023 = vadd.xlane.f32.xlu0 %v2022
        %v2024 = vpop.xlane.xlu0 %2023
        %v2025 = vmul.f32 %v2021, %v2012
        %v2026 = vmul.f32 %v2024, %v2012
        %v2027 = vadd.f32 %v2025, 1e-05
        %v2028 = vadd.f32 %v2026, 1e-05
        %v2029 = vrsqrt.pop %v2027
        %v2030 = vmul.f32 %v2029, %v2027
        %v2031 = vmul.f32 %v2030, %v2029
        %v2032 = vmul.f32 0.5, %v2031
        %v2033 = vsub.f32 1.5, %v2032
        %v2034 = vmul.f32 %v2029, %v2033
        %vm2035 = vweird.f32 %v2027
        %vm2036 = vweird.f32 %v2029
        %vm2037 = vmor %vm2035, %vm2036
        %v2038 = vsel %vm2037, %v2029, %v2034
        %v2039 = vrsqrt.pop %v2028
        %v2040 = vmul.f32 %v2039, %v2028
        %v2041 = vmul.f32 %v2040, %v2039
        %v2042 = vmul.f32 0.5, %v2041
        %v2043 = vsub.f32 1.5, %v2042
        %v2044 = vmul.f32 %v2039, %v2043
        %vm2045 = vweird.f32 %v2028
        %vm2046 = vweird.f32 %v2039
        %vm2047 = vmor %vm2045, %vm2046
        %v2048 = vsel %vm2047, %v2039, %v2044
        %v2049 = vmul.f32 %v2015, %v2038
        %v2050 = vmul.f32 %v2016, %v2048
        %v2052 = vperm.slane %v1998, 0
        %v2054 = vmul.f32 %v2049, %v2052
        %v2055 = vmul.f32 %v2050, %v2052
        %v2057 = vperm.slane %v1999, 0
        %v2059 = vadd.f32 %v2054, %v2057
        %v2060 = vadd.f32 %v2055, %v2057
        %v2061 = vpack.c.bf16 %v2060, %v2059
        %v2062 = vld [vmem:[%s1099] sm:$0xf]
        %v2063 = vld [vmem:[%s1099 + $0x4] sm:$0xf]
        %v2064 = vld [vmem:[%s1108] sm:$0x1]
        %v2066 = vperm.slane %v2064, 0
        %v2070 = vunpack.c.l.b16 %v2062
        %v2071 = vunpack.c.l.b16 %v2063
        %v2072 = vpack.c.b16 %v2071, %v2070
        %v2075 = vsel %vm1436, %v2061, 0
        %2077 = vmatpush.bf16.msra.mxu0 0
        %2078 = vmatpush.bf16.msra.mxu0 0
        %2079 = vmatpush.bf16.msra.mxu0 0
        %2080 = vmatpush.bf16.msra.mxu0 0
        %2081 = vmatpush.bf16.msra.mxu0 0
        %2082 = vmatpush.bf16.msra.mxu0 0
        %2083 = vmatpush.bf16.msra.mxu0 0
        %2084 = vmatpush.bf16.msra.mxu0 %v2072
        %2085 = vmatmul.bf16.gmra.mxu0 %v2075
        %v2086 = vpop.f32.mrf.mxu0
        %v2087 = vadd.f32 %v2066, %v2086
        %v2088 = vpop.f32.mrf.mxu0
        %v2089 = vadd.f32 %v2066, %v2088
        %2090 = vdwg.mxu0
        %v2091 = vld [vmem:[%s1353] sm:$0xff]
        %v2092 = vld [vmem:[%s1353 + $0x8] sm:$0xff]
        %v2093 = vpack.c.bf16 %v2092, %v2091
        %v2094 = vld [vmem:[%s1118] sm:$0xf]
        %v2095 = vld [vmem:[%s1118 + $0x4] sm:$0xf]
        %v2096 = vld [vmem:[%s1127] sm:$0x1]
        %v2098 = vperm.slane %v2096, 0
        %v2102 = vunpack.c.l.b16 %v2094
        %v2103 = vunpack.c.l.b16 %v2095
        %v2104 = vpack.c.b16 %v2103, %v2102
        %v2107 = vsel %vm1436, %v2093, 0
        %2109 = vmatpush.bf16.msra.mxu0 0
        %2110 = vmatpush.bf16.msra.mxu0 0
        %2111 = vmatpush.bf16.msra.mxu0 0
        %2112 = vmatpush.bf16.msra.mxu0 0
        %2113 = vmatpush.bf16.msra.mxu0 0
        %2114 = vmatpush.bf16.msra.mxu0 0
        %2115 = vmatpush.bf16.msra.mxu0 0
        %2116 = vmatpush.bf16.msra.mxu0 %v2104
        %2117 = vmatmul.bf16.gmra.mxu0 %v2107
        %v2118 = vpop.f32.mrf.mxu0
        %v2119 = vadd.f32 %v2098, %v2118
        %v2120 = vpop.f32.mrf.mxu0
        %v2121 = vadd.f32 %v2098, %v2120
        %2122 = vdwg.mxu0
        %v2123 = vpack.c.bf16 %v2087, %v2087
        %2125 = vrot.lane.b32.xlu0 %v2123, 124
        %v2126 = vpop.permute.xlu0 %2125
        %2127 = vrot.lane.b32.xlu0 %v2123, 120
        %v2128 = vpop.permute.xlu0 %2127
        %2129 = vrot.lane.b32.xlu0 %v2123, 116
        %v2130 = vpop.permute.xlu0 %2129
        %v2131 = vpack.c.bf16 %v2119, %v2119
        %2133 = vrot.lane.b32.xlu0 %v2131, 124
        %v2134 = vpop.permute.xlu0 %2133
        %2135 = vrot.lane.b32.xlu0 %v2131, 120
        %v2136 = vpop.permute.xlu0 %2135
        %2137 = vrot.lane.b32.xlu0 %v2131, 116
        %v2138 = vpop.permute.xlu0 %2137
        %v2140 = vsel %vm1466, %v2123, 0
        %v2143 = vsel %vm1466, %v2131, 0
        %2145 = vmatpush.bf16.xpose.msra.mxu0 0
        %2146 = vmatpush.bf16.xpose.msra.mxu0 0
        %2147 = vmatpush.bf16.xpose.msra.mxu0 0
        %2148 = vmatpush.bf16.xpose.msra.mxu0 0
        %2149 = vmatpush.bf16.xpose.msra.mxu0 0
        %2150 = vmatpush.bf16.xpose.msra.mxu0 0
        %2151 = vmatpush.bf16.xpose.msra.mxu0 0
        %2152 = vmatpush.bf16.xpose.msra.mxu0 %v2143
        %2153 = vmatmul.bf16.gmra.mxu0 %v2140
        %v2154 = vpop.f32.mrf.mxu0
        %v2155 = vadd.f32 0.0, %v2154
        %v2156 = vpop.f32.mrf.mxu0
        %2157 = vdwg.mxu0
        %v2159 = vsel %vm1466, %v2126, 0
        %v2162 = vsel %vm1466, %v2134, 0
        %2164 = vmatpush.bf16.xpose.msra.mxu0 0
        %2165 = vmatpush.bf16.xpose.msra.mxu0 0
        %2166 = vmatpush.bf16.xpose.msra.mxu0 0
        %2167 = vmatpush.bf16.xpose.msra.mxu0 0
        %2168 = vmatpush.bf16.xpose.msra.mxu0 0
        %2169 = vmatpush.bf16.xpose.msra.mxu0 0
        %2170 = vmatpush.bf16.xpose.msra.mxu0 0
        %2171 = vmatpush.bf16.xpose.msra.mxu0 %v2162
        %2172 = vmatmul.bf16.gmra.mxu0 %v2159
        %v2173 = vpop.f32.mrf.mxu0
        %v2174 = vadd.f32 0.0, %v2173
        %v2175 = vpop.f32.mrf.mxu0
        %2176 = vdwg.mxu0
        %v2178 = vsel %vm1466, %v2128, 0
        %v2181 = vsel %vm1466, %v2136, 0
        %2183 = vmatpush.bf16.xpose.msra.mxu0 0
        %2184 = vmatpush.bf16.xpose.msra.mxu0 0
        %2185 = vmatpush.bf16.xpose.msra.mxu0 0
        %2186 = vmatpush.bf16.xpose.msra.mxu0 0
        %2187 = vmatpush.bf16.xpose.msra.mxu0 0
        %2188 = vmatpush.bf16.xpose.msra.mxu0 0
        %2189 = vmatpush.bf16.xpose.msra.mxu0 0
        %2190 = vmatpush.bf16.xpose.msra.mxu0 %v2181
        %2191 = vmatmul.bf16.gmra.mxu0 %v2178
        %v2192 = vpop.f32.mrf.mxu0
        %v2193 = vadd.f32 0.0, %v2192
        %v2194 = vpop.f32.mrf.mxu0
        %2195 = vdwg.mxu0
        %v2197 = vsel %vm1466, %v2130, 0
        %v2200 = vsel %vm1466, %v2138, 0
        %2202 = vmatpush.bf16.xpose.msra.mxu0 0
        %2203 = vmatpush.bf16.xpose.msra.mxu0 0
        %2204 = vmatpush.bf16.xpose.msra.mxu0 0
        %2205 = vmatpush.bf16.xpose.msra.mxu0 0
        %2206 = vmatpush.bf16.xpose.msra.mxu0 0
        %2207 = vmatpush.bf16.xpose.msra.mxu0 0
        %2208 = vmatpush.bf16.xpose.msra.mxu0 0
        %2209 = vmatpush.bf16.xpose.msra.mxu0 %v2200
        %2210 = vmatmul.bf16.gmra.mxu0 %v2197
        %v2211 = vpop.f32.mrf.mxu0
        %v2212 = vadd.f32 0.0, %v2211
        %v2213 = vpop.f32.mrf.mxu0
        %2214 = vdwg.mxu0
        %v2215 = vmul.f32 %v2155, 0.5
        %v2216 = vmul.f32 %v2174, 0.5
        %v2217 = vmul.f32 %v2193, 0.5
        %v2218 = vmul.f32 %v2212, 0.5
        %v2219 = vsel %vm1559, %v2215, -inf
        %2220 = vmax.xlane.f32.xlu0 %v2219
        %v2221 = vpop.xlane.xlu0 %2220
        %v2222 = vsel %vm1559, %v2216, -inf
        %2223 = vmax.xlane.f32.xlu0 %v2222
        %v2224 = vpop.xlane.xlu0 %2223
        %v2225 = vsel %vm1559, %v2217, -inf
        %2226 = vmax.xlane.f32.xlu0 %v2225
        %v2227 = vpop.xlane.xlu0 %2226
        %v2228 = vsel %vm1559, %v2218, -inf
        %2229 = vmax.xlane.f32.xlu0 %v2228
        %v2230 = vpop.xlane.xlu0 %2229
        %v2231 = vsub.f32 %v2215, %v2221
        %v2232 = vsub.f32 %v2216, %v2224
        %v2233 = vsub.f32 %v2217, %v2227
        %v2234 = vsub.f32 %v2218, %v2230
        %v2235 = vmul.f32 %v2231, 1.442695
        %v2236 = vpow.pop %v2235
        %v2237 = vmul.f32 %v2232, 1.442695
        %v2238 = vpow.pop %v2237
        %v2239 = vmul.f32 %v2233, 1.442695
        %v2240 = vpow.pop %v2239
        %v2241 = vmul.f32 %v2234, 1.442695
        %v2242 = vpow.pop %v2241
        %v2243 = vsel %vm1559, %v2236, 0.0
        %2244 = vadd.xlane.f32.xlu0 %v2243
        %v2245 = vpop.xlane.xlu0 %2244
        %v2246 = vsel %vm1559, %v2238, 0.0
        %2247 = vadd.xlane.f32.xlu0 %v2246
        %v2248 = vpop.xlane.xlu0 %2247
        %v2249 = vsel %vm1559, %v2240, 0.0
        %2250 = vadd.xlane.f32.xlu0 %v2249
        %v2251 = vpop.xlane.xlu0 %2250
        %v2252 = vsel %vm1559, %v2242, 0.0
        %2253 = vadd.xlane.f32.xlu0 %v2252
        %v2254 = vpop.xlane.xlu0 %2253
        %v2255 = vrcp.pop %v2245
        %v2256 = vrcp.pop %v2248
        %v2257 = vrcp.pop %v2251
        %v2258 = vrcp.pop %v2254
        %v2259 = vmul.f32 %v2236, %v2255
        %v2260 = vmul.f32 %v2238, %v2256
        %v2261 = vmul.f32 %v2240, %v2257
        %v2262 = vmul.f32 %v2242, %v2258
        %v2263 = vpack.c.bf16 %v2259, %v2259
        %v2264 = vpack.c.bf16 %v2260, %v2260
        %v2265 = vpack.c.bf16 %v2261, %v2261
        %v2266 = vpack.c.bf16 %v2262, %v2262
        %v2267 = vunpack.c.l.b16 %v2131
        %v2268 = vpack.c.b16 %v2267, %v2267
        %2269 = vrot.lane.b32.xlu0 %v2268, 112
        %v2270 = vpop.permute.xlu0 %2269
        %v2272 = vsel %vm1559, %v2263, 0
        %v2275 = vsel %vm1613, %v2270, 0
        %2277 = vmatpush.bf16.msra.mxu0 0
        %2278 = vmatpush.bf16.msra.mxu0 0
        %2279 = vmatpush.bf16.msra.mxu0 0
        %2280 = vmatpush.bf16.msra.mxu0 0
        %2281 = vmatpush.bf16.msra.mxu0 0
        %2282 = vmatpush.bf16.msra.mxu0 0
        %2283 = vmatpush.bf16.msra.mxu0 0
        %2284 = vmatpush.bf16.msra.mxu0 %v2275
        %2285 = vmatmul.bf16.gmra.mxu0 %v2272
        %v2286 = vpop.f32.mrf.mxu0
        %v2287 = vadd.f32 0.0, %v2286
        %v2288 = vpop.f32.mrf.mxu0
        %2289 = vdwg.mxu0
        %v2290 = vunpack.c.l.b16 %v2134
        %v2291 = vpack.c.b16 %v2290, %v2290
        %2292 = vrot.lane.b32.xlu0 %v2291, 112
        %v2293 = vpop.permute.xlu0 %2292
        %v2295 = vsel %vm1559, %v2264, 0
        %v2298 = vsel %vm1613, %v2293, 0
        %2300 = vmatpush.bf16.msra.mxu0 0
        %2301 = vmatpush.bf16.msra.mxu0 0
        %2302 = vmatpush.bf16.msra.mxu0 0
        %2303 = vmatpush.bf16.msra.mxu0 0
        %2304 = vmatpush.bf16.msra.mxu0 0
        %2305 = vmatpush.bf16.msra.mxu0 0
        %2306 = vmatpush.bf16.msra.mxu0 0
        %2307 = vmatpush.bf16.msra.mxu0 %v2298
        %2308 = vmatmul.bf16.gmra.mxu0 %v2295
        %v2309 = vpop.f32.mrf.mxu0
        %v2310 = vadd.f32 0.0, %v2309
        %v2311 = vpop.f32.mrf.mxu0
        %2312 = vdwg.mxu0
        %v2313 = vunpack.c.l.b16 %v2136
        %v2314 = vpack.c.b16 %v2313, %v2313
        %2315 = vrot.lane.b32.xlu0 %v2314, 112
        %v2316 = vpop.permute.xlu0 %2315
        %v2318 = vsel %vm1559, %v2265, 0
        %v2321 = vsel %vm1613, %v2316, 0
        %2323 = vmatpush.bf16.msra.mxu0 0
        %2324 = vmatpush.bf16.msra.mxu0 0
        %2325 = vmatpush.bf16.msra.mxu0 0
        %2326 = vmatpush.bf16.msra.mxu0 0
        %2327 = vmatpush.bf16.msra.mxu0 0
        %2328 = vmatpush.bf16.msra.mxu0 0
        %2329 = vmatpush.bf16.msra.mxu0 0
        %2330 = vmatpush.bf16.msra.mxu0 %v2321
        %2331 = vmatmul.bf16.gmra.mxu0 %v2318
        %v2332 = vpop.f32.mrf.mxu0
        %v2333 = vadd.f32 0.0, %v2332
        %v2334 = vpop.f32.mrf.mxu0
        %2335 = vdwg.mxu0
        %v2336 = vunpack.c.l.b16 %v2138
        %v2337 = vpack.c.b16 %v2336, %v2336
        %2338 = vrot.lane.b32.xlu0 %v2337, 112
        %v2339 = vpop.permute.xlu0 %2338
        %v2341 = vsel %vm1559, %v2266, 0
        %v2344 = vsel %vm1613, %v2339, 0
        %2346 = vmatpush.bf16.msra.mxu0 0
        %2347 = vmatpush.bf16.msra.mxu0 0
        %2348 = vmatpush.bf16.msra.mxu0 0
        %2349 = vmatpush.bf16.msra.mxu0 0
        %2350 = vmatpush.bf16.msra.mxu0 0
        %2351 = vmatpush.bf16.msra.mxu0 0
        %2352 = vmatpush.bf16.msra.mxu0 0
        %2353 = vmatpush.bf16.msra.mxu0 %v2344
        %2354 = vmatmul.bf16.gmra.mxu0 %v2341
        %v2355 = vpop.f32.mrf.mxu0
        %v2356 = vadd.f32 0.0, %v2355
        %v2357 = vpop.f32.mrf.mxu0
        %2358 = vdwg.mxu0
        %2360 = vrot.lane.b32.xlu0 %v2310, 4
        %v2361 = vpop.permute.xlu0 %2360
        %2364 = vrot.lane.b32.xlu0 %v2333, 8
        %v2365 = vpop.permute.xlu0 %2364
        %2368 = vrot.lane.b32.xlu0 %v2356, 12
        %v2369 = vpop.permute.xlu0 %2368
        %v2371 = vsel %vm1466, %v2287, %v2361
        %v2372 = vsel %vm1559, %v2371, %v2365
        %v2373 = vsel %vm1707, %v2372, %v2369
        %v2374 = vpack.c.bf16 %v2373, %v2373
        %v2375 = vpack.c.bf16 %v2089, %v2089
        %2377 = vrot.lane.b32.xlu0 %v2375, 124
        %v2378 = vpop.permute.xlu0 %2377
        %2379 = vrot.lane.b32.xlu0 %v2375, 120
        %v2380 = vpop.permute.xlu0 %2379
        %2381 = vrot.lane.b32.xlu0 %v2375, 116
        %v2382 = vpop.permute.xlu0 %2381
        %v2383 = vpack.c.bf16 %v2121, %v2121
        %2385 = vrot.lane.b32.xlu0 %v2383, 124
        %v2386 = vpop.permute.xlu0 %2385
        %2387 = vrot.lane.b32.xlu0 %v2383, 120
        %v2388 = vpop.permute.xlu0 %2387
        %2389 = vrot.lane.b32.xlu0 %v2383, 116
        %v2390 = vpop.permute.xlu0 %2389
        %v2392 = vsel %vm1466, %v2375, 0
        %v2395 = vsel %vm1466, %v2383, 0
        %2397 = vmatpush.bf16.xpose.msra.mxu0 0
        %2398 = vmatpush.bf16.xpose.msra.mxu0 0
        %2399 = vmatpush.bf16.xpose.msra.mxu0 0
        %2400 = vmatpush.bf16.xpose.msra.mxu0 0
        %2401 = vmatpush.bf16.xpose.msra.mxu0 0
        %2402 = vmatpush.bf16.xpose.msra.mxu0 0
        %2403 = vmatpush.bf16.xpose.msra.mxu0 0
        %2404 = vmatpush.bf16.xpose.msra.mxu0 %v2395
        %2405 = vmatmul.bf16.gmra.mxu0 %v2392
        %v2406 = vpop.f32.mrf.mxu0
        %v2407 = vadd.f32 0.0, %v2406
        %v2408 = vpop.f32.mrf.mxu0
        %2409 = vdwg.mxu0
        %v2411 = vsel %vm1466, %v2378, 0
        %v2414 = vsel %vm1466, %v2386, 0
        %2416 = vmatpush.bf16.xpose.msra.mxu0 0
        %2417 = vmatpush.bf16.xpose.msra.mxu0 0
        %2418 = vmatpush.bf16.xpose.msra.mxu0 0
        %2419 = vmatpush.bf16.xpose.msra.mxu0 0
        %2420 = vmatpush.bf16.xpose.msra.mxu0 0
        %2421 = vmatpush.bf16.xpose.msra.mxu0 0
        %2422 = vmatpush.bf16.xpose.msra.mxu0 0
        %2423 = vmatpush.bf16.xpose.msra.mxu0 %v2414
        %2424 = vmatmul.bf16.gmra.mxu0 %v2411
        %v2425 = vpop.f32.mrf.mxu0
        %v2426 = vadd.f32 0.0, %v2425
        %v2427 = vpop.f32.mrf.mxu0
        %2428 = vdwg.mxu0
        %v2430 = vsel %vm1466, %v2380, 0
        %v2433 = vsel %vm1466, %v2388, 0
        %2435 = vmatpush.bf16.xpose.msra.mxu0 0
        %2436 = vmatpush.bf16.xpose.msra.mxu0 0
        %2437 = vmatpush.bf16.xpose.msra.mxu0 0
        %2438 = vmatpush.bf16.xpose.msra.mxu0 0
        %2439 = vmatpush.bf16.xpose.msra.mxu0 0
        %2440 = vmatpush.bf16.xpose.msra.mxu0 0
        %2441 = vmatpush.bf16.xpose.msra.mxu0 0
        %2442 = vmatpush.bf16.xpose.msra.mxu0 %v2433
        %2443 = vmatmul.bf16.gmra.mxu0 %v2430
        %v2444 = vpop.f32.mrf.mxu0
        %v2445 = vadd.f32 0.0, %v2444
        %v2446 = vpop.f32.mrf.mxu0
        %2447 = vdwg.mxu0
        %v2449 = vsel %vm1466, %v2382, 0
        %v2452 = vsel %vm1466, %v2390, 0
        %2454 = vmatpush.bf16.xpose.msra.mxu0 0
        %2455 = vmatpush.bf16.xpose.msra.mxu0 0
        %2456 = vmatpush.bf16.xpose.msra.mxu0 0
        %2457 = vmatpush.bf16.xpose.msra.mxu0 0
        %2458 = vmatpush.bf16.xpose.msra.mxu0 0
        %2459 = vmatpush.bf16.xpose.msra.mxu0 0
        %2460 = vmatpush.bf16.xpose.msra.mxu0 0
        %2461 = vmatpush.bf16.xpose.msra.mxu0 %v2452
        %2462 = vmatmul.bf16.gmra.mxu0 %v2449
        %v2463 = vpop.f32.mrf.mxu0
        %v2464 = vadd.f32 0.0, %v2463
        %v2465 = vpop.f32.mrf.mxu0
        %2466 = vdwg.mxu0
        %v2467 = vmul.f32 %v2407, 0.5
        %v2468 = vmul.f32 %v2426, 0.5
        %v2469 = vmul.f32 %v2445, 0.5
        %v2470 = vmul.f32 %v2464, 0.5
        %v2471 = vsel %vm1559, %v2467, -inf
        %2472 = vmax.xlane.f32.xlu0 %v2471
        %v2473 = vpop.xlane.xlu0 %2472
        %v2474 = vsel %vm1559, %v2468, -inf
        %2475 = vmax.xlane.f32.xlu0 %v2474
        %v2476 = vpop.xlane.xlu0 %2475
        %v2477 = vsel %vm1559, %v2469, -inf
        %2478 = vmax.xlane.f32.xlu0 %v2477
        %v2479 = vpop.xlane.xlu0 %2478
        %v2480 = vsel %vm1559, %v2470, -inf
        %2481 = vmax.xlane.f32.xlu0 %v2480
        %v2482 = vpop.xlane.xlu0 %2481
        %v2483 = vsub.f32 %v2467, %v2473
        %v2484 = vsub.f32 %v2468, %v2476
        %v2485 = vsub.f32 %v2469, %v2479
        %v2486 = vsub.f32 %v2470, %v2482
        %v2487 = vmul.f32 %v2483, 1.442695
        %v2488 = vpow.pop %v2487
        %v2489 = vmul.f32 %v2484, 1.442695
        %v2490 = vpow.pop %v2489
        %v2491 = vmul.f32 %v2485, 1.442695
        %v2492 = vpow.pop %v2491
        %v2493 = vmul.f32 %v2486, 1.442695
        %v2494 = vpow.pop %v2493
        %v2495 = vsel %vm1559, %v2488, 0.0
        %2496 = vadd.xlane.f32.xlu0 %v2495
        %v2497 = vpop.xlane.xlu0 %2496
        %v2498 = vsel %vm1559, %v2490, 0.0
        %2499 = vadd.xlane.f32.xlu0 %v2498
        %v2500 = vpop.xlane.xlu0 %2499
        %v2501 = vsel %vm1559, %v2492, 0.0
        %2502 = vadd.xlane.f32.xlu0 %v2501
        %v2503 = vpop.xlane.xlu0 %2502
        %v2504 = vsel %vm1559, %v2494, 0.0
        %2505 = vadd.xlane.f32.xlu0 %v2504
        %v2506 = vpop.xlane.xlu0 %2505
        %v2507 = vrcp.pop %v2497
        %v2508 = vrcp.pop %v2500
        %v2509 = vrcp.pop %v2503
        %v2510 = vrcp.pop %v2506
        %v2511 = vmul.f32 %v2488, %v2507
        %v2512 = vmul.f32 %v2490, %v2508
        %v2513 = vmul.f32 %v2492, %v2509
        %v2514 = vmul.f32 %v2494, %v2510
        %v2515 = vpack.c.bf16 %v2511, %v2511
        %v2516 = vpack.c.bf16 %v2512, %v2512
        %v2517 = vpack.c.bf16 %v2513, %v2513
        %v2518 = vpack.c.bf16 %v2514, %v2514
        %v2519 = vunpack.c.l.b16 %v2383
        %v2520 = vpack.c.b16 %v2519, %v2519
        %2521 = vrot.lane.b32.xlu0 %v2520, 112
        %v2522 = vpop.permute.xlu0 %2521
        %v2524 = vsel %vm1559, %v2515, 0
        %v2527 = vsel %vm1613, %v2522, 0
        %2529 = vmatpush.bf16.msra.mxu0 0
        %2530 = vmatpush.bf16.msra.mxu0 0
        %2531 = vmatpush.bf16.msra.mxu0 0
        %2532 = vmatpush.bf16.msra.mxu0 0
        %2533 = vmatpush.bf16.msra.mxu0 0
        %2534 = vmatpush.bf16.msra.mxu0 0
        %2535 = vmatpush.bf16.msra.mxu0 0
        %2536 = vmatpush.bf16.msra.mxu0 %v2527
        %2537 = vmatmul.bf16.gmra.mxu0 %v2524
        %v2538 = vpop.f32.mrf.mxu0
        %v2539 = vadd.f32 0.0, %v2538
        %v2540 = vpop.f32.mrf.mxu0
        %2541 = vdwg.mxu0
        %v2542 = vunpack.c.l.b16 %v2386
        %v2543 = vpack.c.b16 %v2542, %v2542
        %2544 = vrot.lane.b32.xlu0 %v2543, 112
        %v2545 = vpop.permute.xlu0 %2544
        %v2547 = vsel %vm1559, %v2516, 0
        %v2550 = vsel %vm1613, %v2545, 0
        %2552 = vmatpush.bf16.msra.mxu0 0
        %2553 = vmatpush.bf16.msra.mxu0 0
        %2554 = vmatpush.bf16.msra.mxu0 0
        %2555 = vmatpush.bf16.msra.mxu0 0
        %2556 = vmatpush.bf16.msra.mxu0 0
        %2557 = vmatpush.bf16.msra.mxu0 0
        %2558 = vmatpush.bf16.msra.mxu0 0
        %2559 = vmatpush.bf16.msra.mxu0 %v2550
        %2560 = vmatmul.bf16.gmra.mxu0 %v2547
        %v2561 = vpop.f32.mrf.mxu0
        %v2562 = vadd.f32 0.0, %v2561
        %v2563 = vpop.f32.mrf.mxu0
        %2564 = vdwg.mxu0
        %v2565 = vunpack.c.l.b16 %v2388
        %v2566 = vpack.c.b16 %v2565, %v2565
        %2567 = vrot.lane.b32.xlu0 %v2566, 112
        %v2568 = vpop.permute.xlu0 %2567
        %v2570 = vsel %vm1559, %v2517, 0
        %v2573 = vsel %vm1613, %v2568, 0
        %2575 = vmatpush.bf16.msra.mxu0 0
        %2576 = vmatpush.bf16.msra.mxu0 0
        %2577 = vmatpush.bf16.msra.mxu0 0
        %2578 = vmatpush.bf16.msra.mxu0 0
        %2579 = vmatpush.bf16.msra.mxu0 0
        %2580 = vmatpush.bf16.msra.mxu0 0
        %2581 = vmatpush.bf16.msra.mxu0 0
        %2582 = vmatpush.bf16.msra.mxu0 %v2573
        %2583 = vmatmul.bf16.gmra.mxu0 %v2570
        %v2584 = vpop.f32.mrf.mxu0
        %v2585 = vadd.f32 0.0, %v2584
        %v2586 = vpop.f32.mrf.mxu0
        %2587 = vdwg.mxu0
        %v2588 = vunpack.c.l.b16 %v2390
        %v2589 = vpack.c.b16 %v2588, %v2588
        %2590 = vrot.lane.b32.xlu0 %v2589, 112
        %v2591 = vpop.permute.xlu0 %2590
        %v2593 = vsel %vm1559, %v2518, 0
        %v2596 = vsel %vm1613, %v2591, 0
        %2598 = vmatpush.bf16.msra.mxu0 0
        %2599 = vmatpush.bf16.msra.mxu0 0
        %2600 = vmatpush.bf16.msra.mxu0 0
        %2601 = vmatpush.bf16.msra.mxu0 0
        %2602 = vmatpush.bf16.msra.mxu0 0
        %2603 = vmatpush.bf16.msra.mxu0 0
        %2604 = vmatpush.bf16.msra.mxu0 0
        %2605 = vmatpush.bf16.msra.mxu0 %v2596
        %2606 = vmatmul.bf16.gmra.mxu0 %v2593
        %v2607 = vpop.f32.mrf.mxu0
        %v2608 = vadd.f32 0.0, %v2607
        %v2609 = vpop.f32.mrf.mxu0
        %2610 = vdwg.mxu0
        %2612 = vrot.lane.b32.xlu0 %v2562, 4
        %v2613 = vpop.permute.xlu0 %2612
        %2616 = vrot.lane.b32.xlu0 %v2585, 8
        %v2617 = vpop.permute.xlu0 %2616
        %2620 = vrot.lane.b32.xlu0 %v2608, 12
        %v2621 = vpop.permute.xlu0 %2620
        %v2623 = vsel %vm1466, %v2539, %v2613
        %v2624 = vsel %vm1559, %v2623, %v2617
        %v2625 = vsel %vm1707, %v2624, %v2621
        %v2626 = vpack.c.bf16 %v2625, %v2625
        %v2628 = vunpack.c.l.b16 %v2626
        %v2629 = vpack.c.b16 %v2628, %v2628
        %v2632 = vsel %vm1613, %v2374, %v2629
        %v2633 = vld [vmem:[%s1137] sm:$0xf]
        %v2634 = vld [vmem:[%s1137 + $0x4] sm:$0xf]
        %v2635 = vld [vmem:[%s1146] sm:$0x1]
        %v2637 = vperm.slane %v2635, 0
        %v2641 = vunpack.c.l.b16 %v2633
        %v2642 = vunpack.c.l.b16 %v2634
        %v2643 = vpack.c.b16 %v2642, %v2641
        %v2645 = vsel %vm1436, %v2632, 0
        %2647 = vmatpush.bf16.msra.mxu0 0
        %2648 = vmatpush.bf16.msra.mxu0 0
        %2649 = vmatpush.bf16.msra.mxu0 0
        %2650 = vmatpush.bf16.msra.mxu0 0
        %2651 = vmatpush.bf16.msra.mxu0 0
        %2652 = vmatpush.bf16.msra.mxu0 0
        %2653 = vmatpush.bf16.msra.mxu0 0
        %2654 = vmatpush.bf16.msra.mxu0 %v2643
        %2655 = vmatmul.bf16.gmra.mxu0 %v2645
        %v2656 = vpop.f32.mrf.mxu0
        %v2657 = vadd.f32 %v2637, %v2656
        %v2658 = vpop.f32.mrf.mxu0
        %v2659 = vadd.f32 %v2637, %v2658
        %2660 = vdwg.mxu0
        %v2661 = vadd.f32 %v2059, %v2657
        %v2662 = vadd.f32 %v2060, %v2659
        %v2663 = vld [vmem:[%s1183] sm:$0x1]
        %v2664 = vld [vmem:[%s1378] sm:$0x1]
        %v2665 = vsel %vm1436, %v2661, 0.0
        %2666 = vadd.xlane.f32.xlu0 %v2665
        %v2667 = vpop.xlane.xlu0 %2666
        %v2668 = vsel %vm1436, %v2662, 0.0
        %2669 = vadd.xlane.f32.xlu0 %v2668
        %v2670 = vpop.xlane.xlu0 %2669
        %v2671 = vmul.f32 %v2667, %v2012
        %v2672 = vmul.f32 %v2670, %v2012
        %v2673 = vsub.f32 %v2661, %v2671
        %v2674 = vsub.f32 %v2662, %v2672
        %v2675 = vmul.f32 %v2673, %v2673
        %v2676 = vmul.f32 %v2674, %v2674
        %v2677 = vsel %vm1436, %v2675, 0.0
        %2678 = vadd.xlane.f32.xlu0 %v2677
        %v2679 = vpop.xlane.xlu0 %2678
        %v2680 = vsel %vm1436, %v2676, 0.0
        %2681 = vadd.xlane.f32.xlu0 %v2680
        %v2682 = vpop.xlane.xlu0 %2681
        %v2683 = vmul.f32 %v2679, %v2012
        %v2684 = vmul.f32 %v2682, %v2012
        %v2685 = vadd.f32 %v2683, 1e-05
        %v2686 = vadd.f32 %v2684, 1e-05
        %v2687 = vrsqrt.pop %v2685
        %v2688 = vmul.f32 %v2687, %v2685
        %v2689 = vmul.f32 %v2688, %v2687
        %v2690 = vmul.f32 0.5, %v2689
        %v2691 = vsub.f32 1.5, %v2690
        %v2692 = vmul.f32 %v2687, %v2691
        %vm2693 = vweird.f32 %v2685
        %vm2694 = vweird.f32 %v2687
        %vm2695 = vmor %vm2693, %vm2694
        %v2696 = vsel %vm2695, %v2687, %v2692
        %v2697 = vrsqrt.pop %v2686
        %v2698 = vmul.f32 %v2697, %v2686
        %v2699 = vmul.f32 %v2698, %v2697
        %v2700 = vmul.f32 0.5, %v2699
        %v2701 = vsub.f32 1.5, %v2700
        %v2702 = vmul.f32 %v2697, %v2701
        %vm2703 = vweird.f32 %v2686
        %vm2704 = vweird.f32 %v2697
        %vm2705 = vmor %vm2703, %vm2704
        %v2706 = vsel %vm2705, %v2697, %v2702
        %v2707 = vmul.f32 %v2673, %v2696
        %v2708 = vmul.f32 %v2674, %v2706
        %v2710 = vperm.slane %v2663, 0
        %v2712 = vmul.f32 %v2707, %v2710
        %v2713 = vmul.f32 %v2708, %v2710
        %v2715 = vperm.slane %v2664, 0
        %v2717 = vadd.f32 %v2712, %v2715
        %v2718 = vadd.f32 %v2713, %v2715
        %v2719 = vpack.c.bf16 %v2718, %v2717
        %v2720 = vld [vmem:[%s1156] sm:$0xf]
        %v2721 = vld [vmem:[%s1156 + $0x4] sm:$0xf]
        %v2722 = vld [vmem:[%s1165] sm:$0x1]
        %v2724 = vperm.slane %v2722, 0
        %v2728 = vunpack.c.l.b16 %v2720
        %v2729 = vunpack.c.l.b16 %v2721
        %v2730 = vpack.c.b16 %v2729, %v2728
        %v2733 = vsel %vm1436, %v2719, 0
        %2735 = vmatpush.bf16.msra.mxu0 0
        %2736 = vmatpush.bf16.msra.mxu0 0
        %2737 = vmatpush.bf16.msra.mxu0 0
        %2738 = vmatpush.bf16.msra.mxu0 0
        %2739 = vmatpush.bf16.msra.mxu0 0
        %2740 = vmatpush.bf16.msra.mxu0 0
        %2741 = vmatpush.bf16.msra.mxu0 0
        %2742 = vmatpush.bf16.msra.mxu0 %v2730
        %2743 = vmatmul.bf16.gmra.mxu0 %v2733
        %v2744 = vpop.f32.mrf.mxu0
        %v2745 = vadd.f32 %v2724, %v2744
        %v2746 = vpop.f32.mrf.mxu0
        %v2747 = vadd.f32 %v2724, %v2746
        %2748 = vdwg.mxu0
        %v2749 = vmul.f32 %v2745, 0.5
        %v2750 = vmul.f32 %v2747, 0.5
        %v2751 = vmul.f32 %v2745, 0.70710677
        %v2752 = vmul.f32 %v2747, 0.70710677
        %v2753 = vand.u32 2147483647, %v2751
        %v2754 = vand.u32 2147483647, %v2752
        %v2755 = vmul.f32 %v2753, 0.3275911
        %v2756 = vmul.f32 %v2754, 0.3275911
        %v2757 = vadd.f32 %v2755, 1.0
        %v2758 = vadd.f32 %v2756, 1.0
        %v2759 = vrcp.pop %v2757
        %v2760 = vrcp.pop %v2758
        %v2761 = vmul.f32 %v2759, 1.0614054
        %v2762 = vmul.f32 %v2760, 1.0614054
        %v2763 = vadd.f32 %v2761, -1.4531521
        %v2764 = vadd.f32 %v2762, -1.4531521
        %v2765 = vmul.f32 %v2763, %v2759
        %v2766 = vmul.f32 %v2764, %v2760
        %v2767 = vadd.f32 %v2765, 1.4214138
        %v2768 = vadd.f32 %v2766, 1.4214138
        %v2769 = vmul.f32 %v2767, %v2759
        %v2770 = vmul.f32 %v2768, %v2760
        %v2771 = vadd.f32 %v2769, -0.28449672
        %v2772 = vadd.f32 %v2770, -0.28449672
        %v2773 = vmul.f32 %v2771, %v2759
        %v2774 = vmul.f32 %v2772, %v2760
        %v2775 = vadd.f32 %v2773, 0.2548296
        %v2776 = vadd.f32 %v2774, 0.2548296
        %v2777 = vmul.f32 %v2775, %v2759
        %v2778 = vmul.f32 %v2776, %v2760
        %v2779 = vmul.f32 %v2753, %v2753
        %v2780 = vmul.f32 %v2754, %v2754
        %v2781 = vsub.f32 0.0, %v2779
        %v2782 = vsub.f32 0.0, %v2780
        %v2783 = vmul.f32 %v2781, 1.442695
        %v2784 = vpow.pop %v2783
        %v2785 = vmul.f32 %v2782, 1.442695
        %v2786 = vpow.pop %v2785
        %v2787 = vmul.f32 %v2777, %v2784
        %v2788 = vmul.f32 %v2778, %v2786
        %v2789 = vsub.f32 1.0, %v2787
        %v2790 = vsub.f32 1.0, %v2788
        %vm2791 = vcmp.ge.f32.partialorder %v2751, 0.0
        %vm2792 = vcmp.ge.f32.partialorder %v2752, 0.0
        %v2793 = vsub.f32 0.0, %v2789
        %v2794 = vsub.f32 0.0, %v2790
        %v2795 = vsel %vm2791, %v2789, %v2793
        %v2796 = vsel %vm2792, %v2790, %v2794
        %v2797 = vadd.f32 %v2795, 1.0
        %v2798 = vadd.f32 %v2796, 1.0
        %v2799 = vmul.f32 %v2749, %v2797
        %v2800 = vmul.f32 %v2750, %v2798
        %v2801 = vpack.c.bf16 %v2800, %v2799
        %v2802 = vld [vmem:[%s1369] sm:$0xf]
        %v2803 = vld [vmem:[%s1369 + $0x4] sm:$0xf]
        %v2804 = vld [vmem:[%s1369 + $0x8] sm:$0xf]
        %v2805 = vld [vmem:[%s1369 + $0xc] sm:$0xf]
        %v2806 = vld [vmem:[%s1372] sm:$0x1]
        %v2808 = vperm.slane %v2806, 0
        %v2814 = vunpack.c.l.b16 %v2802
        %v2815 = vunpack.c.l.b16 %v2803
        %v2816 = vunpack.c.l.b16 %v2804
        %v2817 = vunpack.c.l.b16 %v2805
        %v2818 = vpack.c.b16 %v2815, %v2814
        %v2819 = vpack.c.b16 %v2817, %v2816
        %vm2822 = vcmask 261120
        %v2824 = vsel %vm2822, %v2801, 0
        %2826 = vmatpush.bf16.msra.mxu0 0
        %2827 = vmatpush.bf16.msra.mxu0 0
        %2828 = vmatpush.bf16.msra.mxu0 0
        %2829 = vmatpush.bf16.msra.mxu0 0
        %2830 = vmatpush.bf16.msra.mxu0 0
        %2831 = vmatpush.bf16.msra.mxu0 0
        %2832 = vmatpush.bf16.msra.mxu0 %v2819
        %2833 = vmatpush.bf16.msra.mxu0 %v2818
        %2834 = vmatmul.bf16.gmra.mxu0 %v2824
        %v2835 = vpop.f32.mrf.mxu0
        %v2836 = vadd.f32 %v2808, %v2835
        %v2837 = vpop.f32.mrf.mxu0
        %v2838 = vadd.f32 %v2808, %v2837
        %2839 = vdwg.mxu0
        %v2840 = vadd.f32 %v2717, %v2836
        %v2841 = vadd.f32 %v2718, %v2838
        %v2842 = vld [vmem:[%s1192] sm:$0x1]
        %v2843 = vld [vmem:[%s1381] sm:$0x1]
        %v2844 = vsel %vm1436, %v2840, 0.0
        %2845 = vadd.xlane.f32.xlu0 %v2844
        %v2846 = vpop.xlane.xlu0 %2845
        %v2847 = vsel %vm1436, %v2841, 0.0
        %2848 = vadd.xlane.f32.xlu0 %v2847
        %v2849 = vpop.xlane.xlu0 %2848
        %v2850 = vmul.f32 %v2846, %v2012
        %v2851 = vmul.f32 %v2849, %v2012
        %v2852 = vsub.f32 %v2840, %v2850
        %v2853 = vsub.f32 %v2841, %v2851
        %v2854 = vmul.f32 %v2852, %v2852
        %v2855 = vmul.f32 %v2853, %v2853
        %v2856 = vsel %vm1436, %v2854, 0.0
        %2857 = vadd.xlane.f32.xlu0 %v2856
        %v2858 = vpop.xlane.xlu0 %2857
        %v2859 = vsel %vm1436, %v2855, 0.0
        %2860 = vadd.xlane.f32.xlu0 %v2859
        %v2861 = vpop.xlane.xlu0 %2860
        %v2862 = vmul.f32 %v2858, %v2012
        %v2863 = vmul.f32 %v2861, %v2012
        %v2864 = vadd.f32 %v2862, 1e-05
        %v2865 = vadd.f32 %v2863, 1e-05
        %v2866 = vrsqrt.pop %v2864
        %v2867 = vmul.f32 %v2866, %v2864
        %v2868 = vmul.f32 %v2867, %v2866
        %v2869 = vmul.f32 0.5, %v2868
        %v2870 = vsub.f32 1.5, %v2869
        %v2871 = vmul.f32 %v2866, %v2870
        %vm2872 = vweird.f32 %v2864
        %vm2873 = vweird.f32 %v2866
        %vm2874 = vmor %vm2872, %vm2873
        %v2875 = vsel %vm2874, %v2866, %v2871
        %v2876 = vrsqrt.pop %v2865
        %v2877 = vmul.f32 %v2876, %v2865
        %v2878 = vmul.f32 %v2877, %v2876
        %v2879 = vmul.f32 0.5, %v2878
        %v2880 = vsub.f32 1.5, %v2879
        %v2881 = vmul.f32 %v2876, %v2880
        %vm2882 = vweird.f32 %v2865
        %vm2883 = vweird.f32 %v2876
        %vm2884 = vmor %vm2882, %vm2883
        %v2885 = vsel %vm2884, %v2876, %v2881
        %v2886 = vmul.f32 %v2852, %v2875
        %v2887 = vmul.f32 %v2853, %v2885
        %v2889 = vperm.slane %v2842, 0
        %v2891 = vmul.f32 %v2886, %v2889
        %v2892 = vmul.f32 %v2887, %v2889
        %v2894 = vperm.slane %v2843, 0
        %v2896 = vadd.f32 %v2891, %v2894
        %v2897 = vadd.f32 %v2892, %v2894
        %2898 = vst.msk [vmem:[#allocation2] sm:$0xff] %vm1436, %v2896
        %2899 = vst.msk [vmem:[#allocation2 + $0x8] sm:$0xff] %vm1436, %v2897
        %p2900 = scmp.eq.s32.totalorder %s44, 1
        // Predicated region
        $region185: #{tpu_custom_call.1} parent=119 // pred_check
          %p2901 = pneg %p2900
        $region186: #{tpu_custom_call.1} parent=119 // pred_check_branch
          %2903 = sbr.rel (%p2901) target = $region188
        $region187: #{tpu_custom_call.1} parent=119 // pred_region
          %2904 = vst.msk [vmem:[#allocation21] sm:$0xff] %vm1436, %v2896
          %2905 = vst.msk [vmem:[#allocation21 + $0x8] sm:$0xff] %vm1436, %v2897
        $region188: #{tpu_custom_call.1} parent=119 // pred_fallthru
          _
        // Predicated region
        $region189: #{tpu_custom_call.1} parent=119 // pred_check
          %p2906 = pneg %p704
        $region190: #{tpu_custom_call.1} parent=119 // pred_check_branch
          %2908 = sbr.rel (%p2906) target = $region192
        $region191: #{tpu_custom_call.1} parent=119 // pred_region
          %s2909 = smul.u32 2, %s43
          %2911 = vsyncadd [#allocation5], 0
          %s2912 = smul.addr %s2909, 8
          %s2913 = scalar_lea.hbm %s25, %s2912
          %s2914 = sshll.u32 [#allocation21], 4
          %s2915 = int_to_ptr.vmem [resolvable:$true] %s2914
          %s2916 = sshll.u32 %s2913, 4
          %s2917 = int_to_ptr.hbm [resolvable:$true] %s2916
          %2922 = dma.vmem_to_hbm [thread:$0]  %s2915, 256, %s2917, [#allocation5], 128, 128, 8
        $region192: #{tpu_custom_call.1} parent=119 // pred_fallthru
          _
        // Predicated region
        $region193: #{tpu_custom_call.1} parent=119 // pred_check
          %p2923 = pneg %p704
        $region194: #{tpu_custom_call.1} parent=119 // pred_check_branch
          %2925 = sbr.rel (%p2923) target = $region196
        $region195: #{tpu_custom_call.1} parent=119 // pred_region
          %2927 = dma.done [#allocation5], 256
        $region196: #{tpu_custom_call.1} parent=119 // pred_fallthru
          _
      $region120: #{tpu_custom_call.1} parent=5 // pred_fallthru
        _
      %p2928 = scmp.le.s32.totalorder 2, %s34
      // Predicated region
      $region197: #{tpu_custom_call.1} parent=5 // pred_check
        %p2929 = pneg %p2928
      $region198: #{tpu_custom_call.1} parent=5 // pred_check_branch
        %2931 = sbr.rel (%p2929) target = $region200
      $region199: #{tpu_custom_call.1} parent=5 // pred_region
        %s2932 = ssub.s32 %s34, 2
      $region200: #{tpu_custom_call.1} parent=5 // pred_fallthru
        _
    $region6: #{tpu_custom_call.1} parent=1 // loop_footer
      %s38 = sadd.s32 1, %s34
    $region7: #{tpu_custom_call.1} parent=1 // loop_footer_branch
      %33 = sbr.rel target = $region3
    $region8: #{tpu_custom_call.1} parent=1 // loop_exit
      _
    %2933 = vsyncpa [#allocation4], 1
    %s2934 = scalar_lea.sflag [#allocation4], 1
    %2935 = vsyncpa %s2934, 1
    %2936 = vsyncpa [#allocation7], 1
    %2937 = vsyncpa [#allocation5], 1
    %s2938 = scalar_lea.sflag [#allocation5], 1
    %2939 = vsyncpa %s2938, 1

</llo_original>
